<compile_context>
chip_gen: v5e
topology: v5e:2x2
jax: 0.10.0
libtpu: 0.0.40
codegen_flags: <defaults>
</compile_context>

<pallas_src>
import jax
import jax.numpy as jnp
from jax import lax
from jax.experimental import pallas as pl
from jax.experimental.pallas import tpu as pltpu

# ---------------- configuration (scaled-down, see header) ----------------
HIDDEN = 128          # stands in for 1024 in the original module
DIM_IN = 3 * 64       # spo feature dim; dim_in // 3 = 64 is the sbj/obj feature dim
SO_DIM = DIM_IN // 3
NUM_PRD_OUT = 8 + 1   # cfg.MODEL.NUM_PRD_CLASSES + 1
NUM_SO_OUT = 17 - 1   # cfg.MODEL.NUM_CLASSES - 1
CLS_PAD = 128         # lane-dense padding for classifier outputs
NEG_FILL = -1e30      # logit value for padded classes (exp -> exact 0 in softmax)

# NOTE: the single 128-wide weight slab packing assumes HIDDEN == CLS_PAD; at the
# real HIDDEN=1024 / ~151-class configuration the packing has to be re-derived.
assert HIDDEN == CLS_PAD, "single 128-wide weight slab assumes HIDDEN == 128"

# Row offsets inside the packed bf16 weight slab (all multiples of 16 -> bf16-tile aligned).
OFF_PRD = 0                       # w_prd : (DIM_IN, H)
OFF_SO = OFF_PRD + DIM_IN         # w_so  : (SO_DIM, H)
OFF_PV1 = OFF_SO + SO_DIM         # w_pv1 : (3H, H)   (rows contiguous -> one K=384 dot)
OFF_PV2 = OFF_PV1 + 3 * HIDDEN    # w_pv2 : (H, H)
OFF_CP = OFF_PV2 + HIDDEN         # w_cp  : (H, 128) zero-padded cols >= NUM_PRD_OUT
OFF_CSO = OFF_CP + HIDDEN         # w_cso : (H, 128) zero-padded cols >= NUM_SO_OUT
W_ROWS = OFF_CSO + HIDDEN         # = 1024

B_ROWS = 8                        # bias slab rows (6 real + 2 zero pad to sublane multiple)


def _default_row_tile() -> int:
    """Row tile per generation: 256 fills the 256-wide MXU M dim on v6e/v7x,
    128 matches the 4x(128x128) MXU on v5e and older."""
    try:
        kind = jax.devices()[0].device_kind.lower()
    except Exception:
        return 128
    return 256 if ("v6" in kind or "v7" in kind) else 128


TILE_N = _default_row_tile()


def _leaky_relu(x, slope=0.1):
    return jnp.where(x > 0, x, slope * x)


def _l2_normalize(x, eps=1e-12):
    # F.normalize(x, p=2, dim=1) == x / max(||x||_2, eps) == x * rsqrt(max(sumsq, eps^2))
    sumsq = jnp.sum(x * x, axis=1, keepdims=True)
    return x * lax.rsqrt(jnp.maximum(sumsq, eps * eps))


def _softmax(x):
    m = jnp.max(x, axis=1, keepdims=True)
    e = jnp.exp(x - m)
    return e * pl.reciprocal(jnp.sum(e, axis=1, keepdims=True), approx=True)


def reldn_kernel(spo_ref, sbj_ref, obj_ref, w_ref, b_ref, out_ref):
    f32 = jnp.float32
    bf16 = jnp.bfloat16
    H = HIDDEN
    T = spo_ref.shape[0]  # row tile

    # Bias slab (f32). Rows: prd, so, pv1, pv2, cp(padded -1e30), cso(padded -1e30).
    b = b_ref[...]
    b_prd = b[0:1, :]
    b_so = b[1:2, :]
    b_pv1 = b[2:3, :]
    b_pv2 = b[3:4, :]
    b_cp = b[4:5, :]
    b_cso = b[5:6, :]

    spo = spo_ref[...]                                            # (T, DIM_IN) bf16
    soq = jnp.concatenate([sbj_ref[...], obj_ref[...]], axis=0)   # (2T, SO_DIM) bf16

    # so_vis_embeddings applied once to stacked [sbj; obj].
    so_vis = (
        jnp.dot(soq, w_ref[OFF_SO:OFF_SO + SO_DIM, :], preferred_element_type=f32)
        + b_so
    )                                                             # (2T, H) f32
    so_vis_bf = so_vis.astype(bf16)                               # cast once
    sbj_bf = so_vis_bf[:T, :]
    obj_bf = so_vis_bf[T:, :]

    # prd_feats: Linear + LeakyReLU(0.1)
    prd_hidden = _leaky_relu(
        jnp.dot(spo, w_ref[OFF_PRD:OFF_PRD + DIM_IN, :], preferred_element_type=f32)
        + b_prd
    )                                                             # (T, H) f32
    prd_hidden_bf = prd_hidden.astype(bf16)

    # prd_vis_embeddings[0]: one fused K=3H matmul over cat([sbj_vis, prd_hidden, obj_vis]).
    # Each operand is a full-128-lane block, so the lane concat is vreg placement.
    prd_cat = jnp.concatenate([sbj_bf, prd_hidden_bf, obj_bf], axis=1)   # (T, 3H) bf16
    pv1 = _leaky_relu(
        jnp.dot(prd_cat, w_ref[OFF_PV1:OFF_PV1 + 3 * H, :], preferred_element_type=f32)
        + b_pv1
    )
    prd_vis = (
        jnp.dot(pv1.astype(bf16), w_ref[OFF_PV2:OFF_PV2 + H, :],
                preferred_element_type=f32)
        + b_pv2
    )                                                             # (T, H) f32

    # L2 normalize embeddings, then classify (classifier weights lane-padded to 128;
    # padded bias columns carry -1e30 so their softmax probability is exactly 0).
    prd_n = _l2_normalize(prd_vis).astype(bf16)                   # (T, H)
    so_n = _l2_normalize(so_vis).astype(bf16)                     # (2T, H)

    prd_scores = (
        jnp.dot(prd_n, w_ref[OFF_CP:OFF_CP + H, :], preferred_element_type=f32)
        + b_cp
    )                                                             # (T, 128)
    so_scores = (
        jnp.dot(so_n, w_ref[OFF_CSO:OFF_CSO + H, :], preferred_element_type=f32)
        + b_cso
    )                                                             # (2T, 128)

    # eval mode (`not self.training`): one stacked softmax over all 3T rows.
    logits = jnp.concatenate([prd_scores, so_scores], axis=0)     # (3T, 128)
    probs = _softmax(logits)

    # Lane-dense unmasked stores: plane 0 = prd, plane 1 = sbj, plane 2 = obj.
    out_ref[0, :, :] = probs[0 * T:1 * T, :]
    out_ref[1, :, :] = probs[1 * T:2 * T, :]
    out_ref[2, :, :] = probs[2 * T:3 * T, :]


@jax.jit
def reldn_head_forward(spo_feat, sbj_feat, obj_feat, packed):
    # Mirror `if spo_feat.dim() == 4: spo_feat = spo_feat.squeeze(3).squeeze(2)`
    if spo_feat.ndim == 4:
        spo_feat = spo_feat[:, :, 0, 0]

    n = spo_feat.shape[0]
    n_pad = ((n + TILE_N - 1) // TILE_N) * TILE_N
    pad = n_pad - n

    # Pre-cast activations to bf16 (halves activation DMA bytes); pad rows to the tile.
    spo_bf = jnp.pad(spo_feat, ((0, pad), (0, 0))).astype(jnp.bfloat16)
    sbj_bf = jnp.pad(sbj_feat, ((0, pad), (0, 0))).astype(jnp.bfloat16)
    obj_bf = jnp.pad(obj_feat, ((0, pad), (0, 0))).astype(jnp.bfloat16)

    grid = (n_pad // TILE_N,)

    out = pl.pallas_call(
        reldn_kernel,
        out_shape=jax.ShapeDtypeStruct((3, n_pad, CLS_PAD), jnp.float32),
        grid=grid,
        in_specs=[
            pl.BlockSpec((TILE_N, DIM_IN), lambda i: (i, 0)),
            pl.BlockSpec((TILE_N, SO_DIM), lambda i: (i, 0)),
            pl.BlockSpec((TILE_N, SO_DIM), lambda i: (i, 0)),
            # Grid-invariant slabs: constant block index -> fetched once, VMEM-resident.
            pl.BlockSpec((W_ROWS, CLS_PAD), lambda i: (0, 0)),
            pl.BlockSpec((B_ROWS, CLS_PAD), lambda i: (0, 0)),
        ],
        out_specs=pl.BlockSpec((3, TILE_N, CLS_PAD), lambda i: (0, i, 0)),
        compiler_params=pltpu.CompilerParams(
            # Independent row tiles -> megacore-splittable on v7x.
            dimension_semantics=("parallel",),
            # Toy-config live footprint < 2 MiB.
            # TODO(synk): at production HIDDEN=1024 the bf16 slab is ~20 MiB; it must be
            # single-buffered (pl.Buffered(1)) or tiled over a K grid axis to fit v7x's
            # 64 MiB VMEM, and this limit re-derived.
            vmem_limit_bytes=16 << 20,
        ),
    )(spo_bf, sbj_bf, obj_bf, packed["w_slab"], packed["b_slab"])

    # Slice real rows / real classes back out (free layout plumbing outside the kernel).
    prd_scores = out[0, :n, :NUM_PRD_OUT]
    sbj_scores = out[1, :n, :NUM_SO_OUT]
    obj_scores = out[2, :n, :NUM_SO_OUT]
    return prd_scores, sbj_scores, obj_scores


# ---------------- parameter construction / packing ----------------
def _xavier(key, fan_in, fan_out):
    # XavierFill ~ uniform(-a, a), a = sqrt(6 / (fan_in + fan_out)); biases = 0.
    a = (6.0 / (fan_in + fan_out)) ** 0.5
    return jax.random.uniform(key, (fan_in, fan_out), jnp.float32, -a, a)


def init_params(key):
    # Weights stored pre-transposed as (in_features, out_features): y = x @ W + b.
    ks = jax.random.split(key, 6)
    return {
        "w_prd": _xavier(ks[0], DIM_IN, HIDDEN),
        "b_prd": jnp.zeros((1, HIDDEN), jnp.float32),
        "w_so": _xavier(ks[1], SO_DIM, HIDDEN),
        "b_so": jnp.zeros((1, HIDDEN), jnp.float32),
        "w_pv1": _xavier(ks[2], 3 * HIDDEN, HIDDEN),
        "b_pv1": jnp.zeros((1, HIDDEN), jnp.float32),
        "w_pv2": _xavier(ks[3], HIDDEN, HIDDEN),
        "b_pv2": jnp.zeros((1, HIDDEN), jnp.float32),
        "w_cp": _xavier(ks[4], HIDDEN, NUM_PRD_OUT),
        "b_cp": jnp.zeros((1, NUM_PRD_OUT), jnp.float32),
        "w_cso": _xavier(ks[5], HIDDEN, NUM_SO_OUT),
        "b_cso": jnp.zeros((1, NUM_SO_OUT), jnp.float32),
    }


def pack_params(params):
    """Pack all weights into one bf16 slab and all biases into one f32 slab."""
    def pad_cls(w, b, n_real):
        w_p = jnp.zeros((HIDDEN, CLS_PAD), jnp.float32).at[:, :n_real].set(w)
        b_p = jnp.full((1, CLS_PAD), NEG_FILL, jnp.float32).at[:, :n_real].set(
            b.reshape(1, -1))
        return w_p, b_p

    w_cp_p, b_cp_p = pad_cls(params["w_cp"], params["b_cp"], NUM_PRD_OUT)
    w_cso_p, b_cso_p = pad_cls(params["w_cso"], params["b_cso"], NUM_SO_OUT)

    w_slab = jnp.concatenate(
        [params["w_prd"], params["w_so"], params["w_pv1"], params["w_pv2"],
         w_cp_p, w_cso_p],
        axis=0,
    ).astype(jnp.bfloat16)
    assert w_slab.shape == (W_ROWS, CLS_PAD)

    b_slab = jnp.concatenate(
        [params["b_prd"], params["b_so"], params["b_pv1"], params["b_pv2"],
         b_cp_p, b_cso_p, jnp.zeros((2, CLS_PAD), jnp.float32)],
        axis=0,
    )
    assert b_slab.shape == (B_ROWS, CLS_PAD)
    return {"w_slab": w_slab, "b_slab": b_slab}


# ---------------- pure-JAX f32 reference (matches the PyTorch forward) ----------------
def reldn_reference(spo_feat, sbj_feat, obj_feat, params):
    if spo_feat.ndim == 4:
        spo_feat = spo_feat[:, :, 0, 0]

    def lin(x, w, b):
        return x @ w + b

    def leaky(x):
        return jnp.where(x > 0, x, 0.1 * x)

    def l2n(x):
        nrm = jnp.maximum(jnp.linalg.norm(x, axis=1, keepdims=True), 1e-12)
        return x / nrm

    sbj_vis = lin(sbj_feat, params["w_so"], params["b_so"])
    obj_vis = lin(obj_feat, params["w_so"], params["b_so"])
    prd_hidden = leaky(lin(spo_feat, params["w_prd"], params["b_prd"]))
    cat = jnp.concatenate([sbj_vis, prd_hidden, obj_vis], axis=1)
    prd_vis = lin(leaky(lin(cat, params["w_pv1"], params["b_pv1"])),
                  params["w_pv2"], params["b_pv2"])
    sbj_scores = jax.nn.softmax(lin(l2n(sbj_vis), params["w_cso"], params["b_cso"]), axis=1)
    obj_scores = jax.nn.softmax(lin(l2n(obj_vis), params["w_cso"], params["b_cso"]), axis=1)
    prd_scores = jax.nn.softmax(lin(l2n(prd_vis), params["w_cp"], params["b_cp"]), axis=1)
    return prd_scores, sbj_scores, obj_scores


# TODO(synk): the cfg.MODEL.RUN_BASELINE / freq_bias branch and numpy-label handling of
# the original forward are not implemented (no frequency-bias table here); only the
# feature path and eval-mode softmax outputs are translated.

if __name__ == "__main__":
    key = jax.random.PRNGKey(0)
    k_spo, k_sbj, k_obj, k_params = jax.random.split(key, 4)

    # Proposal count deliberately NOT a multiple of the row tile (exercises row padding).
    N = 300

    # spo_feat comes in NCHW with 1x1 spatial, as the PyTorch head expects.
    spo_feat = jax.random.normal(k_spo, (N, DIM_IN, 1, 1), jnp.float32)
    sbj_feat = jax.random.normal(k_sbj, (N, SO_DIM), jnp.float32)
    obj_feat = jax.random.normal(k_obj, (N, SO_DIM), jnp.float32)

    params = init_params(k_params)
    packed = pack_params(params)

    prd_scores, sbj_scores, obj_scores = reldn_head_forward(
        spo_feat, sbj_feat, obj_feat, packed
    )
    jax.block_until_ready((prd_scores, sbj_scores, obj_scores))

    assert prd_scores.shape == (N, NUM_PRD_OUT)
    assert sbj_scores.shape == (N, NUM_SO_OUT)
    assert obj_scores.shape == (N, NUM_SO_OUT)

    # Padded classes must contribute nothing: each softmax row still sums to ~1
    # (tolerance covers the approx EUP reciprocal in the kernel softmax).
    for s in (prd_scores, sbj_scores, obj_scores):
        assert bool(jnp.all(jnp.abs(jnp.sum(s, axis=1) - 1.0) < 1e-2))

    # Explicit comparison against the pure-JAX f32 reference.  Tolerance reflects
    # bf16 weights/activations in the kernel plus the approximate reciprocal.
    prd_ref, sbj_ref, obj_ref = reldn_reference(spo_feat, sbj_feat, obj_feat, params)
    TOL = 5e-2
    assert bool(jnp.max(jnp.abs(prd_scores - prd_ref)) < TOL)
    assert bool(jnp.max(jnp.abs(sbj_scores - sbj_ref)) < TOL)
    assert bool(jnp.max(jnp.abs(obj_scores - obj_ref)) < TOL)

    print("KERNEL_OK")
</pallas_src>

<mosaic_0001>
module attributes {stable_mosaic.version = 11 : i64} {
  func.func @reldn_kernel(%arg0: i32, %arg1: memref<128x192xbf16, #tpu.memory_space<vmem>>, %arg2: memref<128x64xbf16, #tpu.memory_space<vmem>>, %arg3: memref<128x64xbf16, #tpu.memory_space<vmem>>, %arg4: memref<1024x128xbf16, #tpu.memory_space<vmem>>, %arg5: memref<8x128xf32, #tpu.memory_space<vmem>>, %arg6: memref<3x128x128xf32, #tpu.memory_space<vmem>>) attributes {dimension_semantics = [#tpu.dimension_semantics<parallel>], iteration_bounds = array<i64: 3>, scalar_prefetch = 0 : i64, scratch_operands = 0 : i64, tpu.core_type = #tpu.core_type<tc>, window_params = [{transform_indices = @transform_0, window_bounds = array<i64: 128, 192>}, {transform_indices = @transform_1, window_bounds = array<i64: 128, 64>}, {transform_indices = @transform_2, window_bounds = array<i64: 128, 64>}, {pipeline_mode = #tpu.pipeline_mode<synchronous>, transform_indices = @transform_3, window_bounds = array<i64: 1024, 128>}, {pipeline_mode = #tpu.pipeline_mode<synchronous>, transform_indices = @transform_4, window_bounds = array<i64: 8, 128>}, {transform_indices = @transform_5, window_bounds = array<i64: 3, 128, 128>}]} {
    %c0 = arith.constant 0 : index
    %c0_0 = arith.constant 0 : index
    %0 = vector.load %arg5[%c0, %c0_0] : memref<8x128xf32, #tpu.memory_space<vmem>>, vector<8x128xf32>
    %1 = vector.extract_strided_slice %0 {offsets = [0, 0], sizes = [1, 128], strides = [1, 1]} : vector<8x128xf32> to vector<1x128xf32>
    %2 = vector.extract_strided_slice %0 {offsets = [1, 0], sizes = [1, 128], strides = [1, 1]} : vector<8x128xf32> to vector<1x128xf32>
    %3 = vector.extract_strided_slice %0 {offsets = [2, 0], sizes = [1, 128], strides = [1, 1]} : vector<8x128xf32> to vector<1x128xf32>
    %4 = vector.extract_strided_slice %0 {offsets = [3, 0], sizes = [1, 128], strides = [1, 1]} : vector<8x128xf32> to vector<1x128xf32>
    %5 = vector.extract_strided_slice %0 {offsets = [4, 0], sizes = [1, 128], strides = [1, 1]} : vector<8x128xf32> to vector<1x128xf32>
    %6 = vector.extract_strided_slice %0 {offsets = [5, 0], sizes = [1, 128], strides = [1, 1]} : vector<8x128xf32> to vector<1x128xf32>
    %c0_1 = arith.constant 0 : index
    %c0_2 = arith.constant 0 : index
    %7 = vector.load %arg1[%c0_1, %c0_2] : memref<128x192xbf16, #tpu.memory_space<vmem>>, vector<128x192xbf16>
    %c0_3 = arith.constant 0 : index
    %c0_4 = arith.constant 0 : index
    %8 = vector.load %arg2[%c0_3, %c0_4] : memref<128x64xbf16, #tpu.memory_space<vmem>>, vector<128x64xbf16>
    %c0_5 = arith.constant 0 : index
    %c0_6 = arith.constant 0 : index
    %9 = vector.load %arg3[%c0_5, %c0_6] : memref<128x64xbf16, #tpu.memory_space<vmem>>, vector<128x64xbf16>
    %10 = tpu.concatenate %8, %9 in 0 : vector<128x64xbf16>, vector<128x64xbf16> -> vector<256x64xbf16>
    %c192 = arith.constant 192 : index
    %c0_7 = arith.constant 0 : index
    %11 = vector.load %arg4[%c192, %c0_7] : memref<1024x128xbf16, #tpu.memory_space<vmem>>, vector<64x128xbf16>
    %cst = arith.constant dense<0.000000e+00> : vector<256x128xf32>
    %12 = tpu.matmul %10, %11, %cst {dimension_numbers = #tpu.dot_dimension_numbers<[1], [0], [0], [1], [0, 0, 1, 1], [], []>} : vector<256x64xbf16>, vector<64x128xbf16>, vector<256x128xf32> -> vector<256x128xf32>
    %13 = vector.broadcast %2 : vector<1x128xf32> to vector<256x128xf32>
    %14 = arith.addf %12, %13 : vector<256x128xf32>
    %15 = arith.truncf %14 : vector<256x128xf32> to vector<256x128xbf16>
    %16 = vector.extract_strided_slice %15 {offsets = [0, 0], sizes = [128, 128], strides = [1, 1]} : vector<256x128xbf16> to vector<128x128xbf16>
    %17 = vector.extract_strided_slice %15 {offsets = [128, 0], sizes = [128, 128], strides = [1, 1]} : vector<256x128xbf16> to vector<128x128xbf16>
    %c0_8 = arith.constant 0 : index
    %c0_9 = arith.constant 0 : index
    %18 = vector.load %arg4[%c0_8, %c0_9] : memref<1024x128xbf16, #tpu.memory_space<vmem>>, vector<192x128xbf16>
    %cst_10 = arith.constant dense<0.000000e+00> : vector<128x128xf32>
    %19 = tpu.matmul %7, %18, %cst_10 {dimension_numbers = #tpu.dot_dimension_numbers<[1], [0], [0], [1], [0, 0, 1, 1], [], []>} : vector<128x192xbf16>, vector<192x128xbf16>, vector<128x128xf32> -> vector<128x128xf32>
    %20 = vector.broadcast %1 : vector<1x128xf32> to vector<128x128xf32>
    %21 = arith.addf %19, %20 : vector<128x128xf32>
    %cst_11 = arith.constant 0.000000e+00 : f32
    %22 = vector.broadcast %cst_11 : f32 to vector<128x128xf32>
    %23 = arith.cmpf ogt, %21, %22 : vector<128x128xf32>
    %cst_12 = arith.constant 1.000000e-01 : f32
    %24 = vector.broadcast %cst_12 : f32 to vector<128x128xf32>
    %25 = arith.mulf %24, %21 : vector<128x128xf32>
    %26 = arith.select %23, %21, %25 : vector<128x128xi1>, vector<128x128xf32>
    %27 = arith.truncf %26 : vector<128x128xf32> to vector<128x128xbf16>
    %28 = tpu.concatenate %16, %27, %17 in 1 : vector<128x128xbf16>, vector<128x128xbf16>, vector<128x128xbf16> -> vector<128x384xbf16>
    %c256 = arith.constant 256 : index
    %c0_13 = arith.constant 0 : index
    %29 = vector.load %arg4[%c256, %c0_13] : memref<1024x128xbf16, #tpu.memory_space<vmem>>, vector<384x128xbf16>
    %cst_14 = arith.constant dense<0.000000e+00> : vector<128x128xf32>
    %30 = tpu.matmul %28, %29, %cst_14 {dimension_numbers = #tpu.dot_dimension_numbers<[1], [0], [0], [1], [0, 0, 1, 1], [], []>} : vector<128x384xbf16>, vector<384x128xbf16>, vector<128x128xf32> -> vector<128x128xf32>
    %31 = vector.broadcast %3 : vector<1x128xf32> to vector<128x128xf32>
    %32 = arith.addf %30, %31 : vector<128x128xf32>
    %cst_15 = arith.constant 0.000000e+00 : f32
    %33 = vector.broadcast %cst_15 : f32 to vector<128x128xf32>
    %34 = arith.cmpf ogt, %32, %33 : vector<128x128xf32>
    %cst_16 = arith.constant 1.000000e-01 : f32
    %35 = vector.broadcast %cst_16 : f32 to vector<128x128xf32>
    %36 = arith.mulf %35, %32 : vector<128x128xf32>
    %37 = arith.select %34, %32, %36 : vector<128x128xi1>, vector<128x128xf32>
    %38 = arith.truncf %37 : vector<128x128xf32> to vector<128x128xbf16>
    %c640 = arith.constant 640 : index
    %c0_17 = arith.constant 0 : index
    %39 = vector.load %arg4[%c640, %c0_17] : memref<1024x128xbf16, #tpu.memory_space<vmem>>, vector<128x128xbf16>
    %cst_18 = arith.constant dense<0.000000e+00> : vector<128x128xf32>
    %40 = tpu.matmul %38, %39, %cst_18 {dimension_numbers = #tpu.dot_dimension_numbers<[1], [0], [0], [1], [0, 0, 1, 1], [], []>} : vector<128x128xbf16>, vector<128x128xbf16>, vector<128x128xf32> -> vector<128x128xf32>
    %41 = vector.broadcast %4 : vector<1x128xf32> to vector<128x128xf32>
    %42 = arith.addf %40, %41 : vector<128x128xf32>
    %43 = arith.mulf %42, %42 : vector<128x128xf32>
    %cst_19 = arith.constant dense<0.000000e+00> : vector<128xf32>
    %44 = vector.multi_reduction <add>, %43, %cst_19 [1] : vector<128x128xf32> to vector<128xf32>
    %45 = vector.shape_cast %44 : vector<128xf32> to vector<128x1xf32>
    %cst_20 = arith.constant 1.000000e-24 : f32
    %46 = vector.broadcast %cst_20 : f32 to vector<128x1xf32>
    %47 = arith.maximumf %45, %46 : vector<128x1xf32>
    %48 = math.rsqrt %47 : vector<128x1xf32>
    %49 = vector.broadcast %48 : vector<128x1xf32> to vector<128x128xf32>
    %50 = arith.mulf %42, %49 : vector<128x128xf32>
    %51 = arith.truncf %50 : vector<128x128xf32> to vector<128x128xbf16>
    %52 = arith.mulf %14, %14 : vector<256x128xf32>
    %cst_21 = arith.constant dense<0.000000e+00> : vector<256xf32>
    %53 = vector.multi_reduction <add>, %52, %cst_21 [1] : vector<256x128xf32> to vector<256xf32>
    %54 = vector.shape_cast %53 : vector<256xf32> to vector<256x1xf32>
    %cst_22 = arith.constant 1.000000e-24 : f32
    %55 = vector.broadcast %cst_22 : f32 to vector<256x1xf32>
    %56 = arith.maximumf %54, %55 : vector<256x1xf32>
    %57 = math.rsqrt %56 : vector<256x1xf32>
    %58 = vector.broadcast %57 : vector<256x1xf32> to vector<256x128xf32>
    %59 = arith.mulf %14, %58 : vector<256x128xf32>
    %60 = arith.truncf %59 : vector<256x128xf32> to vector<256x128xbf16>
    %c768 = arith.constant 768 : index
    %c0_23 = arith.constant 0 : index
    %61 = vector.load %arg4[%c768, %c0_23] : memref<1024x128xbf16, #tpu.memory_space<vmem>>, vector<128x128xbf16>
    %cst_24 = arith.constant dense<0.000000e+00> : vector<128x128xf32>
    %62 = tpu.matmul %51, %61, %cst_24 {dimension_numbers = #tpu.dot_dimension_numbers<[1], [0], [0], [1], [0, 0, 1, 1], [], []>} : vector<128x128xbf16>, vector<128x128xbf16>, vector<128x128xf32> -> vector<128x128xf32>
    %63 = vector.broadcast %5 : vector<1x128xf32> to vector<128x128xf32>
    %64 = arith.addf %62, %63 : vector<128x128xf32>
    %c896 = arith.constant 896 : index
    %c0_25 = arith.constant 0 : index
    %65 = vector.load %arg4[%c896, %c0_25] : memref<1024x128xbf16, #tpu.memory_space<vmem>>, vector<128x128xbf16>
    %cst_26 = arith.constant dense<0.000000e+00> : vector<256x128xf32>
    %66 = tpu.matmul %60, %65, %cst_26 {dimension_numbers = #tpu.dot_dimension_numbers<[1], [0], [0], [1], [0, 0, 1, 1], [], []>} : vector<256x128xbf16>, vector<128x128xbf16>, vector<256x128xf32> -> vector<256x128xf32>
    %67 = vector.broadcast %6 : vector<1x128xf32> to vector<256x128xf32>
    %68 = arith.addf %66, %67 : vector<256x128xf32>
    %69 = tpu.concatenate %64, %68 in 0 : vector<128x128xf32>, vector<256x128xf32> -> vector<384x128xf32>
    %cst_27 = arith.constant dense<0xFF800000> : vector<384xf32>
    %70 = vector.multi_reduction <maximumf>, %69, %cst_27 [1] : vector<384x128xf32> to vector<384xf32>
    %71 = vector.shape_cast %70 : vector<384xf32> to vector<384x1xf32>
    %72 = vector.broadcast %71 : vector<384x1xf32> to vector<384x128xf32>
    %73 = arith.subf %69, %72 : vector<384x128xf32>
    %74 = math.exp %73 : vector<384x128xf32>
    %cst_28 = arith.constant dense<0.000000e+00> : vector<384xf32>
    %75 = vector.multi_reduction <add>, %74, %cst_28 [1] : vector<384x128xf32> to vector<384xf32>
    %76 = vector.shape_cast %75 : vector<384xf32> to vector<384x1xf32>
    %77 = tpu.reciprocal %76 {approx = true} : vector<384x1xf32> -> vector<384x1xf32>
    %78 = vector.broadcast %77 : vector<384x1xf32> to vector<384x128xf32>
    %79 = arith.mulf %74, %78 : vector<384x128xf32>
    %80 = vector.extract_strided_slice %79 {offsets = [0, 0], sizes = [128, 128], strides = [1, 1]} : vector<384x128xf32> to vector<128x128xf32>
    %c0_29 = arith.constant 0 : index
    %c0_30 = arith.constant 0 : index
    %c0_31 = arith.constant 0 : index
    %81 = vector.load %arg6[%c0_29, %c0_30, %c0_31] : memref<3x128x128xf32, #tpu.memory_space<vmem>>, vector<1x128x128xf32>
    %82 = vector.shape_cast %81 : vector<1x128x128xf32> to vector<128x128xf32>
    %83 = vector.shape_cast %80 : vector<128x128xf32> to vector<1x128x128xf32>
    tpu.vector_store %arg6[%c0_29, %c0_30, %c0_31], %83 {strides = array<i32>} : memref<3x128x128xf32, #tpu.memory_space<vmem>>, vector<1x128x128xf32>,
    %84 = vector.extract_strided_slice %79 {offsets = [128, 0], sizes = [128, 128], strides = [1, 1]} : vector<384x128xf32> to vector<128x128xf32>
    %c1 = arith.constant 1 : index
    %c0_32 = arith.constant 0 : index
    %c0_33 = arith.constant 0 : index
    %85 = vector.load %arg6[%c1, %c0_32, %c0_33] : memref<3x128x128xf32, #tpu.memory_space<vmem>>, vector<1x128x128xf32>
    %86 = vector.shape_cast %85 : vector<1x128x128xf32> to vector<128x128xf32>
    %87 = vector.shape_cast %84 : vector<128x128xf32> to vector<1x128x128xf32>
    tpu.vector_store %arg6[%c1, %c0_32, %c0_33], %87 {strides = array<i32>} : memref<3x128x128xf32, #tpu.memory_space<vmem>>, vector<1x128x128xf32>,
    %88 = vector.extract_strided_slice %79 {offsets = [256, 0], sizes = [128, 128], strides = [1, 1]} : vector<384x128xf32> to vector<128x128xf32>
    %c2 = arith.constant 2 : index
    %c0_34 = arith.constant 0 : index
    %c0_35 = arith.constant 0 : index
    %89 = vector.load %arg6[%c2, %c0_34, %c0_35] : memref<3x128x128xf32, #tpu.memory_space<vmem>>, vector<1x128x128xf32>
    %90 = vector.shape_cast %89 : vector<1x128x128xf32> to vector<128x128xf32>
    %91 = vector.shape_cast %88 : vector<128x128xf32> to vector<1x128x128xf32>
    tpu.vector_store %arg6[%c2, %c0_34, %c0_35], %91 {strides = array<i32>} : memref<3x128x128xf32, #tpu.memory_space<vmem>>, vector<1x128x128xf32>,
    return
  }
  func.func @transform_0(%arg0: i32) -> (i32, i32) {
    %c0_i32 = arith.constant 0 : i32
    %c0_i32_0 = arith.constant 0 : i32
    return %arg0, %c0_i32 : i32, i32
  }
  func.func @transform_1(%arg0: i32) -> (i32, i32) {
    %c0_i32 = arith.constant 0 : i32
    %c0_i32_0 = arith.constant 0 : i32
    return %arg0, %c0_i32 : i32, i32
  }
  func.func @transform_2(%arg0: i32) -> (i32, i32) {
    %c0_i32 = arith.constant 0 : i32
    %c0_i32_0 = arith.constant 0 : i32
    return %arg0, %c0_i32 : i32, i32
  }
  func.func @transform_3(%arg0: i32) -> (i32, i32) {
    %c0_i32 = arith.constant 0 : i32
    %c0_i32_0 = arith.constant 0 : i32
    %c0_i32_1 = arith.constant 0 : i32
    return %c0_i32, %c0_i32_0 : i32, i32
  }
  func.func @transform_4(%arg0: i32) -> (i32, i32) {
    %c0_i32 = arith.constant 0 : i32
    %c0_i32_0 = arith.constant 0 : i32
    %c0_i32_1 = arith.constant 0 : i32
    return %c0_i32, %c0_i32_0 : i32, i32
  }
  func.func @transform_5(%arg0: i32) -> (i32, i32, i32) {
    %c0_i32 = arith.constant 0 : i32
    %c0_i32_0 = arith.constant 0 : i32
    %c0_i32_1 = arith.constant 0 : i32
    return %c0_i32, %arg0, %c0_i32_0 : i32, i32, i32
  }
}

</mosaic_0001>

<llo_original>
// kernel: reldn_head_forward.1
$region0: #{reldn_head_forward.1}
  #allocation0 [shape = 'u32[]', space=smem, size = 0x4, offset = 0x4, fixed_abs, tag = 'smem constant byte address 0x4 - core index']
  #allocation1 [shape = 'u32[72,128]{1,0:T(1,128)}', space=vmem, size = 0x9000, scoped, tag = 'internal scratch']
  %s0 = inlined_call_operand.vmem [shape: bf16[384,192], index: 0, kind: input, shape index: {}]
  %s1 = inlined_call_operand.vmem [shape: bf16[384,64], index: 1, kind: input, shape index: {}]
  %s2 = inlined_call_operand.vmem [shape: bf16[384,64], index: 2, kind: input, shape index: {}]
  %s3 = inlined_call_operand.vmem [shape: bf16[1024,128], index: 3, kind: input, shape index: {}]
  %s4 = inlined_call_operand.vmem [shape: f32[8,128], index: 4, kind: input, shape index: {}]
  %s5 = inlined_call_operand.vmem [shape: f32[3,384,128], index: 5, kind: output, shape index: {}]
  %s6 = sld [smem:[#allocation0]]
  $region87: #{reldn_head_forward.1} parent=0
    _
  %s8 = ssub.s32 1, %s6
  %s9 = scalar_select 0, %s8, %s6
  $region1: #{reldn_head_forward.1} parent=0
    #allocation2 [shape = 'u8[393216]{0}', space=vmem, size = 0x60000, scoped, tag = 'output window, operand 0']
    loop: start=0, step=1, limit=5
    $region2: #{reldn_head_forward.1} parent=1 // loop_pre_header
      _
    $region3: #{reldn_head_forward.1} parent=1 // loop_header
      %s11 = sphi 0, %s15
      %p12 = scmp.ge.s32.totalorder %s11, 5
      %s21 = sphi 0, %s23
      %s24 = sphi 0, %s21
      %s25 = sphi 0, %s24
      %s41 = sphi 0, %s25
      %s47 = sphi 0, %s49
      %s50 = sphi 0, %s47
      %s51 = sphi 0, %s50
      %s67 = sphi 0, %s51
      %s73 = sphi 0, %s75
      %s76 = sphi 0, %s73
      %s77 = sphi 0, %s76
      %s93 = sphi 0, %s77
      %s97 = sphi 0, %s97
      %s99 = sphi 0, %s97
      %s100 = sphi 0, %s99
      %s114 = sphi 0, %s100
      %s118 = sphi 0, %s118
      %s120 = sphi 0, %s118
      %s121 = sphi 0, %s120
      %s135 = sphi 0, %s121
      %s141 = sphi 0, %s143
      %s144 = sphi 0, %s141
      %s145 = sphi 0, %s144
      %s161 = sphi 0, %s145
    $region4: #{reldn_head_forward.1} parent=1 // loop_header_branch
      %14 = sbr.rel (%p12) target = $region8
    $region5: #{reldn_head_forward.1} parent=1 // loop_body
      %s16 = ssub.s32 %s11, 1
      %s17 = ssub.s32 %s11, 2
      %s18 = sadd.s32 %s11, 1
      %s19 = ssub.s32 %s11, %s18
      %p20 = scmp.eq.s32.totalorder %s19, 0
      %s22 = sadd.s32 %s21, 1
      %s23 = scalar_select %p20, %s21, %s22
      %p26 = pneg %p20
      %p27 = scmp.eq.s32.totalorder %s11, 2
      %p28 = por %p26, %p27
      %p29 = scmp.ne.s32.totalorder %s21, %s24
      %p30 = scmp.eq.s32.totalorder %s11, 0
      %p31 = por %p29, %p30
      %p32 = scmp.ne.s32.totalorder %s21, %s24
      %p33 = scmp.eq.s32.totalorder %s16, 2
      %p34 = por %p32, %p33
      %p35 = scmp.ne.s32.totalorder %s24, %s25
      %p36 = scmp.eq.s32.totalorder %s16, 0
      %p37 = por %p35, %p36
      %p38 = scmp.ne.s32.totalorder %s24, %s25
      %p39 = scmp.eq.s32.totalorder %s17, 2
      %p40 = por %p38, %p39
      %p42 = scmp.ne.s32.totalorder %s25, %s41
      %p43 = scmp.eq.s32.totalorder %s17, 0
      %p44 = por %p42, %p43
      %s45 = ssub.s32 %s11, %s18
      %p46 = scmp.eq.s32.totalorder %s45, 0
      %s48 = sadd.s32 %s47, 1
      %s49 = scalar_select %p46, %s47, %s48
      %p52 = pneg %p46
      %p53 = scmp.eq.s32.totalorder %s11, 2
      %p54 = por %p52, %p53
      %p55 = scmp.ne.s32.totalorder %s47, %s50
      %p56 = scmp.eq.s32.totalorder %s11, 0
      %p57 = por %p55, %p56
      %p58 = scmp.ne.s32.totalorder %s47, %s50
      %p59 = scmp.eq.s32.totalorder %s16, 2
      %p60 = por %p58, %p59
      %p61 = scmp.ne.s32.totalorder %s50, %s51
      %p62 = scmp.eq.s32.totalorder %s16, 0
      %p63 = por %p61, %p62
      %p64 = scmp.ne.s32.totalorder %s50, %s51
      %p65 = scmp.eq.s32.totalorder %s17, 2
      %p66 = por %p64, %p65
      %p68 = scmp.ne.s32.totalorder %s51, %s67
      %p69 = scmp.eq.s32.totalorder %s17, 0
      %p70 = por %p68, %p69
      %s71 = ssub.s32 %s11, %s18
      %p72 = scmp.eq.s32.totalorder %s71, 0
      %s74 = sadd.s32 %s73, 1
      %s75 = scalar_select %p72, %s73, %s74
      %p78 = pneg %p72
      %p79 = scmp.eq.s32.totalorder %s11, 2
      %p80 = por %p78, %p79
      %p81 = scmp.ne.s32.totalorder %s73, %s76
      %p82 = scmp.eq.s32.totalorder %s11, 0
      %p83 = por %p81, %p82
      %p84 = scmp.ne.s32.totalorder %s73, %s76
      %p85 = scmp.eq.s32.totalorder %s16, 2
      %p86 = por %p84, %p85
      %p87 = scmp.ne.s32.totalorder %s76, %s77
      %p88 = scmp.eq.s32.totalorder %s16, 0
      %p89 = por %p87, %p88
      %p90 = scmp.ne.s32.totalorder %s76, %s77
      %p91 = scmp.eq.s32.totalorder %s17, 2
      %p92 = por %p90, %p91
      %p94 = scmp.ne.s32.totalorder %s77, %s93
      %p95 = scmp.eq.s32.totalorder %s17, 0
      %p96 = por %p94, %p95
      %s98 = sadd.s32 %s97, 1
      %p101 = scmp.eq.s32.totalorder %s11, 2
      %p102 = scmp.ne.s32.totalorder %s97, %s99
      %p103 = scmp.eq.s32.totalorder %s11, 0
      %p104 = por %p102, %p103
      %p105 = scmp.ne.s32.totalorder %s97, %s99
      %p106 = scmp.eq.s32.totalorder %s16, 2
      %p107 = por %p105, %p106
      %p108 = scmp.ne.s32.totalorder %s99, %s100
      %p109 = scmp.eq.s32.totalorder %s16, 0
      %p110 = por %p108, %p109
      %p111 = scmp.ne.s32.totalorder %s99, %s100
      %p112 = scmp.eq.s32.totalorder %s17, 2
      %p113 = por %p111, %p112
      %p115 = scmp.ne.s32.totalorder %s100, %s114
      %p116 = scmp.eq.s32.totalorder %s17, 0
      %p117 = por %p115, %p116
      %s119 = sadd.s32 %s118, 1
      %p122 = scmp.eq.s32.totalorder %s11, 2
      %p123 = scmp.ne.s32.totalorder %s118, %s120
      %p124 = scmp.eq.s32.totalorder %s11, 0
      %p125 = por %p123, %p124
      %p126 = scmp.ne.s32.totalorder %s118, %s120
      %p127 = scmp.eq.s32.totalorder %s16, 2
      %p128 = por %p126, %p127
      %p129 = scmp.ne.s32.totalorder %s120, %s121
      %p130 = scmp.eq.s32.totalorder %s16, 0
      %p131 = por %p129, %p130
      %p132 = scmp.ne.s32.totalorder %s120, %s121
      %p133 = scmp.eq.s32.totalorder %s17, 2
      %p134 = por %p132, %p133
      %p136 = scmp.ne.s32.totalorder %s121, %s135
      %p137 = scmp.eq.s32.totalorder %s17, 0
      %p138 = por %p136, %p137
      %s139 = ssub.s32 %s11, %s18
      %p140 = scmp.eq.s32.totalorder %s139, 0
      %s142 = sadd.s32 %s141, 1
      %s143 = scalar_select %p140, %s141, %s142
      %p146 = pneg %p140
      %p147 = scmp.eq.s32.totalorder %s11, 2
      %p148 = por %p146, %p147
      %p149 = scmp.ne.s32.totalorder %s141, %s144
      %p150 = scmp.eq.s32.totalorder %s11, 0
      %p151 = por %p149, %p150
      %p152 = scmp.ne.s32.totalorder %s141, %s144
      %p153 = scmp.eq.s32.totalorder %s16, 2
      %p154 = por %p152, %p153
      %p155 = scmp.ne.s32.totalorder %s144, %s145
      %p156 = scmp.eq.s32.totalorder %s16, 0
      %p157 = por %p155, %p156
      %p158 = scmp.ne.s32.totalorder %s144, %s145
      %p159 = scmp.eq.s32.totalorder %s17, 2
      %p160 = por %p158, %p159
      %p162 = scmp.ne.s32.totalorder %s145, %s161
      %p163 = scmp.eq.s32.totalorder %s17, 0
      %p164 = por %p162, %p163
      %p165 = scmp.le.s32.totalorder 1, %s11
      %p166 = scmp.lt.s32.totalorder %s11, 4
      %p167 = pnand %p165, %p166
      %p168 = pneg %p167
      // Predicated region
      $region9: #{reldn_head_forward.1} parent=5 // pred_check
        _
      $region10: #{reldn_head_forward.1} parent=5 // pred_check_branch
        %170 = sbr.rel (%p167) target = $region12
      $region11: #{reldn_head_forward.1} parent=5 // pred_region
        %s171 = ssub.s32 %s11, 1
        // Predicated region
        $region13: #{reldn_head_forward.1} parent=11 // pred_check
          %p172 = pneg %p110
        $region14: #{reldn_head_forward.1} parent=11 // pred_check_branch
          %174 = sbr.rel (%p172) target = $region16
        $region15: #{reldn_head_forward.1} parent=11 // pred_region
          _
        $region16: #{reldn_head_forward.1} parent=11 // pred_fallthru
          _
        // Predicated region
        $region17: #{reldn_head_forward.1} parent=11 // pred_check
          %p175 = pneg %p131
        $region18: #{reldn_head_forward.1} parent=11 // pred_check_branch
          %177 = sbr.rel (%p175) target = $region20
        $region19: #{reldn_head_forward.1} parent=11 // pred_region
          _
        $region20: #{reldn_head_forward.1} parent=11 // pred_fallthru
          _
      $region12: #{reldn_head_forward.1} parent=5 // pred_fallthru
        _
      %p178 = scmp.lt.s32.totalorder %s11, 3
      // Predicated region
      $region21: #{reldn_head_forward.1} parent=5 // pred_check
        %p179 = pneg %p178
      $region22: #{reldn_head_forward.1} parent=5 // pred_check_branch
        %181 = sbr.rel (%p179) target = $region24
      $region23: #{reldn_head_forward.1} parent=5 // pred_region
        // Predicated region
        $region25: #{reldn_head_forward.1} parent=23 // pred_check
          %p182 = pneg %p31
        $region26: #{reldn_head_forward.1} parent=23 // pred_check_branch
          %184 = sbr.rel (%p182) target = $region28
        $region27: #{reldn_head_forward.1} parent=23 // pred_region
          %s185 = smul.u32 16, %s11
          %p186 = scmp.lt.s32.totalorder %s185, 47
          %s187 = scalar_select %p186, %s185, 47
          %s188 = smul.addr %s187, 2
          %s189 = smul.addr %s188, 4
          %s190 = scalar_lea.vmem %s0, %s189
          %s191 = smul.u32 16, %s11
        $region28: #{reldn_head_forward.1} parent=23 // pred_fallthru
          _
        // Predicated region
        $region29: #{reldn_head_forward.1} parent=23 // pred_check
          %p192 = pneg %p57
        $region30: #{reldn_head_forward.1} parent=23 // pred_check_branch
          %194 = sbr.rel (%p192) target = $region32
        $region31: #{reldn_head_forward.1} parent=23 // pred_region
          %s195 = smul.u32 16, %s11
          %p196 = scmp.lt.s32.totalorder %s195, 47
          %s197 = scalar_select %p196, %s195, 47
          %s198 = smul.addr %s197, 4
          %s199 = scalar_lea.vmem %s1, %s198
          %s200 = smul.u32 16, %s11
        $region32: #{reldn_head_forward.1} parent=23 // pred_fallthru
          _
        // Predicated region
        $region33: #{reldn_head_forward.1} parent=23 // pred_check
          %p201 = pneg %p83
        $region34: #{reldn_head_forward.1} parent=23 // pred_check_branch
          %203 = sbr.rel (%p201) target = $region36
        $region35: #{reldn_head_forward.1} parent=23 // pred_region
          %s204 = smul.u32 16, %s11
          %p205 = scmp.lt.s32.totalorder %s204, 47
          %s206 = scalar_select %p205, %s204, 47
          %s207 = smul.addr %s206, 4
          %s208 = scalar_lea.vmem %s2, %s207
          %s209 = smul.u32 16, %s11
        $region36: #{reldn_head_forward.1} parent=23 // pred_fallthru
          _
      $region24: #{reldn_head_forward.1} parent=5 // pred_fallthru
        _
      %p210 = scmp.le.s32.totalorder 1, %s11
      %p211 = scmp.lt.s32.totalorder %s11, 4
      %p212 = pnand %p210, %p211
      %p213 = pneg %p212
      // Predicated region
      $region37: #{reldn_head_forward.1} parent=5 // pred_check
        _
      $region38: #{reldn_head_forward.1} parent=5 // pred_check_branch
        %215 = sbr.rel (%p212) target = $region40
      $region39: #{reldn_head_forward.1} parent=5 // pred_region
        %s216 = ssub.s32 %s11, 1
        %s217 = smul.u32 16, %s16
        %p218 = scmp.lt.s32.totalorder %s217, 47
        %s219 = scalar_select %p218, %s217, 47
        %s220 = smul.addr %s219, 2
        %s221 = smul.addr %s220, 4
        %s222 = scalar_lea.vmem %s0, %s221
        %p223 = pneg %p37
        %p224 = pneg %p34
        %s225 = smul.u32 16, %s16
        %p226 = scmp.lt.s32.totalorder %s225, 47
        %s227 = scalar_select %p226, %s225, 47
        %s228 = smul.addr %s227, 4
        %s229 = scalar_lea.vmem %s1, %s228
        %p230 = pneg %p63
        %p231 = pneg %p60
        %s232 = smul.u32 16, %s16
        %p233 = scmp.lt.s32.totalorder %s232, 47
        %s234 = scalar_select %p233, %s232, 47
        %s235 = smul.addr %s234, 4
        %s236 = scalar_lea.vmem %s2, %s235
        %p237 = pneg %p89
        %p238 = pneg %p86
        %p239 = pneg %p110
        %p240 = pneg %p107
        %p241 = pneg %p131
        %p242 = pneg %p128
        %p243 = pneg %p157
        %p244 = pneg %p154
        %s245 = sand.u32 %s144, 1
        %s246 = sand.u32 %s144, 1
        %s247 = smul.addr %s246, 384
        %s248 = scalar_lea.vmem [#allocation2], %s247
        %s249 = smul.u32 16, %s16
        %p250 = scmp.lt.s32.totalorder %s249, 47
        %s251 = scalar_select %p250, %s249, 47
        %s252 = smul.addr %s251, 2
        %s253 = smul.addr %s252, 4
        %s254 = scalar_lea.vmem %s0, %s253
        %s255 = smul.u32 16, %s16
        %s256 = smul.u32 16, %s16
        %p257 = scmp.lt.s32.totalorder %s256, 47
        %s258 = scalar_select %p257, %s256, 47
        %s259 = smul.addr %s258, 4
        %s260 = scalar_lea.vmem %s1, %s259
        %s261 = smul.u32 16, %s16
        %s262 = smul.u32 16, %s16
        %p263 = scmp.lt.s32.totalorder %s262, 47
        %s264 = scalar_select %p263, %s262, 47
        %s265 = smul.addr %s264, 4
        %s266 = scalar_lea.vmem %s2, %s265
        %s267 = smul.u32 16, %s16
        %s268 = smul.u32 16, %s16
        %v270 = vld [vmem:[%s4] sm:$0xff]
        %v271 = vld [vmem:[%s254] sm:$0xff]
        %v272 = vld [vmem:[%s254 + $0x8] sm:$0xff]
        %v273 = vld [vmem:[%s254 + $0x10] sm:$0xff]
        %v274 = vld [vmem:[%s254 + $0x18] sm:$0xff]
        %v275 = vld [vmem:[%s254 + $0x20] sm:$0xff]
        %v276 = vld [vmem:[%s254 + $0x28] sm:$0xff]
        %v277 = vld [vmem:[%s254 + $0x30] sm:$0xff]
        %v278 = vld [vmem:[%s254 + $0x38] sm:$0xff]
        %v279 = vld [vmem:[%s254 + $0x40] sm:$0xff]
        %v280 = vld [vmem:[%s254 + $0x48] sm:$0xff]
        %v281 = vld [vmem:[%s254 + $0x50] sm:$0xff]
        %v282 = vld [vmem:[%s254 + $0x58] sm:$0xff]
        %v283 = vld [vmem:[%s254 + $0x60] sm:$0xff]
        %v284 = vld [vmem:[%s254 + $0x68] sm:$0xff]
        %v285 = vld [vmem:[%s254 + $0x70] sm:$0xff]
        %v286 = vld [vmem:[%s254 + $0x78] sm:$0xff]
        %v287 = vld [vmem:[%s260] sm:$0xf]
        %v288 = vld [vmem:[%s260 + $0x4] sm:$0xf]
        %v289 = vld [vmem:[%s260 + $0x8] sm:$0xf]
        %v290 = vld [vmem:[%s260 + $0xc] sm:$0xf]
        %v291 = vld [vmem:[%s260 + $0x10] sm:$0xf]
        %v292 = vld [vmem:[%s260 + $0x14] sm:$0xf]
        %v293 = vld [vmem:[%s260 + $0x18] sm:$0xf]
        %v294 = vld [vmem:[%s260 + $0x1c] sm:$0xf]
        %v295 = vld [vmem:[%s260 + $0x20] sm:$0xf]
        %v296 = vld [vmem:[%s260 + $0x24] sm:$0xf]
        %v297 = vld [vmem:[%s260 + $0x28] sm:$0xf]
        %v298 = vld [vmem:[%s260 + $0x2c] sm:$0xf]
        %v299 = vld [vmem:[%s260 + $0x30] sm:$0xf]
        %v300 = vld [vmem:[%s260 + $0x34] sm:$0xf]
        %v301 = vld [vmem:[%s260 + $0x38] sm:$0xf]
        %v302 = vld [vmem:[%s260 + $0x3c] sm:$0xf]
        %v303 = vld [vmem:[%s266] sm:$0xf]
        %v304 = vld [vmem:[%s266 + $0x4] sm:$0xf]
        %v305 = vld [vmem:[%s266 + $0x8] sm:$0xf]
        %v306 = vld [vmem:[%s266 + $0xc] sm:$0xf]
        %v307 = vld [vmem:[%s266 + $0x10] sm:$0xf]
        %v308 = vld [vmem:[%s266 + $0x14] sm:$0xf]
        %v309 = vld [vmem:[%s266 + $0x18] sm:$0xf]
        %v310 = vld [vmem:[%s266 + $0x1c] sm:$0xf]
        %v311 = vld [vmem:[%s266 + $0x20] sm:$0xf]
        %v312 = vld [vmem:[%s266 + $0x24] sm:$0xf]
        %v313 = vld [vmem:[%s266 + $0x28] sm:$0xf]
        %v314 = vld [vmem:[%s266 + $0x2c] sm:$0xf]
        %v315 = vld [vmem:[%s266 + $0x30] sm:$0xf]
        %v316 = vld [vmem:[%s266 + $0x34] sm:$0xf]
        %v317 = vld [vmem:[%s266 + $0x38] sm:$0xf]
        %v318 = vld [vmem:[%s266 + $0x3c] sm:$0xf]
        %v335 = vunpack.c.l.b16 %v287
        %v336 = vunpack.c.l.b16 %v288
        %v337 = vunpack.c.l.b16 %v289
        %v338 = vunpack.c.l.b16 %v290
        %v339 = vunpack.c.l.b16 %v291
        %v340 = vunpack.c.l.b16 %v292
        %v341 = vunpack.c.l.b16 %v293
        %v342 = vunpack.c.l.b16 %v294
        %v343 = vunpack.c.l.b16 %v295
        %v344 = vunpack.c.l.b16 %v296
        %v345 = vunpack.c.l.b16 %v297
        %v346 = vunpack.c.l.b16 %v298
        %v347 = vunpack.c.l.b16 %v299
        %v348 = vunpack.c.l.b16 %v300
        %v349 = vunpack.c.l.b16 %v301
        %v350 = vunpack.c.l.b16 %v302
        %v351 = vpack.c.b16 %v336, %v335
        %v352 = vpack.c.b16 %v338, %v337
        %v353 = vpack.c.b16 %v340, %v339
        %v354 = vpack.c.b16 %v342, %v341
        %v355 = vpack.c.b16 %v344, %v343
        %v356 = vpack.c.b16 %v346, %v345
        %v357 = vpack.c.b16 %v348, %v347
        %v358 = vpack.c.b16 %v350, %v349
        %v375 = vunpack.c.l.b16 %v303
        %v376 = vunpack.c.l.b16 %v304
        %v377 = vunpack.c.l.b16 %v305
        %v378 = vunpack.c.l.b16 %v306
        %v379 = vunpack.c.l.b16 %v307
        %v380 = vunpack.c.l.b16 %v308
        %v381 = vunpack.c.l.b16 %v309
        %v382 = vunpack.c.l.b16 %v310
        %v383 = vunpack.c.l.b16 %v311
        %v384 = vunpack.c.l.b16 %v312
        %v385 = vunpack.c.l.b16 %v313
        %v386 = vunpack.c.l.b16 %v314
        %v387 = vunpack.c.l.b16 %v315
        %v388 = vunpack.c.l.b16 %v316
        %v389 = vunpack.c.l.b16 %v317
        %v390 = vunpack.c.l.b16 %v318
        %v391 = vpack.c.b16 %v376, %v375
        %v392 = vpack.c.b16 %v378, %v377
        %v393 = vpack.c.b16 %v380, %v379
        %v394 = vpack.c.b16 %v382, %v381
        %v395 = vpack.c.b16 %v384, %v383
        %v396 = vpack.c.b16 %v386, %v385
        %v397 = vpack.c.b16 %v388, %v387
        %v398 = vpack.c.b16 %v390, %v389
        %v399 = vld [vmem:[%s3 + $0x60] sm:$0xf]
        %v400 = vld [vmem:[%s3 + $0x64] sm:$0xf]
        %v401 = vld [vmem:[%s3 + $0x68] sm:$0xf]
        %v402 = vld [vmem:[%s3 + $0x6c] sm:$0xf]
        %v403 = vld [vmem:[%s3 + $0x70] sm:$0xf]
        %v404 = vld [vmem:[%s3 + $0x74] sm:$0xf]
        %v405 = vld [vmem:[%s3 + $0x78] sm:$0xf]
        %v406 = vld [vmem:[%s3 + $0x7c] sm:$0xf]
        %v407 = vperm.slane %v270, 1
        %v416 = vunpack.c.l.b16 %v399
        %v417 = vunpack.c.l.b16 %v400
        %v418 = vunpack.c.l.b16 %v401
        %v419 = vunpack.c.l.b16 %v402
        %v420 = vunpack.c.l.b16 %v403
        %v421 = vunpack.c.l.b16 %v404
        %v422 = vunpack.c.l.b16 %v405
        %v423 = vunpack.c.l.b16 %v406
        %v424 = vpack.c.b16 %v417, %v416
        %v425 = vpack.c.b16 %v419, %v418
        %v426 = vpack.c.b16 %v421, %v420
        %v427 = vpack.c.b16 %v423, %v422
        %vm432 = vcmask 523264
        %v434 = vsel %vm432, %v351, 0
        %v437 = vsel %vm432, %v352, 0
        %v440 = vsel %vm432, %v353, 0
        %v443 = vsel %vm432, %v354, 0
        %v446 = vsel %vm432, %v355, 0
        %v449 = vsel %vm432, %v356, 0
        %v452 = vsel %vm432, %v357, 0
        %v455 = vsel %vm432, %v358, 0
        %v458 = vsel %vm432, %v391, 0
        %v461 = vsel %vm432, %v392, 0
        %v464 = vsel %vm432, %v393, 0
        %v467 = vsel %vm432, %v394, 0
        %v470 = vsel %vm432, %v395, 0
        %v473 = vsel %vm432, %v396, 0
        %v476 = vsel %vm432, %v397, 0
        %v479 = vsel %vm432, %v398, 0
        %481 = vmatpush.bf16.msra.mxu0 0
        %482 = vmatpush.bf16.msra.mxu0 0
        %483 = vmatpush.bf16.msra.mxu0 0
        %484 = vmatpush.bf16.msra.mxu0 0
        %485 = vmatpush.bf16.msra.mxu0 %v427
        %486 = vmatpush.bf16.msra.mxu0 %v426
        %487 = vmatpush.bf16.msra.mxu0 %v425
        %488 = vmatpush.bf16.msra.mxu0 %v424
        %489 = vmatmul.bf16.gmra.mxu0 %v434
        %v490 = vpop.f32.mrf.mxu0
        %v491 = vadd.f32 %v407, %v490
        %v492 = vpop.f32.mrf.mxu0
        %v493 = vadd.f32 %v407, %v492
        %494 = vmatmul.bf16.gmra.mxu0 %v437
        %v495 = vpop.f32.mrf.mxu0
        %v496 = vadd.f32 %v407, %v495
        %v497 = vpop.f32.mrf.mxu0
        %v498 = vadd.f32 %v407, %v497
        %499 = vmatmul.bf16.gmra.mxu0 %v440
        %v500 = vpop.f32.mrf.mxu0
        %v501 = vadd.f32 %v407, %v500
        %v502 = vpop.f32.mrf.mxu0
        %v503 = vadd.f32 %v407, %v502
        %504 = vmatmul.bf16.gmra.mxu0 %v443
        %v505 = vpop.f32.mrf.mxu0
        %v506 = vadd.f32 %v407, %v505
        %v507 = vpop.f32.mrf.mxu0
        %v508 = vadd.f32 %v407, %v507
        %509 = vmatmul.bf16.gmra.mxu0 %v446
        %v510 = vpop.f32.mrf.mxu0
        %v511 = vadd.f32 %v407, %v510
        %v512 = vpop.f32.mrf.mxu0
        %v513 = vadd.f32 %v407, %v512
        %514 = vmatmul.bf16.gmra.mxu0 %v449
        %v515 = vpop.f32.mrf.mxu0
        %v516 = vadd.f32 %v407, %v515
        %v517 = vpop.f32.mrf.mxu0
        %v518 = vadd.f32 %v407, %v517
        %519 = vmatmul.bf16.gmra.mxu0 %v452
        %v520 = vpop.f32.mrf.mxu0
        %v521 = vadd.f32 %v407, %v520
        %v522 = vpop.f32.mrf.mxu0
        %v523 = vadd.f32 %v407, %v522
        %524 = vmatmul.bf16.gmra.mxu0 %v455
        %v525 = vpop.f32.mrf.mxu0
        %v526 = vadd.f32 %v407, %v525
        %v527 = vpop.f32.mrf.mxu0
        %v528 = vadd.f32 %v407, %v527
        %529 = vmatmul.bf16.gmra.mxu0 %v458
        %v530 = vpop.f32.mrf.mxu0
        %v531 = vadd.f32 %v407, %v530
        %v532 = vpop.f32.mrf.mxu0
        %v533 = vadd.f32 %v407, %v532
        %534 = vmatmul.bf16.gmra.mxu0 %v461
        %v535 = vpop.f32.mrf.mxu0
        %v536 = vadd.f32 %v407, %v535
        %v537 = vpop.f32.mrf.mxu0
        %v538 = vadd.f32 %v407, %v537
        %539 = vmatmul.bf16.gmra.mxu0 %v464
        %v540 = vpop.f32.mrf.mxu0
        %v541 = vadd.f32 %v407, %v540
        %v542 = vpop.f32.mrf.mxu0
        %v543 = vadd.f32 %v407, %v542
        %544 = vmatmul.bf16.gmra.mxu0 %v467
        %v545 = vpop.f32.mrf.mxu0
        %v546 = vadd.f32 %v407, %v545
        %v547 = vpop.f32.mrf.mxu0
        %v548 = vadd.f32 %v407, %v547
        %549 = vmatmul.bf16.gmra.mxu0 %v470
        %v550 = vpop.f32.mrf.mxu0
        %v551 = vadd.f32 %v407, %v550
        %v552 = vpop.f32.mrf.mxu0
        %v553 = vadd.f32 %v407, %v552
        %554 = vmatmul.bf16.gmra.mxu0 %v473
        %v555 = vpop.f32.mrf.mxu0
        %v556 = vadd.f32 %v407, %v555
        %v557 = vpop.f32.mrf.mxu0
        %v558 = vadd.f32 %v407, %v557
        %559 = vmatmul.bf16.gmra.mxu0 %v476
        %v560 = vpop.f32.mrf.mxu0
        %v561 = vadd.f32 %v407, %v560
        %v562 = vpop.f32.mrf.mxu0
        %v563 = vadd.f32 %v407, %v562
        %564 = vmatmul.bf16.gmra.mxu0 %v479
        %v565 = vpop.f32.mrf.mxu0
        %v566 = vadd.f32 %v407, %v565
        %v567 = vpop.f32.mrf.mxu0
        %v568 = vadd.f32 %v407, %v567
        %569 = vdwg.mxu0
        %v570 = vpack.c.bf16 %v491, %v491
        %v571 = vpack.c.bf16 %v493, %v493
        %v572 = vpack.c.bf16 %v496, %v496
        %v573 = vpack.c.bf16 %v498, %v498
        %v574 = vpack.c.bf16 %v501, %v501
        %v575 = vpack.c.bf16 %v503, %v503
        %v576 = vpack.c.bf16 %v506, %v506
        %v577 = vpack.c.bf16 %v508, %v508
        %v578 = vpack.c.bf16 %v511, %v511
        %v579 = vpack.c.bf16 %v513, %v513
        %v580 = vpack.c.bf16 %v516, %v516
        %v581 = vpack.c.bf16 %v518, %v518
        %v582 = vpack.c.bf16 %v521, %v521
        %v583 = vpack.c.bf16 %v523, %v523
        %v584 = vpack.c.bf16 %v526, %v526
        %v585 = vpack.c.bf16 %v528, %v528
        %v586 = vpack.c.bf16 %v531, %v531
        %v587 = vpack.c.bf16 %v533, %v533
        %v588 = vpack.c.bf16 %v536, %v536
        %v589 = vpack.c.bf16 %v538, %v538
        %v590 = vpack.c.bf16 %v541, %v541
        %v591 = vpack.c.bf16 %v543, %v543
        %v592 = vpack.c.bf16 %v546, %v546
        %v593 = vpack.c.bf16 %v548, %v548
        %v594 = vpack.c.bf16 %v551, %v551
        %v595 = vpack.c.bf16 %v553, %v553
        %v596 = vpack.c.bf16 %v556, %v556
        %v597 = vpack.c.bf16 %v558, %v558
        %v598 = vpack.c.bf16 %v561, %v561
        %v599 = vpack.c.bf16 %v563, %v563
        %v600 = vpack.c.bf16 %v566, %v566
        %v601 = vpack.c.bf16 %v568, %v568
        %v602 = vld [vmem:[%s3] sm:$0xf]
        %v603 = vld [vmem:[%s3 + $0x4] sm:$0xf]
        %v604 = vld [vmem:[%s3 + $0x8] sm:$0xf]
        %v605 = vld [vmem:[%s3 + $0xc] sm:$0xf]
        %v606 = vld [vmem:[%s3 + $0x10] sm:$0xf]
        %v607 = vld [vmem:[%s3 + $0x14] sm:$0xf]
        %v608 = vld [vmem:[%s3 + $0x18] sm:$0xf]
        %v609 = vld [vmem:[%s3 + $0x1c] sm:$0xf]
        %v610 = vld [vmem:[%s3 + $0x20] sm:$0xf]
        %v611 = vld [vmem:[%s3 + $0x24] sm:$0xf]
        %v612 = vld [vmem:[%s3 + $0x28] sm:$0xf]
        %v613 = vld [vmem:[%s3 + $0x2c] sm:$0xf]
        %v614 = vld [vmem:[%s3 + $0x30] sm:$0xf]
        %v615 = vld [vmem:[%s3 + $0x34] sm:$0xf]
        %v616 = vld [vmem:[%s3 + $0x38] sm:$0xf]
        %v617 = vld [vmem:[%s3 + $0x3c] sm:$0xf]
        %v618 = vld [vmem:[%s3 + $0x40] sm:$0xf]
        %v619 = vld [vmem:[%s3 + $0x44] sm:$0xf]
        %v620 = vld [vmem:[%s3 + $0x48] sm:$0xf]
        %v621 = vld [vmem:[%s3 + $0x4c] sm:$0xf]
        %v622 = vld [vmem:[%s3 + $0x50] sm:$0xf]
        %v623 = vld [vmem:[%s3 + $0x54] sm:$0xf]
        %v624 = vld [vmem:[%s3 + $0x58] sm:$0xf]
        %v625 = vld [vmem:[%s3 + $0x5c] sm:$0xf]
        %v626 = vperm.slane %v270, 0
        %v643 = vunpack.c.l.b16 %v271
        %v644 = vunpack.c.h.b16 %v271
        %v645 = vunpack.c.l.b16 %v272
        %v646 = vunpack.c.h.b16 %v272
        %v647 = vunpack.c.l.b16 %v273
        %v648 = vunpack.c.h.b16 %v273
        %v649 = vunpack.c.l.b16 %v274
        %v650 = vunpack.c.h.b16 %v274
        %v651 = vunpack.c.l.b16 %v275
        %v652 = vunpack.c.h.b16 %v275
        %v653 = vunpack.c.l.b16 %v276
        %v654 = vunpack.c.h.b16 %v276
        %v655 = vunpack.c.l.b16 %v277
        %v656 = vunpack.c.h.b16 %v277
        %v657 = vunpack.c.l.b16 %v278
        %v658 = vunpack.c.h.b16 %v278
        %v659 = vunpack.c.l.b16 %v279
        %v660 = vunpack.c.h.b16 %v279
        %v661 = vunpack.c.l.b16 %v280
        %v662 = vunpack.c.h.b16 %v280
        %v663 = vunpack.c.l.b16 %v281
        %v664 = vunpack.c.h.b16 %v281
        %v665 = vunpack.c.l.b16 %v282
        %v666 = vunpack.c.h.b16 %v282
        %v667 = vunpack.c.l.b16 %v283
        %v668 = vunpack.c.h.b16 %v283
        %v669 = vunpack.c.l.b16 %v284
        %v670 = vunpack.c.h.b16 %v284
        %v671 = vunpack.c.l.b16 %v285
        %v672 = vunpack.c.h.b16 %v285
        %v673 = vunpack.c.l.b16 %v286
        %v674 = vunpack.c.h.b16 %v286
        %v675 = vpack.c.b16 %v645, %v643
        %v676 = vpack.c.b16 %v646, %v644
        %v677 = vpack.c.b16 %v649, %v647
        %v678 = vpack.c.b16 %v650, %v648
        %v679 = vpack.c.b16 %v653, %v651
        %v680 = vpack.c.b16 %v654, %v652
        %v681 = vpack.c.b16 %v657, %v655
        %v682 = vpack.c.b16 %v658, %v656
        %v683 = vpack.c.b16 %v661, %v659
        %v684 = vpack.c.b16 %v662, %v660
        %v685 = vpack.c.b16 %v665, %v663
        %v686 = vpack.c.b16 %v666, %v664
        %v687 = vpack.c.b16 %v669, %v667
        %v688 = vpack.c.b16 %v670, %v668
        %v689 = vpack.c.b16 %v673, %v671
        %v690 = vpack.c.b16 %v674, %v672
        %v723 = vunpack.c.l.b16 %v602
        %v724 = vunpack.c.l.b16 %v603
        %v725 = vunpack.c.l.b16 %v604
        %v726 = vunpack.c.l.b16 %v605
        %v727 = vunpack.c.l.b16 %v606
        %v728 = vunpack.c.l.b16 %v607
        %v729 = vunpack.c.l.b16 %v608
        %v730 = vunpack.c.l.b16 %v609
        %v731 = vunpack.c.l.b16 %v610
        %v732 = vunpack.c.l.b16 %v611
        %v733 = vunpack.c.l.b16 %v612
        %v734 = vunpack.c.l.b16 %v613
        %v735 = vunpack.c.l.b16 %v614
        %v736 = vunpack.c.l.b16 %v615
        %v737 = vunpack.c.l.b16 %v616
        %v738 = vunpack.c.l.b16 %v617
        %v739 = vunpack.c.l.b16 %v618
        %v740 = vunpack.c.l.b16 %v619
        %v741 = vunpack.c.l.b16 %v620
        %v742 = vunpack.c.l.b16 %v621
        %v743 = vunpack.c.l.b16 %v622
        %v744 = vunpack.c.l.b16 %v623
        %v745 = vunpack.c.l.b16 %v624
        %v746 = vunpack.c.l.b16 %v625
        %v747 = vpack.c.b16 %v724, %v723
        %v748 = vpack.c.b16 %v726, %v725
        %v749 = vpack.c.b16 %v728, %v727
        %v750 = vpack.c.b16 %v730, %v729
        %v751 = vpack.c.b16 %v732, %v731
        %v752 = vpack.c.b16 %v734, %v733
        %v753 = vpack.c.b16 %v736, %v735
        %v754 = vpack.c.b16 %v738, %v737
        %v755 = vpack.c.b16 %v740, %v739
        %v756 = vpack.c.b16 %v742, %v741
        %v757 = vpack.c.b16 %v744, %v743
        %v758 = vpack.c.b16 %v746, %v745
        %v772 = vsel %vm432, %v676, 0
        %v775 = vsel %vm432, %v678, 0
        %v778 = vsel %vm432, %v680, 0
        %v781 = vsel %vm432, %v682, 0
        %v784 = vsel %vm432, %v684, 0
        %v787 = vsel %vm432, %v686, 0
        %v790 = vsel %vm432, %v688, 0
        %v793 = vsel %vm432, %v690, 0
        %795 = vmatpush.bf16.msra.mxu0 %v754
        %796 = vmatpush.bf16.msra.mxu0 %v753
        %797 = vmatpush.bf16.msra.mxu0 %v752
        %798 = vmatpush.bf16.msra.mxu0 %v751
        %799 = vmatpush.bf16.msra.mxu0 %v750
        %800 = vmatpush.bf16.msra.mxu0 %v749
        %801 = vmatpush.bf16.msra.mxu0 %v748
        %802 = vmatpush.bf16.msra.mxu0 %v747
        %803 = vmatmul.bf16.gmra.mxu0 %v675
        %v804 = vpop.f32.mrf.mxu0
        %v805 = vadd.f32 %v626, %v804
        %v806 = vpop.f32.mrf.mxu0
        %v807 = vadd.f32 %v626, %v806
        %808 = vmatmul.bf16.gmra.mxu0 %v677
        %v809 = vpop.f32.mrf.mxu0
        %v810 = vadd.f32 %v626, %v809
        %v811 = vpop.f32.mrf.mxu0
        %v812 = vadd.f32 %v626, %v811
        %813 = vmatmul.bf16.gmra.mxu0 %v679
        %v814 = vpop.f32.mrf.mxu0
        %v815 = vadd.f32 %v626, %v814
        %v816 = vpop.f32.mrf.mxu0
        %v817 = vadd.f32 %v626, %v816
        %818 = vmatmul.bf16.gmra.mxu0 %v681
        %v819 = vpop.f32.mrf.mxu0
        %v820 = vadd.f32 %v626, %v819
        %v821 = vpop.f32.mrf.mxu0
        %v822 = vadd.f32 %v626, %v821
        %823 = vmatmul.bf16.gmra.mxu0 %v683
        %v824 = vpop.f32.mrf.mxu0
        %v825 = vadd.f32 %v626, %v824
        %v826 = vpop.f32.mrf.mxu0
        %v827 = vadd.f32 %v626, %v826
        %828 = vmatmul.bf16.gmra.mxu0 %v685
        %v829 = vpop.f32.mrf.mxu0
        %v830 = vadd.f32 %v626, %v829
        %v831 = vpop.f32.mrf.mxu0
        %v832 = vadd.f32 %v626, %v831
        %833 = vmatmul.bf16.gmra.mxu0 %v687
        %v834 = vpop.f32.mrf.mxu0
        %v835 = vadd.f32 %v626, %v834
        %v836 = vpop.f32.mrf.mxu0
        %v837 = vadd.f32 %v626, %v836
        %838 = vmatmul.bf16.gmra.mxu0 %v689
        %v839 = vpop.f32.mrf.mxu0
        %v840 = vadd.f32 %v626, %v839
        %v841 = vpop.f32.mrf.mxu0
        %v842 = vadd.f32 %v626, %v841
        %843 = vdwg.mxu0
        %844 = vmatpush.bf16.msra.mxu0 0
        %845 = vmatpush.bf16.msra.mxu0 0
        %846 = vmatpush.bf16.msra.mxu0 0
        %847 = vmatpush.bf16.msra.mxu0 0
        %848 = vmatpush.bf16.msra.mxu0 %v758
        %849 = vmatpush.bf16.msra.mxu0 %v757
        %850 = vmatpush.bf16.msra.mxu0 %v756
        %851 = vmatpush.bf16.msra.mxu0 %v755
        %852 = vmatmul.bf16.gmra.mxu0 %v772
        %v853 = vpop.f32.mrf.mxu0
        %v854 = vadd.f32 %v805, %v853
        %v855 = vpop.f32.mrf.mxu0
        %v856 = vadd.f32 %v807, %v855
        %857 = vmatmul.bf16.gmra.mxu0 %v775
        %v858 = vpop.f32.mrf.mxu0
        %v859 = vadd.f32 %v810, %v858
        %v860 = vpop.f32.mrf.mxu0
        %v861 = vadd.f32 %v812, %v860
        %862 = vmatmul.bf16.gmra.mxu0 %v778
        %v863 = vpop.f32.mrf.mxu0
        %v864 = vadd.f32 %v815, %v863
        %v865 = vpop.f32.mrf.mxu0
        %v866 = vadd.f32 %v817, %v865
        %867 = vmatmul.bf16.gmra.mxu0 %v781
        %v868 = vpop.f32.mrf.mxu0
        %v869 = vadd.f32 %v820, %v868
        %v870 = vpop.f32.mrf.mxu0
        %v871 = vadd.f32 %v822, %v870
        %872 = vmatmul.bf16.gmra.mxu0 %v784
        %v873 = vpop.f32.mrf.mxu0
        %v874 = vadd.f32 %v825, %v873
        %v875 = vpop.f32.mrf.mxu0
        %v876 = vadd.f32 %v827, %v875
        %877 = vmatmul.bf16.gmra.mxu0 %v787
        %v878 = vpop.f32.mrf.mxu0
        %v879 = vadd.f32 %v830, %v878
        %v880 = vpop.f32.mrf.mxu0
        %v881 = vadd.f32 %v832, %v880
        %882 = vmatmul.bf16.gmra.mxu0 %v790
        %v883 = vpop.f32.mrf.mxu0
        %v884 = vadd.f32 %v835, %v883
        %v885 = vpop.f32.mrf.mxu0
        %v886 = vadd.f32 %v837, %v885
        %887 = vmatmul.bf16.gmra.mxu0 %v793
        %v888 = vpop.f32.mrf.mxu0
        %v889 = vadd.f32 %v840, %v888
        %v890 = vpop.f32.mrf.mxu0
        %v891 = vadd.f32 %v842, %v890
        %892 = vdwg.mxu0
        %vm893 = vcmp.gt.f32.partialorder %v854, 0.0
        %vm894 = vcmp.gt.f32.partialorder %v856, 0.0
        %vm895 = vcmp.gt.f32.partialorder %v859, 0.0
        %vm896 = vcmp.gt.f32.partialorder %v861, 0.0
        %vm897 = vcmp.gt.f32.partialorder %v864, 0.0
        %vm898 = vcmp.gt.f32.partialorder %v866, 0.0
        %vm899 = vcmp.gt.f32.partialorder %v869, 0.0
        %vm900 = vcmp.gt.f32.partialorder %v871, 0.0
        %vm901 = vcmp.gt.f32.partialorder %v874, 0.0
        %vm902 = vcmp.gt.f32.partialorder %v876, 0.0
        %vm903 = vcmp.gt.f32.partialorder %v879, 0.0
        %vm904 = vcmp.gt.f32.partialorder %v881, 0.0
        %vm905 = vcmp.gt.f32.partialorder %v884, 0.0
        %vm906 = vcmp.gt.f32.partialorder %v886, 0.0
        %vm907 = vcmp.gt.f32.partialorder %v889, 0.0
        %vm908 = vcmp.gt.f32.partialorder %v891, 0.0
        %v909 = vmul.f32 %v854, 0.1
        %v910 = vmul.f32 %v856, 0.1
        %v911 = vmul.f32 %v859, 0.1
        %v912 = vmul.f32 %v861, 0.1
        %v913 = vmul.f32 %v864, 0.1
        %v914 = vmul.f32 %v866, 0.1
        %v915 = vmul.f32 %v869, 0.1
        %v916 = vmul.f32 %v871, 0.1
        %v917 = vmul.f32 %v874, 0.1
        %v918 = vmul.f32 %v876, 0.1
        %v919 = vmul.f32 %v879, 0.1
        %v920 = vmul.f32 %v881, 0.1
        %v921 = vmul.f32 %v884, 0.1
        %v922 = vmul.f32 %v886, 0.1
        %v923 = vmul.f32 %v889, 0.1
        %v924 = vmul.f32 %v891, 0.1
        %v925 = vsel %vm893, %v854, %v909
        %v926 = vsel %vm894, %v856, %v910
        %v927 = vsel %vm895, %v859, %v911
        %v928 = vsel %vm896, %v861, %v912
        %v929 = vsel %vm897, %v864, %v913
        %v930 = vsel %vm898, %v866, %v914
        %v931 = vsel %vm899, %v869, %v915
        %v932 = vsel %vm900, %v871, %v916
        %v933 = vsel %vm901, %v874, %v917
        %v934 = vsel %vm902, %v876, %v918
        %v935 = vsel %vm903, %v879, %v919
        %v936 = vsel %vm904, %v881, %v920
        %v937 = vsel %vm905, %v884, %v921
        %v938 = vsel %vm906, %v886, %v922
        %v939 = vsel %vm907, %v889, %v923
        %v940 = vsel %vm908, %v891, %v924
        %v941 = vpack.c.bf16 %v925, %v925
        %v942 = vpack.c.bf16 %v926, %v926
        %v943 = vpack.c.bf16 %v927, %v927
        %v944 = vpack.c.bf16 %v928, %v928
        %v945 = vpack.c.bf16 %v929, %v929
        %v946 = vpack.c.bf16 %v930, %v930
        %v947 = vpack.c.bf16 %v931, %v931
        %v948 = vpack.c.bf16 %v932, %v932
        %v949 = vpack.c.bf16 %v933, %v933
        %v950 = vpack.c.bf16 %v934, %v934
        %v951 = vpack.c.bf16 %v935, %v935
        %v952 = vpack.c.bf16 %v936, %v936
        %v953 = vpack.c.bf16 %v937, %v937
        %v954 = vpack.c.bf16 %v938, %v938
        %v955 = vpack.c.bf16 %v939, %v939
        %v956 = vpack.c.bf16 %v940, %v940
        %v973 = vunpack.c.l.b16 %v570
        %v974 = vunpack.c.l.b16 %v571
        %v975 = vunpack.c.l.b16 %v572
        %v976 = vunpack.c.l.b16 %v573
        %v977 = vunpack.c.l.b16 %v574
        %v978 = vunpack.c.l.b16 %v575
        %v979 = vunpack.c.l.b16 %v576
        %v980 = vunpack.c.l.b16 %v577
        %v981 = vunpack.c.l.b16 %v578
        %v982 = vunpack.c.l.b16 %v579
        %v983 = vunpack.c.l.b16 %v580
        %v984 = vunpack.c.l.b16 %v581
        %v985 = vunpack.c.l.b16 %v582
        %v986 = vunpack.c.l.b16 %v583
        %v987 = vunpack.c.l.b16 %v584
        %v988 = vunpack.c.l.b16 %v585
        %v989 = vpack.c.b16 %v974, %v973
        %v990 = vpack.c.b16 %v976, %v975
        %v991 = vpack.c.b16 %v978, %v977
        %v992 = vpack.c.b16 %v980, %v979
        %v993 = vpack.c.b16 %v982, %v981
        %v994 = vpack.c.b16 %v984, %v983
        %v995 = vpack.c.b16 %v986, %v985
        %v996 = vpack.c.b16 %v988, %v987
        %v1021 = vunpack.c.l.b16 %v941
        %v1022 = vunpack.c.l.b16 %v942
        %v1023 = vunpack.c.l.b16 %v943
        %v1024 = vunpack.c.l.b16 %v944
        %v1025 = vunpack.c.l.b16 %v945
        %v1026 = vunpack.c.l.b16 %v946
        %v1027 = vunpack.c.l.b16 %v947
        %v1028 = vunpack.c.l.b16 %v948
        %v1029 = vunpack.c.l.b16 %v949
        %v1030 = vunpack.c.l.b16 %v950
        %v1031 = vunpack.c.l.b16 %v951
        %v1032 = vunpack.c.l.b16 %v952
        %v1033 = vunpack.c.l.b16 %v953
        %v1034 = vunpack.c.l.b16 %v954
        %v1035 = vunpack.c.l.b16 %v955
        %v1036 = vunpack.c.l.b16 %v956
        %v1037 = vpack.c.b16 %v1022, %v1021
        %v1038 = vpack.c.b16 %v1024, %v1023
        %v1039 = vpack.c.b16 %v1026, %v1025
        %v1040 = vpack.c.b16 %v1028, %v1027
        %v1041 = vpack.c.b16 %v1030, %v1029
        %v1042 = vpack.c.b16 %v1032, %v1031
        %v1043 = vpack.c.b16 %v1034, %v1033
        %v1044 = vpack.c.b16 %v1036, %v1035
        %v1069 = vunpack.c.l.b16 %v586
        %v1070 = vunpack.c.l.b16 %v587
        %v1071 = vunpack.c.l.b16 %v588
        %v1072 = vunpack.c.l.b16 %v589
        %v1073 = vunpack.c.l.b16 %v590
        %v1074 = vunpack.c.l.b16 %v591
        %v1075 = vunpack.c.l.b16 %v592
        %v1076 = vunpack.c.l.b16 %v593
        %v1077 = vunpack.c.l.b16 %v594
        %v1078 = vunpack.c.l.b16 %v595
        %v1079 = vunpack.c.l.b16 %v596
        %v1080 = vunpack.c.l.b16 %v597
        %v1081 = vunpack.c.l.b16 %v598
        %v1082 = vunpack.c.l.b16 %v599
        %v1083 = vunpack.c.l.b16 %v600
        %v1084 = vunpack.c.l.b16 %v601
        %v1085 = vpack.c.b16 %v1070, %v1069
        %v1086 = vpack.c.b16 %v1072, %v1071
        %v1087 = vpack.c.b16 %v1074, %v1073
        %v1088 = vpack.c.b16 %v1076, %v1075
        %v1089 = vpack.c.b16 %v1078, %v1077
        %v1090 = vpack.c.b16 %v1080, %v1079
        %v1091 = vpack.c.b16 %v1082, %v1081
        %v1092 = vpack.c.b16 %v1084, %v1083
        %v1101 = vld [vmem:[%s3 + $0x80] sm:$0xf]
        %v1102 = vld [vmem:[%s3 + $0x84] sm:$0xf]
        %v1103 = vld [vmem:[%s3 + $0x88] sm:$0xf]
        %v1104 = vld [vmem:[%s3 + $0x8c] sm:$0xf]
        %v1105 = vld [vmem:[%s3 + $0x90] sm:$0xf]
        %v1106 = vld [vmem:[%s3 + $0x94] sm:$0xf]
        %v1107 = vld [vmem:[%s3 + $0x98] sm:$0xf]
        %v1108 = vld [vmem:[%s3 + $0x9c] sm:$0xf]
        %v1109 = vld [vmem:[%s3 + $0xa0] sm:$0xf]
        %v1110 = vld [vmem:[%s3 + $0xa4] sm:$0xf]
        %v1111 = vld [vmem:[%s3 + $0xa8] sm:$0xf]
        %v1112 = vld [vmem:[%s3 + $0xac] sm:$0xf]
        %v1113 = vld [vmem:[%s3 + $0xb0] sm:$0xf]
        %v1114 = vld [vmem:[%s3 + $0xb4] sm:$0xf]
        %v1115 = vld [vmem:[%s3 + $0xb8] sm:$0xf]
        %v1116 = vld [vmem:[%s3 + $0xbc] sm:$0xf]
        %v1117 = vld [vmem:[%s3 + $0xc0] sm:$0xf]
        %v1118 = vld [vmem:[%s3 + $0xc4] sm:$0xf]
        %v1119 = vld [vmem:[%s3 + $0xc8] sm:$0xf]
        %v1120 = vld [vmem:[%s3 + $0xcc] sm:$0xf]
        %v1121 = vld [vmem:[%s3 + $0xd0] sm:$0xf]
        %v1122 = vld [vmem:[%s3 + $0xd4] sm:$0xf]
        %v1123 = vld [vmem:[%s3 + $0xd8] sm:$0xf]
        %v1124 = vld [vmem:[%s3 + $0xdc] sm:$0xf]
        %v1125 = vld [vmem:[%s3 + $0xe0] sm:$0xf]
        %v1126 = vld [vmem:[%s3 + $0xe4] sm:$0xf]
        %v1127 = vld [vmem:[%s3 + $0xe8] sm:$0xf]
        %v1128 = vld [vmem:[%s3 + $0xec] sm:$0xf]
        %v1129 = vld [vmem:[%s3 + $0xf0] sm:$0xf]
        %v1130 = vld [vmem:[%s3 + $0xf4] sm:$0xf]
        %v1131 = vld [vmem:[%s3 + $0xf8] sm:$0xf]
        %v1132 = vld [vmem:[%s3 + $0xfc] sm:$0xf]
        %v1133 = vld [vmem:[%s3 + $0x100] sm:$0xf]
        %v1134 = vld [vmem:[%s3 + $0x104] sm:$0xf]
        %v1135 = vld [vmem:[%s3 + $0x108] sm:$0xf]
        %v1136 = vld [vmem:[%s3 + $0x10c] sm:$0xf]
        %v1137 = vld [vmem:[%s3 + $0x110] sm:$0xf]
        %v1138 = vld [vmem:[%s3 + $0x114] sm:$0xf]
        %v1139 = vld [vmem:[%s3 + $0x118] sm:$0xf]
        %v1140 = vld [vmem:[%s3 + $0x11c] sm:$0xf]
        %v1141 = vld [vmem:[%s3 + $0x120] sm:$0xf]
        %v1142 = vld [vmem:[%s3 + $0x124] sm:$0xf]
        %v1143 = vld [vmem:[%s3 + $0x128] sm:$0xf]
        %v1144 = vld [vmem:[%s3 + $0x12c] sm:$0xf]
        %v1145 = vld [vmem:[%s3 + $0x130] sm:$0xf]
        %v1146 = vld [vmem:[%s3 + $0x134] sm:$0xf]
        %v1147 = vld [vmem:[%s3 + $0x138] sm:$0xf]
        %v1148 = vld [vmem:[%s3 + $0x13c] sm:$0xf]
        %v1149 = vperm.slane %v270, 2
        %v1198 = vunpack.c.l.b16 %v1101
        %v1199 = vunpack.c.l.b16 %v1102
        %v1200 = vunpack.c.l.b16 %v1103
        %v1201 = vunpack.c.l.b16 %v1104
        %v1202 = vunpack.c.l.b16 %v1105
        %v1203 = vunpack.c.l.b16 %v1106
        %v1204 = vunpack.c.l.b16 %v1107
        %v1205 = vunpack.c.l.b16 %v1108
        %v1206 = vunpack.c.l.b16 %v1109
        %v1207 = vunpack.c.l.b16 %v1110
        %v1208 = vunpack.c.l.b16 %v1111
        %v1209 = vunpack.c.l.b16 %v1112
        %v1210 = vunpack.c.l.b16 %v1113
        %v1211 = vunpack.c.l.b16 %v1114
        %v1212 = vunpack.c.l.b16 %v1115
        %v1213 = vunpack.c.l.b16 %v1116
        %v1214 = vunpack.c.l.b16 %v1117
        %v1215 = vunpack.c.l.b16 %v1118
        %v1216 = vunpack.c.l.b16 %v1119
        %v1217 = vunpack.c.l.b16 %v1120
        %v1218 = vunpack.c.l.b16 %v1121
        %v1219 = vunpack.c.l.b16 %v1122
        %v1220 = vunpack.c.l.b16 %v1123
        %v1221 = vunpack.c.l.b16 %v1124
        %v1222 = vunpack.c.l.b16 %v1125
        %v1223 = vunpack.c.l.b16 %v1126
        %v1224 = vunpack.c.l.b16 %v1127
        %v1225 = vunpack.c.l.b16 %v1128
        %v1226 = vunpack.c.l.b16 %v1129
        %v1227 = vunpack.c.l.b16 %v1130
        %v1228 = vunpack.c.l.b16 %v1131
        %v1229 = vunpack.c.l.b16 %v1132
        %v1230 = vunpack.c.l.b16 %v1133
        %v1231 = vunpack.c.l.b16 %v1134
        %v1232 = vunpack.c.l.b16 %v1135
        %v1233 = vunpack.c.l.b16 %v1136
        %v1234 = vunpack.c.l.b16 %v1137
        %v1235 = vunpack.c.l.b16 %v1138
        %v1236 = vunpack.c.l.b16 %v1139
        %v1237 = vunpack.c.l.b16 %v1140
        %v1238 = vunpack.c.l.b16 %v1141
        %v1239 = vunpack.c.l.b16 %v1142
        %v1240 = vunpack.c.l.b16 %v1143
        %v1241 = vunpack.c.l.b16 %v1144
        %v1242 = vunpack.c.l.b16 %v1145
        %v1243 = vunpack.c.l.b16 %v1146
        %v1244 = vunpack.c.l.b16 %v1147
        %v1245 = vunpack.c.l.b16 %v1148
        %v1246 = vpack.c.b16 %v1199, %v1198
        %v1247 = vpack.c.b16 %v1201, %v1200
        %v1248 = vpack.c.b16 %v1203, %v1202
        %v1249 = vpack.c.b16 %v1205, %v1204
        %v1250 = vpack.c.b16 %v1207, %v1206
        %v1251 = vpack.c.b16 %v1209, %v1208
        %v1252 = vpack.c.b16 %v1211, %v1210
        %v1253 = vpack.c.b16 %v1213, %v1212
        %v1254 = vpack.c.b16 %v1215, %v1214
        %v1255 = vpack.c.b16 %v1217, %v1216
        %v1256 = vpack.c.b16 %v1219, %v1218
        %v1257 = vpack.c.b16 %v1221, %v1220
        %v1258 = vpack.c.b16 %v1223, %v1222
        %v1259 = vpack.c.b16 %v1225, %v1224
        %v1260 = vpack.c.b16 %v1227, %v1226
        %v1261 = vpack.c.b16 %v1229, %v1228
        %v1262 = vpack.c.b16 %v1231, %v1230
        %v1263 = vpack.c.b16 %v1233, %v1232
        %v1264 = vpack.c.b16 %v1235, %v1234
        %v1265 = vpack.c.b16 %v1237, %v1236
        %v1266 = vpack.c.b16 %v1239, %v1238
        %v1267 = vpack.c.b16 %v1241, %v1240
        %v1268 = vpack.c.b16 %v1243, %v1242
        %v1269 = vpack.c.b16 %v1245, %v1244
        %1294 = vmatpush.bf16.msra.mxu0 %v1253
        %1295 = vmatpush.bf16.msra.mxu0 %v1252
        %1296 = vmatpush.bf16.msra.mxu0 %v1251
        %1297 = vmatpush.bf16.msra.mxu0 %v1250
        %1298 = vmatpush.bf16.msra.mxu0 %v1249
        %1299 = vmatpush.bf16.msra.mxu0 %v1248
        %1300 = vmatpush.bf16.msra.mxu0 %v1247
        %1301 = vmatpush.bf16.msra.mxu0 %v1246
        %1302 = vmatmul.bf16.gmra.mxu0 %v989
        %v1303 = vpop.f32.mrf.mxu0
        %v1304 = vadd.f32 %v1149, %v1303
        %v1305 = vpop.f32.mrf.mxu0
        %v1306 = vadd.f32 %v1149, %v1305
        %1307 = vmatmul.bf16.gmra.mxu0 %v990
        %v1308 = vpop.f32.mrf.mxu0
        %v1309 = vadd.f32 %v1149, %v1308
        %v1310 = vpop.f32.mrf.mxu0
        %v1311 = vadd.f32 %v1149, %v1310
        %1312 = vmatmul.bf16.gmra.mxu0 %v991
        %v1313 = vpop.f32.mrf.mxu0
        %v1314 = vadd.f32 %v1149, %v1313
        %v1315 = vpop.f32.mrf.mxu0
        %v1316 = vadd.f32 %v1149, %v1315
        %1317 = vmatmul.bf16.gmra.mxu0 %v992
        %v1318 = vpop.f32.mrf.mxu0
        %v1319 = vadd.f32 %v1149, %v1318
        %v1320 = vpop.f32.mrf.mxu0
        %v1321 = vadd.f32 %v1149, %v1320
        %1322 = vmatmul.bf16.gmra.mxu0 %v993
        %v1323 = vpop.f32.mrf.mxu0
        %v1324 = vadd.f32 %v1149, %v1323
        %v1325 = vpop.f32.mrf.mxu0
        %v1326 = vadd.f32 %v1149, %v1325
        %1327 = vmatmul.bf16.gmra.mxu0 %v994
        %v1328 = vpop.f32.mrf.mxu0
        %v1329 = vadd.f32 %v1149, %v1328
        %v1330 = vpop.f32.mrf.mxu0
        %v1331 = vadd.f32 %v1149, %v1330
        %1332 = vmatmul.bf16.gmra.mxu0 %v995
        %v1333 = vpop.f32.mrf.mxu0
        %v1334 = vadd.f32 %v1149, %v1333
        %v1335 = vpop.f32.mrf.mxu0
        %v1336 = vadd.f32 %v1149, %v1335
        %1337 = vmatmul.bf16.gmra.mxu0 %v996
        %v1338 = vpop.f32.mrf.mxu0
        %v1339 = vadd.f32 %v1149, %v1338
        %v1340 = vpop.f32.mrf.mxu0
        %v1341 = vadd.f32 %v1149, %v1340
        %1342 = vdwg.mxu0
        %1343 = vmatpush.bf16.msra.mxu0 %v1261
        %1344 = vmatpush.bf16.msra.mxu0 %v1260
        %1345 = vmatpush.bf16.msra.mxu0 %v1259
        %1346 = vmatpush.bf16.msra.mxu0 %v1258
        %1347 = vmatpush.bf16.msra.mxu0 %v1257
        %1348 = vmatpush.bf16.msra.mxu0 %v1256
        %1349 = vmatpush.bf16.msra.mxu0 %v1255
        %1350 = vmatpush.bf16.msra.mxu0 %v1254
        %1351 = vmatmul.bf16.gmra.mxu0 %v1037
        %v1352 = vpop.f32.mrf.mxu0
        %v1353 = vadd.f32 %v1304, %v1352
        %v1354 = vpop.f32.mrf.mxu0
        %v1355 = vadd.f32 %v1306, %v1354
        %1356 = vmatmul.bf16.gmra.mxu0 %v1038
        %v1357 = vpop.f32.mrf.mxu0
        %v1358 = vadd.f32 %v1309, %v1357
        %v1359 = vpop.f32.mrf.mxu0
        %v1360 = vadd.f32 %v1311, %v1359
        %1361 = vmatmul.bf16.gmra.mxu0 %v1039
        %v1362 = vpop.f32.mrf.mxu0
        %v1363 = vadd.f32 %v1314, %v1362
        %v1364 = vpop.f32.mrf.mxu0
        %v1365 = vadd.f32 %v1316, %v1364
        %1366 = vmatmul.bf16.gmra.mxu0 %v1040
        %v1367 = vpop.f32.mrf.mxu0
        %v1368 = vadd.f32 %v1319, %v1367
        %v1369 = vpop.f32.mrf.mxu0
        %v1370 = vadd.f32 %v1321, %v1369
        %1371 = vmatmul.bf16.gmra.mxu0 %v1041
        %v1372 = vpop.f32.mrf.mxu0
        %v1373 = vadd.f32 %v1324, %v1372
        %v1374 = vpop.f32.mrf.mxu0
        %v1375 = vadd.f32 %v1326, %v1374
        %1376 = vmatmul.bf16.gmra.mxu0 %v1042
        %v1377 = vpop.f32.mrf.mxu0
        %v1378 = vadd.f32 %v1329, %v1377
        %v1379 = vpop.f32.mrf.mxu0
        %v1380 = vadd.f32 %v1331, %v1379
        %1381 = vmatmul.bf16.gmra.mxu0 %v1043
        %v1382 = vpop.f32.mrf.mxu0
        %v1383 = vadd.f32 %v1334, %v1382
        %v1384 = vpop.f32.mrf.mxu0
        %v1385 = vadd.f32 %v1336, %v1384
        %1386 = vmatmul.bf16.gmra.mxu0 %v1044
        %v1387 = vpop.f32.mrf.mxu0
        %v1388 = vadd.f32 %v1339, %v1387
        %v1389 = vpop.f32.mrf.mxu0
        %v1390 = vadd.f32 %v1341, %v1389
        %1391 = vdwg.mxu0
        %1392 = vmatpush.bf16.msra.mxu0 %v1269
        %1393 = vmatpush.bf16.msra.mxu0 %v1268
        %1394 = vmatpush.bf16.msra.mxu0 %v1267
        %1395 = vmatpush.bf16.msra.mxu0 %v1266
        %1396 = vmatpush.bf16.msra.mxu0 %v1265
        %1397 = vmatpush.bf16.msra.mxu0 %v1264
        %1398 = vmatpush.bf16.msra.mxu0 %v1263
        %1399 = vmatpush.bf16.msra.mxu0 %v1262
        %1400 = vmatmul.bf16.gmra.mxu0 %v1085
        %v1401 = vpop.f32.mrf.mxu0
        %v1402 = vadd.f32 %v1353, %v1401
        %v1403 = vpop.f32.mrf.mxu0
        %v1404 = vadd.f32 %v1355, %v1403
        %1405 = vmatmul.bf16.gmra.mxu0 %v1086
        %v1406 = vpop.f32.mrf.mxu0
        %v1407 = vadd.f32 %v1358, %v1406
        %v1408 = vpop.f32.mrf.mxu0
        %v1409 = vadd.f32 %v1360, %v1408
        %1410 = vmatmul.bf16.gmra.mxu0 %v1087
        %v1411 = vpop.f32.mrf.mxu0
        %v1412 = vadd.f32 %v1363, %v1411
        %v1413 = vpop.f32.mrf.mxu0
        %v1414 = vadd.f32 %v1365, %v1413
        %1415 = vmatmul.bf16.gmra.mxu0 %v1088
        %v1416 = vpop.f32.mrf.mxu0
        %v1417 = vadd.f32 %v1368, %v1416
        %v1418 = vpop.f32.mrf.mxu0
        %v1419 = vadd.f32 %v1370, %v1418
        %1420 = vmatmul.bf16.gmra.mxu0 %v1089
        %v1421 = vpop.f32.mrf.mxu0
        %v1422 = vadd.f32 %v1373, %v1421
        %v1423 = vpop.f32.mrf.mxu0
        %v1424 = vadd.f32 %v1375, %v1423
        %1425 = vmatmul.bf16.gmra.mxu0 %v1090
        %v1426 = vpop.f32.mrf.mxu0
        %v1427 = vadd.f32 %v1378, %v1426
        %v1428 = vpop.f32.mrf.mxu0
        %v1429 = vadd.f32 %v1380, %v1428
        %1430 = vmatmul.bf16.gmra.mxu0 %v1091
        %v1431 = vpop.f32.mrf.mxu0
        %v1432 = vadd.f32 %v1383, %v1431
        %v1433 = vpop.f32.mrf.mxu0
        %v1434 = vadd.f32 %v1385, %v1433
        %1435 = vmatmul.bf16.gmra.mxu0 %v1092
        %v1436 = vpop.f32.mrf.mxu0
        %v1437 = vadd.f32 %v1388, %v1436
        %v1438 = vpop.f32.mrf.mxu0
        %v1439 = vadd.f32 %v1390, %v1438
        %1440 = vdwg.mxu0
        %vm1441 = vcmp.gt.f32.partialorder %v1402, 0.0
        %vm1442 = vcmp.gt.f32.partialorder %v1404, 0.0
        %vm1443 = vcmp.gt.f32.partialorder %v1407, 0.0
        %vm1444 = vcmp.gt.f32.partialorder %v1409, 0.0
        %vm1445 = vcmp.gt.f32.partialorder %v1412, 0.0
        %vm1446 = vcmp.gt.f32.partialorder %v1414, 0.0
        %vm1447 = vcmp.gt.f32.partialorder %v1417, 0.0
        %vm1448 = vcmp.gt.f32.partialorder %v1419, 0.0
        %vm1449 = vcmp.gt.f32.partialorder %v1422, 0.0
        %vm1450 = vcmp.gt.f32.partialorder %v1424, 0.0
        %vm1451 = vcmp.gt.f32.partialorder %v1427, 0.0
        %vm1452 = vcmp.gt.f32.partialorder %v1429, 0.0
        %vm1453 = vcmp.gt.f32.partialorder %v1432, 0.0
        %vm1454 = vcmp.gt.f32.partialorder %v1434, 0.0
        %vm1455 = vcmp.gt.f32.partialorder %v1437, 0.0
        %vm1456 = vcmp.gt.f32.partialorder %v1439, 0.0
        %v1457 = vmul.f32 %v1402, 0.1
        %v1458 = vmul.f32 %v1404, 0.1
        %v1459 = vmul.f32 %v1407, 0.1
        %v1460 = vmul.f32 %v1409, 0.1
        %v1461 = vmul.f32 %v1412, 0.1
        %v1462 = vmul.f32 %v1414, 0.1
        %v1463 = vmul.f32 %v1417, 0.1
        %v1464 = vmul.f32 %v1419, 0.1
        %v1465 = vmul.f32 %v1422, 0.1
        %v1466 = vmul.f32 %v1424, 0.1
        %v1467 = vmul.f32 %v1427, 0.1
        %v1468 = vmul.f32 %v1429, 0.1
        %v1469 = vmul.f32 %v1432, 0.1
        %v1470 = vmul.f32 %v1434, 0.1
        %v1471 = vmul.f32 %v1437, 0.1
        %v1472 = vmul.f32 %v1439, 0.1
        %v1473 = vsel %vm1441, %v1402, %v1457
        %v1474 = vsel %vm1442, %v1404, %v1458
        %v1475 = vsel %vm1443, %v1407, %v1459
        %v1476 = vsel %vm1444, %v1409, %v1460
        %v1477 = vsel %vm1445, %v1412, %v1461
        %v1478 = vsel %vm1446, %v1414, %v1462
        %v1479 = vsel %vm1447, %v1417, %v1463
        %v1480 = vsel %vm1448, %v1419, %v1464
        %v1481 = vsel %vm1449, %v1422, %v1465
        %v1482 = vsel %vm1450, %v1424, %v1466
        %v1483 = vsel %vm1451, %v1427, %v1467
        %v1484 = vsel %vm1452, %v1429, %v1468
        %v1485 = vsel %vm1453, %v1432, %v1469
        %v1486 = vsel %vm1454, %v1434, %v1470
        %v1487 = vsel %vm1455, %v1437, %v1471
        %v1488 = vsel %vm1456, %v1439, %v1472
        %v1489 = vpack.c.bf16 %v1474, %v1473
        %v1490 = vpack.c.bf16 %v1476, %v1475
        %v1491 = vpack.c.bf16 %v1478, %v1477
        %v1492 = vpack.c.bf16 %v1480, %v1479
        %v1493 = vpack.c.bf16 %v1482, %v1481
        %v1494 = vpack.c.bf16 %v1484, %v1483
        %v1495 = vpack.c.bf16 %v1486, %v1485
        %v1496 = vpack.c.bf16 %v1488, %v1487
        %v1497 = vld [vmem:[%s3 + $0x140] sm:$0xf]
        %v1498 = vld [vmem:[%s3 + $0x144] sm:$0xf]
        %v1499 = vld [vmem:[%s3 + $0x148] sm:$0xf]
        %v1500 = vld [vmem:[%s3 + $0x14c] sm:$0xf]
        %v1501 = vld [vmem:[%s3 + $0x150] sm:$0xf]
        %v1502 = vld [vmem:[%s3 + $0x154] sm:$0xf]
        %v1503 = vld [vmem:[%s3 + $0x158] sm:$0xf]
        %v1504 = vld [vmem:[%s3 + $0x15c] sm:$0xf]
        %v1505 = vld [vmem:[%s3 + $0x160] sm:$0xf]
        %v1506 = vld [vmem:[%s3 + $0x164] sm:$0xf]
        %v1507 = vld [vmem:[%s3 + $0x168] sm:$0xf]
        %v1508 = vld [vmem:[%s3 + $0x16c] sm:$0xf]
        %v1509 = vld [vmem:[%s3 + $0x170] sm:$0xf]
        %v1510 = vld [vmem:[%s3 + $0x174] sm:$0xf]
        %v1511 = vld [vmem:[%s3 + $0x178] sm:$0xf]
        %v1512 = vld [vmem:[%s3 + $0x17c] sm:$0xf]
        %v1513 = vperm.slane %v270, 3
        %v1530 = vunpack.c.l.b16 %v1497
        %v1531 = vunpack.c.l.b16 %v1498
        %v1532 = vunpack.c.l.b16 %v1499
        %v1533 = vunpack.c.l.b16 %v1500
        %v1534 = vunpack.c.l.b16 %v1501
        %v1535 = vunpack.c.l.b16 %v1502
        %v1536 = vunpack.c.l.b16 %v1503
        %v1537 = vunpack.c.l.b16 %v1504
        %v1538 = vunpack.c.l.b16 %v1505
        %v1539 = vunpack.c.l.b16 %v1506
        %v1540 = vunpack.c.l.b16 %v1507
        %v1541 = vunpack.c.l.b16 %v1508
        %v1542 = vunpack.c.l.b16 %v1509
        %v1543 = vunpack.c.l.b16 %v1510
        %v1544 = vunpack.c.l.b16 %v1511
        %v1545 = vunpack.c.l.b16 %v1512
        %v1546 = vpack.c.b16 %v1531, %v1530
        %v1547 = vpack.c.b16 %v1533, %v1532
        %v1548 = vpack.c.b16 %v1535, %v1534
        %v1549 = vpack.c.b16 %v1537, %v1536
        %v1550 = vpack.c.b16 %v1539, %v1538
        %v1551 = vpack.c.b16 %v1541, %v1540
        %v1552 = vpack.c.b16 %v1543, %v1542
        %v1553 = vpack.c.b16 %v1545, %v1544
        %1562 = vmatpush.bf16.msra.mxu0 %v1553
        %1563 = vmatpush.bf16.msra.mxu0 %v1552
        %1564 = vmatpush.bf16.msra.mxu0 %v1551
        %1565 = vmatpush.bf16.msra.mxu0 %v1550
        %1566 = vmatpush.bf16.msra.mxu0 %v1549
        %1567 = vmatpush.bf16.msra.mxu0 %v1548
        %1568 = vmatpush.bf16.msra.mxu0 %v1547
        %1569 = vmatpush.bf16.msra.mxu0 %v1546
        %1570 = vmatmul.bf16.gmra.mxu0 %v1489
        %v1571 = vpop.f32.mrf.mxu0
        %v1572 = vadd.f32 %v1513, %v1571
        %v1573 = vpop.f32.mrf.mxu0
        %v1574 = vadd.f32 %v1513, %v1573
        %1575 = vmatmul.bf16.gmra.mxu0 %v1490
        %v1576 = vpop.f32.mrf.mxu0
        %v1577 = vadd.f32 %v1513, %v1576
        %v1578 = vpop.f32.mrf.mxu0
        %v1579 = vadd.f32 %v1513, %v1578
        %1580 = vmatmul.bf16.gmra.mxu0 %v1491
        %v1581 = vpop.f32.mrf.mxu0
        %v1582 = vadd.f32 %v1513, %v1581
        %v1583 = vpop.f32.mrf.mxu0
        %v1584 = vadd.f32 %v1513, %v1583
        %1585 = vmatmul.bf16.gmra.mxu0 %v1492
        %v1586 = vpop.f32.mrf.mxu0
        %v1587 = vadd.f32 %v1513, %v1586
        %v1588 = vpop.f32.mrf.mxu0
        %v1589 = vadd.f32 %v1513, %v1588
        %1590 = vmatmul.bf16.gmra.mxu0 %v1493
        %v1591 = vpop.f32.mrf.mxu0
        %v1592 = vadd.f32 %v1513, %v1591
        %v1593 = vpop.f32.mrf.mxu0
        %v1594 = vadd.f32 %v1513, %v1593
        %1595 = vmatmul.bf16.gmra.mxu0 %v1494
        %v1596 = vpop.f32.mrf.mxu0
        %v1597 = vadd.f32 %v1513, %v1596
        %v1598 = vpop.f32.mrf.mxu0
        %v1599 = vadd.f32 %v1513, %v1598
        %1600 = vmatmul.bf16.gmra.mxu0 %v1495
        %v1601 = vpop.f32.mrf.mxu0
        %v1602 = vadd.f32 %v1513, %v1601
        %v1603 = vpop.f32.mrf.mxu0
        %v1604 = vadd.f32 %v1513, %v1603
        %1605 = vmatmul.bf16.gmra.mxu0 %v1496
        %v1606 = vpop.f32.mrf.mxu0
        %v1607 = vadd.f32 %v1513, %v1606
        %v1608 = vpop.f32.mrf.mxu0
        %v1609 = vadd.f32 %v1513, %v1608
        %1610 = vdwg.mxu0
        %v1611 = vmul.f32 %v1572, %v1572
        %v1612 = vmul.f32 %v1574, %v1574
        %v1613 = vmul.f32 %v1577, %v1577
        %v1614 = vmul.f32 %v1579, %v1579
        %v1615 = vmul.f32 %v1582, %v1582
        %v1616 = vmul.f32 %v1584, %v1584
        %v1617 = vmul.f32 %v1587, %v1587
        %v1618 = vmul.f32 %v1589, %v1589
        %v1619 = vmul.f32 %v1592, %v1592
        %v1620 = vmul.f32 %v1594, %v1594
        %v1621 = vmul.f32 %v1597, %v1597
        %v1622 = vmul.f32 %v1599, %v1599
        %v1623 = vmul.f32 %v1602, %v1602
        %v1624 = vmul.f32 %v1604, %v1604
        %v1625 = vmul.f32 %v1607, %v1607
        %v1626 = vmul.f32 %v1609, %v1609
        %1627 = vadd.xlane.f32.xlu0 %v1611
        %v1628 = vpop.xlane.xlu0 %1627
        %1629 = vadd.xlane.f32.xlu0 %v1612
        %v1630 = vpop.xlane.xlu0 %1629
        %1631 = vadd.xlane.f32.xlu0 %v1613
        %v1632 = vpop.xlane.xlu0 %1631
        %1633 = vadd.xlane.f32.xlu0 %v1614
        %v1634 = vpop.xlane.xlu0 %1633
        %1635 = vadd.xlane.f32.xlu0 %v1615
        %v1636 = vpop.xlane.xlu0 %1635
        %1637 = vadd.xlane.f32.xlu0 %v1616
        %v1638 = vpop.xlane.xlu0 %1637
        %1639 = vadd.xlane.f32.xlu0 %v1617
        %v1640 = vpop.xlane.xlu0 %1639
        %1641 = vadd.xlane.f32.xlu0 %v1618
        %v1642 = vpop.xlane.xlu0 %1641
        %1643 = vadd.xlane.f32.xlu0 %v1619
        %v1644 = vpop.xlane.xlu0 %1643
        %1645 = vadd.xlane.f32.xlu0 %v1620
        %v1646 = vpop.xlane.xlu0 %1645
        %1647 = vadd.xlane.f32.xlu0 %v1621
        %v1648 = vpop.xlane.xlu0 %1647
        %1649 = vadd.xlane.f32.xlu0 %v1622
        %v1650 = vpop.xlane.xlu0 %1649
        %1651 = vadd.xlane.f32.xlu0 %v1623
        %v1652 = vpop.xlane.xlu0 %1651
        %1653 = vadd.xlane.f32.xlu0 %v1624
        %v1654 = vpop.xlane.xlu0 %1653
        %1655 = vadd.xlane.f32.xlu0 %v1625
        %v1656 = vpop.xlane.xlu0 %1655
        %1657 = vadd.xlane.f32.xlu0 %v1626
        %v1658 = vpop.xlane.xlu0 %1657
        %v1659 = vmax.f32 %v1628, 1e-24
        %v1660 = vmax.f32 %v1630, 1e-24
        %v1661 = vmax.f32 %v1632, 1e-24
        %v1662 = vmax.f32 %v1634, 1e-24
        %v1663 = vmax.f32 %v1636, 1e-24
        %v1664 = vmax.f32 %v1638, 1e-24
        %v1665 = vmax.f32 %v1640, 1e-24
        %v1666 = vmax.f32 %v1642, 1e-24
        %v1667 = vmax.f32 %v1644, 1e-24
        %v1668 = vmax.f32 %v1646, 1e-24
        %v1669 = vmax.f32 %v1648, 1e-24
        %v1670 = vmax.f32 %v1650, 1e-24
        %v1671 = vmax.f32 %v1652, 1e-24
        %v1672 = vmax.f32 %v1654, 1e-24
        %v1673 = vmax.f32 %v1656, 1e-24
        %v1674 = vmax.f32 %v1658, 1e-24
        %v1675 = vrsqrt.pop %v1659
        %v1676 = vmul.f32 %v1675, %v1659
        %v1677 = vmul.f32 %v1676, %v1675
        %v1678 = vmul.f32 0.5, %v1677
        %v1679 = vsub.f32 1.5, %v1678
        %v1680 = vmul.f32 %v1675, %v1679
        %vm1681 = vweird.f32 %v1659
        %vm1682 = vweird.f32 %v1675
        %vm1683 = vmor %vm1681, %vm1682
        %v1684 = vsel %vm1683, %v1675, %v1680
        %v1685 = vrsqrt.pop %v1660
        %v1686 = vmul.f32 %v1685, %v1660
        %v1687 = vmul.f32 %v1686, %v1685
        %v1688 = vmul.f32 0.5, %v1687
        %v1689 = vsub.f32 1.5, %v1688
        %v1690 = vmul.f32 %v1685, %v1689
        %vm1691 = vweird.f32 %v1660
        %vm1692 = vweird.f32 %v1685
        %vm1693 = vmor %vm1691, %vm1692
        %v1694 = vsel %vm1693, %v1685, %v1690
        %v1695 = vrsqrt.pop %v1661
        %v1696 = vmul.f32 %v1695, %v1661
        %v1697 = vmul.f32 %v1696, %v1695
        %v1698 = vmul.f32 0.5, %v1697
        %v1699 = vsub.f32 1.5, %v1698
        %v1700 = vmul.f32 %v1695, %v1699
        %vm1701 = vweird.f32 %v1661
        %vm1702 = vweird.f32 %v1695
        %vm1703 = vmor %vm1701, %vm1702
        %v1704 = vsel %vm1703, %v1695, %v1700
        %v1705 = vrsqrt.pop %v1662
        %v1706 = vmul.f32 %v1705, %v1662
        %v1707 = vmul.f32 %v1706, %v1705
        %v1708 = vmul.f32 0.5, %v1707
        %v1709 = vsub.f32 1.5, %v1708
        %v1710 = vmul.f32 %v1705, %v1709
        %vm1711 = vweird.f32 %v1662
        %vm1712 = vweird.f32 %v1705
        %vm1713 = vmor %vm1711, %vm1712
        %v1714 = vsel %vm1713, %v1705, %v1710
        %v1715 = vrsqrt.pop %v1663
        %v1716 = vmul.f32 %v1715, %v1663
        %v1717 = vmul.f32 %v1716, %v1715
        %v1718 = vmul.f32 0.5, %v1717
        %v1719 = vsub.f32 1.5, %v1718
        %v1720 = vmul.f32 %v1715, %v1719
        %vm1721 = vweird.f32 %v1663
        %vm1722 = vweird.f32 %v1715
        %vm1723 = vmor %vm1721, %vm1722
        %v1724 = vsel %vm1723, %v1715, %v1720
        %v1725 = vrsqrt.pop %v1664
        %v1726 = vmul.f32 %v1725, %v1664
        %v1727 = vmul.f32 %v1726, %v1725
        %v1728 = vmul.f32 0.5, %v1727
        %v1729 = vsub.f32 1.5, %v1728
        %v1730 = vmul.f32 %v1725, %v1729
        %vm1731 = vweird.f32 %v1664
        %vm1732 = vweird.f32 %v1725
        %vm1733 = vmor %vm1731, %vm1732
        %v1734 = vsel %vm1733, %v1725, %v1730
        %v1735 = vrsqrt.pop %v1665
        %v1736 = vmul.f32 %v1735, %v1665
        %v1737 = vmul.f32 %v1736, %v1735
        %v1738 = vmul.f32 0.5, %v1737
        %v1739 = vsub.f32 1.5, %v1738
        %v1740 = vmul.f32 %v1735, %v1739
        %vm1741 = vweird.f32 %v1665
        %vm1742 = vweird.f32 %v1735
        %vm1743 = vmor %vm1741, %vm1742
        %v1744 = vsel %vm1743, %v1735, %v1740
        %v1745 = vrsqrt.pop %v1666
        %v1746 = vmul.f32 %v1745, %v1666
        %v1747 = vmul.f32 %v1746, %v1745
        %v1748 = vmul.f32 0.5, %v1747
        %v1749 = vsub.f32 1.5, %v1748
        %v1750 = vmul.f32 %v1745, %v1749
        %vm1751 = vweird.f32 %v1666
        %vm1752 = vweird.f32 %v1745
        %vm1753 = vmor %vm1751, %vm1752
        %v1754 = vsel %vm1753, %v1745, %v1750
        %v1755 = vrsqrt.pop %v1667
        %v1756 = vmul.f32 %v1755, %v1667
        %v1757 = vmul.f32 %v1756, %v1755
        %v1758 = vmul.f32 0.5, %v1757
        %v1759 = vsub.f32 1.5, %v1758
        %v1760 = vmul.f32 %v1755, %v1759
        %vm1761 = vweird.f32 %v1667
        %vm1762 = vweird.f32 %v1755
        %vm1763 = vmor %vm1761, %vm1762
        %v1764 = vsel %vm1763, %v1755, %v1760
        %v1765 = vrsqrt.pop %v1668
        %v1766 = vmul.f32 %v1765, %v1668
        %v1767 = vmul.f32 %v1766, %v1765
        %v1768 = vmul.f32 0.5, %v1767
        %v1769 = vsub.f32 1.5, %v1768
        %v1770 = vmul.f32 %v1765, %v1769
        %vm1771 = vweird.f32 %v1668
        %vm1772 = vweird.f32 %v1765
        %vm1773 = vmor %vm1771, %vm1772
        %v1774 = vsel %vm1773, %v1765, %v1770
        %v1775 = vrsqrt.pop %v1669
        %v1776 = vmul.f32 %v1775, %v1669
        %v1777 = vmul.f32 %v1776, %v1775
        %v1778 = vmul.f32 0.5, %v1777
        %v1779 = vsub.f32 1.5, %v1778
        %v1780 = vmul.f32 %v1775, %v1779
        %vm1781 = vweird.f32 %v1669
        %vm1782 = vweird.f32 %v1775
        %vm1783 = vmor %vm1781, %vm1782
        %v1784 = vsel %vm1783, %v1775, %v1780
        %v1785 = vrsqrt.pop %v1670
        %v1786 = vmul.f32 %v1785, %v1670
        %v1787 = vmul.f32 %v1786, %v1785
        %v1788 = vmul.f32 0.5, %v1787
        %v1789 = vsub.f32 1.5, %v1788
        %v1790 = vmul.f32 %v1785, %v1789
        %vm1791 = vweird.f32 %v1670
        %vm1792 = vweird.f32 %v1785
        %vm1793 = vmor %vm1791, %vm1792
        %v1794 = vsel %vm1793, %v1785, %v1790
        %v1795 = vrsqrt.pop %v1671
        %v1796 = vmul.f32 %v1795, %v1671
        %v1797 = vmul.f32 %v1796, %v1795
        %v1798 = vmul.f32 0.5, %v1797
        %v1799 = vsub.f32 1.5, %v1798
        %v1800 = vmul.f32 %v1795, %v1799
        %vm1801 = vweird.f32 %v1671
        %vm1802 = vweird.f32 %v1795
        %vm1803 = vmor %vm1801, %vm1802
        %v1804 = vsel %vm1803, %v1795, %v1800
        %v1805 = vrsqrt.pop %v1672
        %v1806 = vmul.f32 %v1805, %v1672
        %v1807 = vmul.f32 %v1806, %v1805
        %v1808 = vmul.f32 0.5, %v1807
        %v1809 = vsub.f32 1.5, %v1808
        %v1810 = vmul.f32 %v1805, %v1809
        %vm1811 = vweird.f32 %v1672
        %vm1812 = vweird.f32 %v1805
        %vm1813 = vmor %vm1811, %vm1812
        %v1814 = vsel %vm1813, %v1805, %v1810
        %v1815 = vrsqrt.pop %v1673
        %v1816 = vmul.f32 %v1815, %v1673
        %v1817 = vmul.f32 %v1816, %v1815
        %v1818 = vmul.f32 0.5, %v1817
        %v1819 = vsub.f32 1.5, %v1818
        %v1820 = vmul.f32 %v1815, %v1819
        %vm1821 = vweird.f32 %v1673
        %vm1822 = vweird.f32 %v1815
        %vm1823 = vmor %vm1821, %vm1822
        %v1824 = vsel %vm1823, %v1815, %v1820
        %v1825 = vrsqrt.pop %v1674
        %v1826 = vmul.f32 %v1825, %v1674
        %v1827 = vmul.f32 %v1826, %v1825
        %v1828 = vmul.f32 0.5, %v1827
        %v1829 = vsub.f32 1.5, %v1828
        %v1830 = vmul.f32 %v1825, %v1829
        %vm1831 = vweird.f32 %v1674
        %vm1832 = vweird.f32 %v1825
        %vm1833 = vmor %vm1831, %vm1832
        %v1834 = vsel %vm1833, %v1825, %v1830
        %v1835 = vmul.f32 %v1572, %v1684
        %v1836 = vmul.f32 %v1574, %v1694
        %v1837 = vmul.f32 %v1577, %v1704
        %v1838 = vmul.f32 %v1579, %v1714
        %v1839 = vmul.f32 %v1582, %v1724
        %v1840 = vmul.f32 %v1584, %v1734
        %v1841 = vmul.f32 %v1587, %v1744
        %v1842 = vmul.f32 %v1589, %v1754
        %v1843 = vmul.f32 %v1592, %v1764
        %v1844 = vmul.f32 %v1594, %v1774
        %v1845 = vmul.f32 %v1597, %v1784
        %v1846 = vmul.f32 %v1599, %v1794
        %v1847 = vmul.f32 %v1602, %v1804
        %v1848 = vmul.f32 %v1604, %v1814
        %v1849 = vmul.f32 %v1607, %v1824
        %v1850 = vmul.f32 %v1609, %v1834
        %v1851 = vpack.c.bf16 %v1836, %v1835
        %v1852 = vpack.c.bf16 %v1838, %v1837
        %v1853 = vpack.c.bf16 %v1840, %v1839
        %v1854 = vpack.c.bf16 %v1842, %v1841
        %v1855 = vpack.c.bf16 %v1844, %v1843
        %v1856 = vpack.c.bf16 %v1846, %v1845
        %v1857 = vpack.c.bf16 %v1848, %v1847
        %v1858 = vpack.c.bf16 %v1850, %v1849
        %v1859 = vmul.f32 %v491, %v491
        %v1860 = vmul.f32 %v493, %v493
        %v1861 = vmul.f32 %v496, %v496
        %v1862 = vmul.f32 %v498, %v498
        %v1863 = vmul.f32 %v501, %v501
        %v1864 = vmul.f32 %v503, %v503
        %v1865 = vmul.f32 %v506, %v506
        %v1866 = vmul.f32 %v508, %v508
        %v1867 = vmul.f32 %v511, %v511
        %v1868 = vmul.f32 %v513, %v513
        %v1869 = vmul.f32 %v516, %v516
        %v1870 = vmul.f32 %v518, %v518
        %v1871 = vmul.f32 %v521, %v521
        %v1872 = vmul.f32 %v523, %v523
        %v1873 = vmul.f32 %v526, %v526
        %v1874 = vmul.f32 %v528, %v528
        %v1875 = vmul.f32 %v531, %v531
        %v1876 = vmul.f32 %v533, %v533
        %v1877 = vmul.f32 %v536, %v536
        %v1878 = vmul.f32 %v538, %v538
        %v1879 = vmul.f32 %v541, %v541
        %v1880 = vmul.f32 %v543, %v543
        %v1881 = vmul.f32 %v546, %v546
        %v1882 = vmul.f32 %v548, %v548
        %v1883 = vmul.f32 %v551, %v551
        %v1884 = vmul.f32 %v553, %v553
        %v1885 = vmul.f32 %v556, %v556
        %v1886 = vmul.f32 %v558, %v558
        %v1887 = vmul.f32 %v561, %v561
        %v1888 = vmul.f32 %v563, %v563
        %v1889 = vmul.f32 %v566, %v566
        %v1890 = vmul.f32 %v568, %v568
        %1891 = vadd.xlane.f32.xlu0 %v1859
        %v1892 = vpop.xlane.xlu0 %1891
        %1893 = vadd.xlane.f32.xlu0 %v1860
        %v1894 = vpop.xlane.xlu0 %1893
        %1895 = vadd.xlane.f32.xlu0 %v1861
        %v1896 = vpop.xlane.xlu0 %1895
        %1897 = vadd.xlane.f32.xlu0 %v1862
        %v1898 = vpop.xlane.xlu0 %1897
        %1899 = vadd.xlane.f32.xlu0 %v1863
        %v1900 = vpop.xlane.xlu0 %1899
        %1901 = vadd.xlane.f32.xlu0 %v1864
        %v1902 = vpop.xlane.xlu0 %1901
        %1903 = vadd.xlane.f32.xlu0 %v1865
        %v1904 = vpop.xlane.xlu0 %1903
        %1905 = vadd.xlane.f32.xlu0 %v1866
        %v1906 = vpop.xlane.xlu0 %1905
        %1907 = vadd.xlane.f32.xlu0 %v1867
        %v1908 = vpop.xlane.xlu0 %1907
        %1909 = vadd.xlane.f32.xlu0 %v1868
        %v1910 = vpop.xlane.xlu0 %1909
        %1911 = vadd.xlane.f32.xlu0 %v1869
        %v1912 = vpop.xlane.xlu0 %1911
        %1913 = vadd.xlane.f32.xlu0 %v1870
        %v1914 = vpop.xlane.xlu0 %1913
        %1915 = vadd.xlane.f32.xlu0 %v1871
        %v1916 = vpop.xlane.xlu0 %1915
        %1917 = vadd.xlane.f32.xlu0 %v1872
        %v1918 = vpop.xlane.xlu0 %1917
        %1919 = vadd.xlane.f32.xlu0 %v1873
        %v1920 = vpop.xlane.xlu0 %1919
        %1921 = vadd.xlane.f32.xlu0 %v1874
        %v1922 = vpop.xlane.xlu0 %1921
        %1923 = vadd.xlane.f32.xlu0 %v1875
        %v1924 = vpop.xlane.xlu0 %1923
        %1925 = vadd.xlane.f32.xlu0 %v1876
        %v1926 = vpop.xlane.xlu0 %1925
        %1927 = vadd.xlane.f32.xlu0 %v1877
        %v1928 = vpop.xlane.xlu0 %1927
        %1929 = vadd.xlane.f32.xlu0 %v1878
        %v1930 = vpop.xlane.xlu0 %1929
        %1931 = vadd.xlane.f32.xlu0 %v1879
        %v1932 = vpop.xlane.xlu0 %1931
        %1933 = vadd.xlane.f32.xlu0 %v1880
        %v1934 = vpop.xlane.xlu0 %1933
        %1935 = vadd.xlane.f32.xlu0 %v1881
        %v1936 = vpop.xlane.xlu0 %1935
        %1937 = vadd.xlane.f32.xlu0 %v1882
        %v1938 = vpop.xlane.xlu0 %1937
        %1939 = vadd.xlane.f32.xlu0 %v1883
        %v1940 = vpop.xlane.xlu0 %1939
        %1941 = vadd.xlane.f32.xlu0 %v1884
        %v1942 = vpop.xlane.xlu0 %1941
        %1943 = vadd.xlane.f32.xlu0 %v1885
        %v1944 = vpop.xlane.xlu0 %1943
        %1945 = vadd.xlane.f32.xlu0 %v1886
        %v1946 = vpop.xlane.xlu0 %1945
        %1947 = vadd.xlane.f32.xlu0 %v1887
        %v1948 = vpop.xlane.xlu0 %1947
        %1949 = vadd.xlane.f32.xlu0 %v1888
        %v1950 = vpop.xlane.xlu0 %1949
        %1951 = vadd.xlane.f32.xlu0 %v1889
        %v1952 = vpop.xlane.xlu0 %1951
        %1953 = vadd.xlane.f32.xlu0 %v1890
        %v1954 = vpop.xlane.xlu0 %1953
        %v1955 = vmax.f32 %v1892, 1e-24
        %v1956 = vmax.f32 %v1894, 1e-24
        %v1957 = vmax.f32 %v1896, 1e-24
        %v1958 = vmax.f32 %v1898, 1e-24
        %v1959 = vmax.f32 %v1900, 1e-24
        %v1960 = vmax.f32 %v1902, 1e-24
        %v1961 = vmax.f32 %v1904, 1e-24
        %v1962 = vmax.f32 %v1906, 1e-24
        %v1963 = vmax.f32 %v1908, 1e-24
        %v1964 = vmax.f32 %v1910, 1e-24
        %v1965 = vmax.f32 %v1912, 1e-24
        %v1966 = vmax.f32 %v1914, 1e-24
        %v1967 = vmax.f32 %v1916, 1e-24
        %v1968 = vmax.f32 %v1918, 1e-24
        %v1969 = vmax.f32 %v1920, 1e-24
        %v1970 = vmax.f32 %v1922, 1e-24
        %v1971 = vmax.f32 %v1924, 1e-24
        %v1972 = vmax.f32 %v1926, 1e-24
        %v1973 = vmax.f32 %v1928, 1e-24
        %v1974 = vmax.f32 %v1930, 1e-24
        %v1975 = vmax.f32 %v1932, 1e-24
        %v1976 = vmax.f32 %v1934, 1e-24
        %v1977 = vmax.f32 %v1936, 1e-24
        %v1978 = vmax.f32 %v1938, 1e-24
        %v1979 = vmax.f32 %v1940, 1e-24
        %v1980 = vmax.f32 %v1942, 1e-24
        %v1981 = vmax.f32 %v1944, 1e-24
        %v1982 = vmax.f32 %v1946, 1e-24
        %v1983 = vmax.f32 %v1948, 1e-24
        %v1984 = vmax.f32 %v1950, 1e-24
        %v1985 = vmax.f32 %v1952, 1e-24
        %v1986 = vmax.f32 %v1954, 1e-24
        %v1987 = vrsqrt.pop %v1955
        %v1988 = vmul.f32 %v1987, %v1955
        %v1989 = vmul.f32 %v1988, %v1987
        %v1990 = vmul.f32 0.5, %v1989
        %v1991 = vsub.f32 1.5, %v1990
        %v1992 = vmul.f32 %v1987, %v1991
        %vm1993 = vweird.f32 %v1955
        %vm1994 = vweird.f32 %v1987
        %vm1995 = vmor %vm1993, %vm1994
        %v1996 = vsel %vm1995, %v1987, %v1992
        %v1997 = vrsqrt.pop %v1956
        %v1998 = vmul.f32 %v1997, %v1956
        %v1999 = vmul.f32 %v1998, %v1997
        %v2000 = vmul.f32 0.5, %v1999
        %v2001 = vsub.f32 1.5, %v2000
        %v2002 = vmul.f32 %v1997, %v2001
        %vm2003 = vweird.f32 %v1956
        %vm2004 = vweird.f32 %v1997
        %vm2005 = vmor %vm2003, %vm2004
        %v2006 = vsel %vm2005, %v1997, %v2002
        %v2007 = vrsqrt.pop %v1957
        %v2008 = vmul.f32 %v2007, %v1957
        %v2009 = vmul.f32 %v2008, %v2007
        %v2010 = vmul.f32 0.5, %v2009
        %v2011 = vsub.f32 1.5, %v2010
        %v2012 = vmul.f32 %v2007, %v2011
        %vm2013 = vweird.f32 %v1957
        %vm2014 = vweird.f32 %v2007
        %vm2015 = vmor %vm2013, %vm2014
        %v2016 = vsel %vm2015, %v2007, %v2012
        %v2017 = vrsqrt.pop %v1958
        %v2018 = vmul.f32 %v2017, %v1958
        %v2019 = vmul.f32 %v2018, %v2017
        %v2020 = vmul.f32 0.5, %v2019
        %v2021 = vsub.f32 1.5, %v2020
        %v2022 = vmul.f32 %v2017, %v2021
        %vm2023 = vweird.f32 %v1958
        %vm2024 = vweird.f32 %v2017
        %vm2025 = vmor %vm2023, %vm2024
        %v2026 = vsel %vm2025, %v2017, %v2022
        %v2027 = vrsqrt.pop %v1959
        %v2028 = vmul.f32 %v2027, %v1959
        %v2029 = vmul.f32 %v2028, %v2027
        %v2030 = vmul.f32 0.5, %v2029
        %v2031 = vsub.f32 1.5, %v2030
        %v2032 = vmul.f32 %v2027, %v2031
        %vm2033 = vweird.f32 %v1959
        %vm2034 = vweird.f32 %v2027
        %vm2035 = vmor %vm2033, %vm2034
        %v2036 = vsel %vm2035, %v2027, %v2032
        %v2037 = vrsqrt.pop %v1960
        %v2038 = vmul.f32 %v2037, %v1960
        %v2039 = vmul.f32 %v2038, %v2037
        %v2040 = vmul.f32 0.5, %v2039
        %v2041 = vsub.f32 1.5, %v2040
        %v2042 = vmul.f32 %v2037, %v2041
        %vm2043 = vweird.f32 %v1960
        %vm2044 = vweird.f32 %v2037
        %vm2045 = vmor %vm2043, %vm2044
        %v2046 = vsel %vm2045, %v2037, %v2042
        %v2047 = vrsqrt.pop %v1961
        %v2048 = vmul.f32 %v2047, %v1961
        %v2049 = vmul.f32 %v2048, %v2047
        %v2050 = vmul.f32 0.5, %v2049
        %v2051 = vsub.f32 1.5, %v2050
        %v2052 = vmul.f32 %v2047, %v2051
        %vm2053 = vweird.f32 %v1961
        %vm2054 = vweird.f32 %v2047
        %vm2055 = vmor %vm2053, %vm2054
        %v2056 = vsel %vm2055, %v2047, %v2052
        %v2057 = vrsqrt.pop %v1962
        %v2058 = vmul.f32 %v2057, %v1962
        %v2059 = vmul.f32 %v2058, %v2057
        %v2060 = vmul.f32 0.5, %v2059
        %v2061 = vsub.f32 1.5, %v2060
        %v2062 = vmul.f32 %v2057, %v2061
        %vm2063 = vweird.f32 %v1962
        %vm2064 = vweird.f32 %v2057
        %vm2065 = vmor %vm2063, %vm2064
        %v2066 = vsel %vm2065, %v2057, %v2062
        %v2067 = vrsqrt.pop %v1963
        %v2068 = vmul.f32 %v2067, %v1963
        %v2069 = vmul.f32 %v2068, %v2067
        %v2070 = vmul.f32 0.5, %v2069
        %v2071 = vsub.f32 1.5, %v2070
        %v2072 = vmul.f32 %v2067, %v2071
        %vm2073 = vweird.f32 %v1963
        %vm2074 = vweird.f32 %v2067
        %vm2075 = vmor %vm2073, %vm2074
        %v2076 = vsel %vm2075, %v2067, %v2072
        %v2077 = vrsqrt.pop %v1964
        %v2078 = vmul.f32 %v2077, %v1964
        %v2079 = vmul.f32 %v2078, %v2077
        %v2080 = vmul.f32 0.5, %v2079
        %v2081 = vsub.f32 1.5, %v2080
        %v2082 = vmul.f32 %v2077, %v2081
        %vm2083 = vweird.f32 %v1964
        %vm2084 = vweird.f32 %v2077
        %vm2085 = vmor %vm2083, %vm2084
        %v2086 = vsel %vm2085, %v2077, %v2082
        %v2087 = vrsqrt.pop %v1965
        %v2088 = vmul.f32 %v2087, %v1965
        %v2089 = vmul.f32 %v2088, %v2087
        %v2090 = vmul.f32 0.5, %v2089
        %v2091 = vsub.f32 1.5, %v2090
        %v2092 = vmul.f32 %v2087, %v2091
        %vm2093 = vweird.f32 %v1965
        %vm2094 = vweird.f32 %v2087
        %vm2095 = vmor %vm2093, %vm2094
        %v2096 = vsel %vm2095, %v2087, %v2092
        %v2097 = vrsqrt.pop %v1966
        %v2098 = vmul.f32 %v2097, %v1966
        %v2099 = vmul.f32 %v2098, %v2097
        %v2100 = vmul.f32 0.5, %v2099
        %v2101 = vsub.f32 1.5, %v2100
        %v2102 = vmul.f32 %v2097, %v2101
        %vm2103 = vweird.f32 %v1966
        %vm2104 = vweird.f32 %v2097
        %vm2105 = vmor %vm2103, %vm2104
        %v2106 = vsel %vm2105, %v2097, %v2102
        %v2107 = vrsqrt.pop %v1967
        %v2108 = vmul.f32 %v2107, %v1967
        %v2109 = vmul.f32 %v2108, %v2107
        %v2110 = vmul.f32 0.5, %v2109
        %v2111 = vsub.f32 1.5, %v2110
        %v2112 = vmul.f32 %v2107, %v2111
        %vm2113 = vweird.f32 %v1967
        %vm2114 = vweird.f32 %v2107
        %vm2115 = vmor %vm2113, %vm2114
        %v2116 = vsel %vm2115, %v2107, %v2112
        %v2117 = vrsqrt.pop %v1968
        %v2118 = vmul.f32 %v2117, %v1968
        %v2119 = vmul.f32 %v2118, %v2117
        %v2120 = vmul.f32 0.5, %v2119
        %v2121 = vsub.f32 1.5, %v2120
        %v2122 = vmul.f32 %v2117, %v2121
        %vm2123 = vweird.f32 %v1968
        %vm2124 = vweird.f32 %v2117
        %vm2125 = vmor %vm2123, %vm2124
        %v2126 = vsel %vm2125, %v2117, %v2122
        %v2127 = vrsqrt.pop %v1969
        %v2128 = vmul.f32 %v2127, %v1969
        %v2129 = vmul.f32 %v2128, %v2127
        %v2130 = vmul.f32 0.5, %v2129
        %v2131 = vsub.f32 1.5, %v2130
        %v2132 = vmul.f32 %v2127, %v2131
        %vm2133 = vweird.f32 %v1969
        %vm2134 = vweird.f32 %v2127
        %vm2135 = vmor %vm2133, %vm2134
        %v2136 = vsel %vm2135, %v2127, %v2132
        %v2137 = vrsqrt.pop %v1970
        %v2138 = vmul.f32 %v2137, %v1970
        %v2139 = vmul.f32 %v2138, %v2137
        %v2140 = vmul.f32 0.5, %v2139
        %v2141 = vsub.f32 1.5, %v2140
        %v2142 = vmul.f32 %v2137, %v2141
        %vm2143 = vweird.f32 %v1970
        %vm2144 = vweird.f32 %v2137
        %vm2145 = vmor %vm2143, %vm2144
        %v2146 = vsel %vm2145, %v2137, %v2142
        %v2147 = vrsqrt.pop %v1971
        %v2148 = vmul.f32 %v2147, %v1971
        %v2149 = vmul.f32 %v2148, %v2147
        %v2150 = vmul.f32 0.5, %v2149
        %v2151 = vsub.f32 1.5, %v2150
        %v2152 = vmul.f32 %v2147, %v2151
        %vm2153 = vweird.f32 %v1971
        %vm2154 = vweird.f32 %v2147
        %vm2155 = vmor %vm2153, %vm2154
        %v2156 = vsel %vm2155, %v2147, %v2152
        %v2157 = vrsqrt.pop %v1972
        %v2158 = vmul.f32 %v2157, %v1972
        %v2159 = vmul.f32 %v2158, %v2157
        %v2160 = vmul.f32 0.5, %v2159
        %v2161 = vsub.f32 1.5, %v2160
        %v2162 = vmul.f32 %v2157, %v2161
        %vm2163 = vweird.f32 %v1972
        %vm2164 = vweird.f32 %v2157
        %vm2165 = vmor %vm2163, %vm2164
        %v2166 = vsel %vm2165, %v2157, %v2162
        %v2167 = vrsqrt.pop %v1973
        %v2168 = vmul.f32 %v2167, %v1973
        %v2169 = vmul.f32 %v2168, %v2167
        %v2170 = vmul.f32 0.5, %v2169
        %v2171 = vsub.f32 1.5, %v2170
        %v2172 = vmul.f32 %v2167, %v2171
        %vm2173 = vweird.f32 %v1973
        %vm2174 = vweird.f32 %v2167
        %vm2175 = vmor %vm2173, %vm2174
        %v2176 = vsel %vm2175, %v2167, %v2172
        %v2177 = vrsqrt.pop %v1974
        %v2178 = vmul.f32 %v2177, %v1974
        %v2179 = vmul.f32 %v2178, %v2177
        %v2180 = vmul.f32 0.5, %v2179
        %v2181 = vsub.f32 1.5, %v2180
        %v2182 = vmul.f32 %v2177, %v2181
        %vm2183 = vweird.f32 %v1974
        %vm2184 = vweird.f32 %v2177
        %vm2185 = vmor %vm2183, %vm2184
        %v2186 = vsel %vm2185, %v2177, %v2182
        %v2187 = vrsqrt.pop %v1975
        %v2188 = vmul.f32 %v2187, %v1975
        %v2189 = vmul.f32 %v2188, %v2187
        %v2190 = vmul.f32 0.5, %v2189
        %v2191 = vsub.f32 1.5, %v2190
        %v2192 = vmul.f32 %v2187, %v2191
        %vm2193 = vweird.f32 %v1975
        %vm2194 = vweird.f32 %v2187
        %vm2195 = vmor %vm2193, %vm2194
        %v2196 = vsel %vm2195, %v2187, %v2192
        %v2197 = vrsqrt.pop %v1976
        %v2198 = vmul.f32 %v2197, %v1976
        %v2199 = vmul.f32 %v2198, %v2197
        %v2200 = vmul.f32 0.5, %v2199
        %v2201 = vsub.f32 1.5, %v2200
        %v2202 = vmul.f32 %v2197, %v2201
        %vm2203 = vweird.f32 %v1976
        %vm2204 = vweird.f32 %v2197
        %vm2205 = vmor %vm2203, %vm2204
        %v2206 = vsel %vm2205, %v2197, %v2202
        %v2207 = vrsqrt.pop %v1977
        %v2208 = vmul.f32 %v2207, %v1977
        %v2209 = vmul.f32 %v2208, %v2207
        %v2210 = vmul.f32 0.5, %v2209
        %v2211 = vsub.f32 1.5, %v2210
        %v2212 = vmul.f32 %v2207, %v2211
        %vm2213 = vweird.f32 %v1977
        %vm2214 = vweird.f32 %v2207
        %vm2215 = vmor %vm2213, %vm2214
        %v2216 = vsel %vm2215, %v2207, %v2212
        %v2217 = vrsqrt.pop %v1978
        %v2218 = vmul.f32 %v2217, %v1978
        %v2219 = vmul.f32 %v2218, %v2217
        %v2220 = vmul.f32 0.5, %v2219
        %v2221 = vsub.f32 1.5, %v2220
        %v2222 = vmul.f32 %v2217, %v2221
        %vm2223 = vweird.f32 %v1978
        %vm2224 = vweird.f32 %v2217
        %vm2225 = vmor %vm2223, %vm2224
        %v2226 = vsel %vm2225, %v2217, %v2222
        %v2227 = vrsqrt.pop %v1979
        %v2228 = vmul.f32 %v2227, %v1979
        %v2229 = vmul.f32 %v2228, %v2227
        %v2230 = vmul.f32 0.5, %v2229
        %v2231 = vsub.f32 1.5, %v2230
        %v2232 = vmul.f32 %v2227, %v2231
        %vm2233 = vweird.f32 %v1979
        %vm2234 = vweird.f32 %v2227
        %vm2235 = vmor %vm2233, %vm2234
        %v2236 = vsel %vm2235, %v2227, %v2232
        %v2237 = vrsqrt.pop %v1980
        %v2238 = vmul.f32 %v2237, %v1980
        %v2239 = vmul.f32 %v2238, %v2237
        %v2240 = vmul.f32 0.5, %v2239
        %v2241 = vsub.f32 1.5, %v2240
        %v2242 = vmul.f32 %v2237, %v2241
        %vm2243 = vweird.f32 %v1980
        %vm2244 = vweird.f32 %v2237
        %vm2245 = vmor %vm2243, %vm2244
        %v2246 = vsel %vm2245, %v2237, %v2242
        %v2247 = vrsqrt.pop %v1981
        %v2248 = vmul.f32 %v2247, %v1981
        %v2249 = vmul.f32 %v2248, %v2247
        %v2250 = vmul.f32 0.5, %v2249
        %v2251 = vsub.f32 1.5, %v2250
        %v2252 = vmul.f32 %v2247, %v2251
        %vm2253 = vweird.f32 %v1981
        %vm2254 = vweird.f32 %v2247
        %vm2255 = vmor %vm2253, %vm2254
        %v2256 = vsel %vm2255, %v2247, %v2252
        %v2257 = vrsqrt.pop %v1982
        %v2258 = vmul.f32 %v2257, %v1982
        %v2259 = vmul.f32 %v2258, %v2257
        %v2260 = vmul.f32 0.5, %v2259
        %v2261 = vsub.f32 1.5, %v2260
        %v2262 = vmul.f32 %v2257, %v2261
        %vm2263 = vweird.f32 %v1982
        %vm2264 = vweird.f32 %v2257
        %vm2265 = vmor %vm2263, %vm2264
        %v2266 = vsel %vm2265, %v2257, %v2262
        %v2267 = vrsqrt.pop %v1983
        %v2268 = vmul.f32 %v2267, %v1983
        %v2269 = vmul.f32 %v2268, %v2267
        %v2270 = vmul.f32 0.5, %v2269
        %v2271 = vsub.f32 1.5, %v2270
        %v2272 = vmul.f32 %v2267, %v2271
        %vm2273 = vweird.f32 %v1983
        %vm2274 = vweird.f32 %v2267
        %vm2275 = vmor %vm2273, %vm2274
        %v2276 = vsel %vm2275, %v2267, %v2272
        %v2277 = vrsqrt.pop %v1984
        %v2278 = vmul.f32 %v2277, %v1984
        %v2279 = vmul.f32 %v2278, %v2277
        %v2280 = vmul.f32 0.5, %v2279
        %v2281 = vsub.f32 1.5, %v2280
        %v2282 = vmul.f32 %v2277, %v2281
        %vm2283 = vweird.f32 %v1984
        %vm2284 = vweird.f32 %v2277
        %vm2285 = vmor %vm2283, %vm2284
        %v2286 = vsel %vm2285, %v2277, %v2282
        %v2287 = vrsqrt.pop %v1985
        %v2288 = vmul.f32 %v2287, %v1985
        %v2289 = vmul.f32 %v2288, %v2287
        %v2290 = vmul.f32 0.5, %v2289
        %v2291 = vsub.f32 1.5, %v2290
        %v2292 = vmul.f32 %v2287, %v2291
        %vm2293 = vweird.f32 %v1985
        %vm2294 = vweird.f32 %v2287
        %vm2295 = vmor %vm2293, %vm2294
        %v2296 = vsel %vm2295, %v2287, %v2292
        %v2297 = vrsqrt.pop %v1986
        %v2298 = vmul.f32 %v2297, %v1986
        %v2299 = vmul.f32 %v2298, %v2297
        %v2300 = vmul.f32 0.5, %v2299
        %v2301 = vsub.f32 1.5, %v2300
        %v2302 = vmul.f32 %v2297, %v2301
        %vm2303 = vweird.f32 %v1986
        %vm2304 = vweird.f32 %v2297
        %vm2305 = vmor %vm2303, %vm2304
        %v2306 = vsel %vm2305, %v2297, %v2302
        %v2307 = vmul.f32 %v491, %v1996
        %v2308 = vmul.f32 %v493, %v2006
        %v2309 = vmul.f32 %v496, %v2016
        %v2310 = vmul.f32 %v498, %v2026
        %v2311 = vmul.f32 %v501, %v2036
        %v2312 = vmul.f32 %v503, %v2046
        %v2313 = vmul.f32 %v506, %v2056
        %v2314 = vmul.f32 %v508, %v2066
        %v2315 = vmul.f32 %v511, %v2076
        %v2316 = vmul.f32 %v513, %v2086
        %v2317 = vmul.f32 %v516, %v2096
        %v2318 = vmul.f32 %v518, %v2106
        %v2319 = vmul.f32 %v521, %v2116
        %v2320 = vmul.f32 %v523, %v2126
        %v2321 = vmul.f32 %v526, %v2136
        %v2322 = vmul.f32 %v528, %v2146
        %v2323 = vmul.f32 %v531, %v2156
        %v2324 = vmul.f32 %v533, %v2166
        %v2325 = vmul.f32 %v536, %v2176
        %v2326 = vmul.f32 %v538, %v2186
        %v2327 = vmul.f32 %v541, %v2196
        %v2328 = vmul.f32 %v543, %v2206
        %v2329 = vmul.f32 %v546, %v2216
        %v2330 = vmul.f32 %v548, %v2226
        %v2331 = vmul.f32 %v551, %v2236
        %v2332 = vmul.f32 %v553, %v2246
        %v2333 = vmul.f32 %v556, %v2256
        %v2334 = vmul.f32 %v558, %v2266
        %v2335 = vmul.f32 %v561, %v2276
        %v2336 = vmul.f32 %v563, %v2286
        %v2337 = vmul.f32 %v566, %v2296
        %v2338 = vmul.f32 %v568, %v2306
        %v2339 = vpack.c.bf16 %v2308, %v2307
        %v2340 = vpack.c.bf16 %v2310, %v2309
        %v2341 = vpack.c.bf16 %v2312, %v2311
        %v2342 = vpack.c.bf16 %v2314, %v2313
        %v2343 = vpack.c.bf16 %v2316, %v2315
        %v2344 = vpack.c.bf16 %v2318, %v2317
        %v2345 = vpack.c.bf16 %v2320, %v2319
        %v2346 = vpack.c.bf16 %v2322, %v2321
        %v2347 = vpack.c.bf16 %v2324, %v2323
        %v2348 = vpack.c.bf16 %v2326, %v2325
        %v2349 = vpack.c.bf16 %v2328, %v2327
        %v2350 = vpack.c.bf16 %v2330, %v2329
        %v2351 = vpack.c.bf16 %v2332, %v2331
        %v2352 = vpack.c.bf16 %v2334, %v2333
        %v2353 = vpack.c.bf16 %v2336, %v2335
        %v2354 = vpack.c.bf16 %v2338, %v2337
        %v2355 = vld [vmem:[%s3 + $0x180] sm:$0xf]
        %v2356 = vld [vmem:[%s3 + $0x184] sm:$0xf]
        %v2357 = vld [vmem:[%s3 + $0x188] sm:$0xf]
        %v2358 = vld [vmem:[%s3 + $0x18c] sm:$0xf]
        %v2359 = vld [vmem:[%s3 + $0x190] sm:$0xf]
        %v2360 = vld [vmem:[%s3 + $0x194] sm:$0xf]
        %v2361 = vld [vmem:[%s3 + $0x198] sm:$0xf]
        %v2362 = vld [vmem:[%s3 + $0x19c] sm:$0xf]
        %v2363 = vld [vmem:[%s3 + $0x1a0] sm:$0xf]
        %v2364 = vld [vmem:[%s3 + $0x1a4] sm:$0xf]
        %v2365 = vld [vmem:[%s3 + $0x1a8] sm:$0xf]
        %v2366 = vld [vmem:[%s3 + $0x1ac] sm:$0xf]
        %v2367 = vld [vmem:[%s3 + $0x1b0] sm:$0xf]
        %v2368 = vld [vmem:[%s3 + $0x1b4] sm:$0xf]
        %v2369 = vld [vmem:[%s3 + $0x1b8] sm:$0xf]
        %v2370 = vld [vmem:[%s3 + $0x1bc] sm:$0xf]
        %v2371 = vperm.slane %v270, 4
        %v2388 = vunpack.c.l.b16 %v2355
        %v2389 = vunpack.c.l.b16 %v2356
        %v2390 = vunpack.c.l.b16 %v2357
        %v2391 = vunpack.c.l.b16 %v2358
        %v2392 = vunpack.c.l.b16 %v2359
        %v2393 = vunpack.c.l.b16 %v2360
        %v2394 = vunpack.c.l.b16 %v2361
        %v2395 = vunpack.c.l.b16 %v2362
        %v2396 = vunpack.c.l.b16 %v2363
        %v2397 = vunpack.c.l.b16 %v2364
        %v2398 = vunpack.c.l.b16 %v2365
        %v2399 = vunpack.c.l.b16 %v2366
        %v2400 = vunpack.c.l.b16 %v2367
        %v2401 = vunpack.c.l.b16 %v2368
        %v2402 = vunpack.c.l.b16 %v2369
        %v2403 = vunpack.c.l.b16 %v2370
        %v2404 = vpack.c.b16 %v2389, %v2388
        %v2405 = vpack.c.b16 %v2391, %v2390
        %v2406 = vpack.c.b16 %v2393, %v2392
        %v2407 = vpack.c.b16 %v2395, %v2394
        %v2408 = vpack.c.b16 %v2397, %v2396
        %v2409 = vpack.c.b16 %v2399, %v2398
        %v2410 = vpack.c.b16 %v2401, %v2400
        %v2411 = vpack.c.b16 %v2403, %v2402
        %2420 = vmatpush.bf16.msra.mxu0 %v2411
        %2421 = vmatpush.bf16.msra.mxu0 %v2410
        %2422 = vmatpush.bf16.msra.mxu0 %v2409
        %2423 = vmatpush.bf16.msra.mxu0 %v2408
        %2424 = vmatpush.bf16.msra.mxu0 %v2407
        %2425 = vmatpush.bf16.msra.mxu0 %v2406
        %2426 = vmatpush.bf16.msra.mxu0 %v2405
        %2427 = vmatpush.bf16.msra.mxu0 %v2404
        %2428 = vmatmul.bf16.gmra.mxu0 %v1851
        %v2429 = vpop.f32.mrf.mxu0
        %v2430 = vadd.f32 %v2371, %v2429
        %v2431 = vpop.f32.mrf.mxu0
        %v2432 = vadd.f32 %v2371, %v2431
        %2433 = vmatmul.bf16.gmra.mxu0 %v1852
        %v2434 = vpop.f32.mrf.mxu0
        %v2435 = vadd.f32 %v2371, %v2434
        %v2436 = vpop.f32.mrf.mxu0
        %v2437 = vadd.f32 %v2371, %v2436
        %2438 = vmatmul.bf16.gmra.mxu0 %v1853
        %v2439 = vpop.f32.mrf.mxu0
        %v2440 = vadd.f32 %v2371, %v2439
        %v2441 = vpop.f32.mrf.mxu0
        %v2442 = vadd.f32 %v2371, %v2441
        %2443 = vmatmul.bf16.gmra.mxu0 %v1854
        %v2444 = vpop.f32.mrf.mxu0
        %v2445 = vadd.f32 %v2371, %v2444
        %v2446 = vpop.f32.mrf.mxu0
        %v2447 = vadd.f32 %v2371, %v2446
        %2448 = vmatmul.bf16.gmra.mxu0 %v1855
        %v2449 = vpop.f32.mrf.mxu0
        %v2450 = vadd.f32 %v2371, %v2449
        %v2451 = vpop.f32.mrf.mxu0
        %v2452 = vadd.f32 %v2371, %v2451
        %2453 = vmatmul.bf16.gmra.mxu0 %v1856
        %v2454 = vpop.f32.mrf.mxu0
        %v2455 = vadd.f32 %v2371, %v2454
        %v2456 = vpop.f32.mrf.mxu0
        %v2457 = vadd.f32 %v2371, %v2456
        %2458 = vmatmul.bf16.gmra.mxu0 %v1857
        %v2459 = vpop.f32.mrf.mxu0
        %v2460 = vadd.f32 %v2371, %v2459
        %v2461 = vpop.f32.mrf.mxu0
        %v2462 = vadd.f32 %v2371, %v2461
        %2463 = vmatmul.bf16.gmra.mxu0 %v1858
        %v2464 = vpop.f32.mrf.mxu0
        %v2465 = vadd.f32 %v2371, %v2464
        %v2466 = vpop.f32.mrf.mxu0
        %v2467 = vadd.f32 %v2371, %v2466
        %2468 = vdwg.mxu0
        %v2469 = vld [vmem:[%s3 + $0x1c0] sm:$0xf]
        %v2470 = vld [vmem:[%s3 + $0x1c4] sm:$0xf]
        %v2471 = vld [vmem:[%s3 + $0x1c8] sm:$0xf]
        %v2472 = vld [vmem:[%s3 + $0x1cc] sm:$0xf]
        %v2473 = vld [vmem:[%s3 + $0x1d0] sm:$0xf]
        %v2474 = vld [vmem:[%s3 + $0x1d4] sm:$0xf]
        %v2475 = vld [vmem:[%s3 + $0x1d8] sm:$0xf]
        %v2476 = vld [vmem:[%s3 + $0x1dc] sm:$0xf]
        %v2477 = vld [vmem:[%s3 + $0x1e0] sm:$0xf]
        %v2478 = vld [vmem:[%s3 + $0x1e4] sm:$0xf]
        %v2479 = vld [vmem:[%s3 + $0x1e8] sm:$0xf]
        %v2480 = vld [vmem:[%s3 + $0x1ec] sm:$0xf]
        %v2481 = vld [vmem:[%s3 + $0x1f0] sm:$0xf]
        %v2482 = vld [vmem:[%s3 + $0x1f4] sm:$0xf]
        %v2483 = vld [vmem:[%s3 + $0x1f8] sm:$0xf]
        %v2484 = vld [vmem:[%s3 + $0x1fc] sm:$0xf]
        %v2485 = vperm.slane %v270, 5
        %v2502 = vunpack.c.l.b16 %v2469
        %v2503 = vunpack.c.l.b16 %v2470
        %v2504 = vunpack.c.l.b16 %v2471
        %v2505 = vunpack.c.l.b16 %v2472
        %v2506 = vunpack.c.l.b16 %v2473
        %v2507 = vunpack.c.l.b16 %v2474
        %v2508 = vunpack.c.l.b16 %v2475
        %v2509 = vunpack.c.l.b16 %v2476
        %v2510 = vunpack.c.l.b16 %v2477
        %v2511 = vunpack.c.l.b16 %v2478
        %v2512 = vunpack.c.l.b16 %v2479
        %v2513 = vunpack.c.l.b16 %v2480
        %v2514 = vunpack.c.l.b16 %v2481
        %v2515 = vunpack.c.l.b16 %v2482
        %v2516 = vunpack.c.l.b16 %v2483
        %v2517 = vunpack.c.l.b16 %v2484
        %v2518 = vpack.c.b16 %v2503, %v2502
        %v2519 = vpack.c.b16 %v2505, %v2504
        %v2520 = vpack.c.b16 %v2507, %v2506
        %v2521 = vpack.c.b16 %v2509, %v2508
        %v2522 = vpack.c.b16 %v2511, %v2510
        %v2523 = vpack.c.b16 %v2513, %v2512
        %v2524 = vpack.c.b16 %v2515, %v2514
        %v2525 = vpack.c.b16 %v2517, %v2516
        %2534 = vmatpush.bf16.msra.mxu0 %v2525
        %2535 = vmatpush.bf16.msra.mxu0 %v2524
        %2536 = vmatpush.bf16.msra.mxu0 %v2523
        %2537 = vmatpush.bf16.msra.mxu0 %v2522
        %2538 = vmatpush.bf16.msra.mxu0 %v2521
        %2539 = vmatpush.bf16.msra.mxu0 %v2520
        %2540 = vmatpush.bf16.msra.mxu0 %v2519
        %2541 = vmatpush.bf16.msra.mxu0 %v2518
        %2542 = vmatmul.bf16.gmra.mxu0 %v2339
        %v2543 = vpop.f32.mrf.mxu0
        %v2544 = vadd.f32 %v2485, %v2543
        %v2545 = vpop.f32.mrf.mxu0
        %v2546 = vadd.f32 %v2485, %v2545
        %2547 = vmatmul.bf16.gmra.mxu0 %v2340
        %v2548 = vpop.f32.mrf.mxu0
        %v2549 = vadd.f32 %v2485, %v2548
        %v2550 = vpop.f32.mrf.mxu0
        %v2551 = vadd.f32 %v2485, %v2550
        %2552 = vmatmul.bf16.gmra.mxu0 %v2341
        %v2553 = vpop.f32.mrf.mxu0
        %v2554 = vadd.f32 %v2485, %v2553
        %v2555 = vpop.f32.mrf.mxu0
        %v2556 = vadd.f32 %v2485, %v2555
        %2557 = vmatmul.bf16.gmra.mxu0 %v2342
        %v2558 = vpop.f32.mrf.mxu0
        %v2559 = vadd.f32 %v2485, %v2558
        %v2560 = vpop.f32.mrf.mxu0
        %v2561 = vadd.f32 %v2485, %v2560
        %2562 = vmatmul.bf16.gmra.mxu0 %v2343
        %v2563 = vpop.f32.mrf.mxu0
        %v2564 = vadd.f32 %v2485, %v2563
        %v2565 = vpop.f32.mrf.mxu0
        %v2566 = vadd.f32 %v2485, %v2565
        %2567 = vmatmul.bf16.gmra.mxu0 %v2344
        %v2568 = vpop.f32.mrf.mxu0
        %v2569 = vadd.f32 %v2485, %v2568
        %v2570 = vpop.f32.mrf.mxu0
        %v2571 = vadd.f32 %v2485, %v2570
        %2572 = vmatmul.bf16.gmra.mxu0 %v2345
        %v2573 = vpop.f32.mrf.mxu0
        %v2574 = vadd.f32 %v2485, %v2573
        %v2575 = vpop.f32.mrf.mxu0
        %v2576 = vadd.f32 %v2485, %v2575
        %2577 = vmatmul.bf16.gmra.mxu0 %v2346
        %v2578 = vpop.f32.mrf.mxu0
        %v2579 = vadd.f32 %v2485, %v2578
        %v2580 = vpop.f32.mrf.mxu0
        %v2581 = vadd.f32 %v2485, %v2580
        %2582 = vmatmul.bf16.gmra.mxu0 %v2347
        %v2583 = vpop.f32.mrf.mxu0
        %v2584 = vadd.f32 %v2485, %v2583
        %v2585 = vpop.f32.mrf.mxu0
        %v2586 = vadd.f32 %v2485, %v2585
        %2587 = vmatmul.bf16.gmra.mxu0 %v2348
        %v2588 = vpop.f32.mrf.mxu0
        %v2589 = vadd.f32 %v2485, %v2588
        %v2590 = vpop.f32.mrf.mxu0
        %v2591 = vadd.f32 %v2485, %v2590
        %2592 = vmatmul.bf16.gmra.mxu0 %v2349
        %v2593 = vpop.f32.mrf.mxu0
        %v2594 = vadd.f32 %v2485, %v2593
        %v2595 = vpop.f32.mrf.mxu0
        %v2596 = vadd.f32 %v2485, %v2595
        %2597 = vmatmul.bf16.gmra.mxu0 %v2350
        %v2598 = vpop.f32.mrf.mxu0
        %v2599 = vadd.f32 %v2485, %v2598
        %v2600 = vpop.f32.mrf.mxu0
        %v2601 = vadd.f32 %v2485, %v2600
        %2602 = vmatmul.bf16.gmra.mxu0 %v2351
        %v2603 = vpop.f32.mrf.mxu0
        %v2604 = vadd.f32 %v2485, %v2603
        %v2605 = vpop.f32.mrf.mxu0
        %v2606 = vadd.f32 %v2485, %v2605
        %2607 = vmatmul.bf16.gmra.mxu0 %v2352
        %v2608 = vpop.f32.mrf.mxu0
        %v2609 = vadd.f32 %v2485, %v2608
        %v2610 = vpop.f32.mrf.mxu0
        %v2611 = vadd.f32 %v2485, %v2610
        %2612 = vmatmul.bf16.gmra.mxu0 %v2353
        %v2613 = vpop.f32.mrf.mxu0
        %v2614 = vadd.f32 %v2485, %v2613
        %v2615 = vpop.f32.mrf.mxu0
        %v2616 = vadd.f32 %v2485, %v2615
        %2617 = vmatmul.bf16.gmra.mxu0 %v2354
        %v2618 = vpop.f32.mrf.mxu0
        %v2619 = vadd.f32 %v2485, %v2618
        %v2620 = vpop.f32.mrf.mxu0
        %v2621 = vadd.f32 %v2485, %v2620
        %2622 = vdwg.mxu0
        %2623 = vmax.xlane.f32.xlu0 %v2430
        %v2624 = vpop.xlane.xlu0 %2623
        %2625 = vmax.xlane.f32.xlu0 %v2432
        %v2626 = vpop.xlane.xlu0 %2625
        %2627 = vmax.xlane.f32.xlu0 %v2435
        %v2628 = vpop.xlane.xlu0 %2627
        %2629 = vmax.xlane.f32.xlu0 %v2437
        %v2630 = vpop.xlane.xlu0 %2629
        %2631 = vmax.xlane.f32.xlu0 %v2440
        %v2632 = vpop.xlane.xlu0 %2631
        %2633 = vmax.xlane.f32.xlu0 %v2442
        %v2634 = vpop.xlane.xlu0 %2633
        %2635 = vmax.xlane.f32.xlu0 %v2445
        %v2636 = vpop.xlane.xlu0 %2635
        %2637 = vmax.xlane.f32.xlu0 %v2447
        %v2638 = vpop.xlane.xlu0 %2637
        %2639 = vmax.xlane.f32.xlu0 %v2450
        %v2640 = vpop.xlane.xlu0 %2639
        %2641 = vmax.xlane.f32.xlu0 %v2452
        %v2642 = vpop.xlane.xlu0 %2641
        %2643 = vmax.xlane.f32.xlu0 %v2455
        %v2644 = vpop.xlane.xlu0 %2643
        %2645 = vmax.xlane.f32.xlu0 %v2457
        %v2646 = vpop.xlane.xlu0 %2645
        %2647 = vmax.xlane.f32.xlu0 %v2460
        %v2648 = vpop.xlane.xlu0 %2647
        %2649 = vmax.xlane.f32.xlu0 %v2462
        %v2650 = vpop.xlane.xlu0 %2649
        %2651 = vmax.xlane.f32.xlu0 %v2465
        %v2652 = vpop.xlane.xlu0 %2651
        %2653 = vmax.xlane.f32.xlu0 %v2467
        %v2654 = vpop.xlane.xlu0 %2653
        %2655 = vmax.xlane.f32.xlu0 %v2544
        %v2656 = vpop.xlane.xlu0 %2655
        %2657 = vmax.xlane.f32.xlu0 %v2546
        %v2658 = vpop.xlane.xlu0 %2657
        %2659 = vmax.xlane.f32.xlu0 %v2549
        %v2660 = vpop.xlane.xlu0 %2659
        %2661 = vmax.xlane.f32.xlu0 %v2551
        %v2662 = vpop.xlane.xlu0 %2661
        %2663 = vmax.xlane.f32.xlu0 %v2554
        %v2664 = vpop.xlane.xlu0 %2663
        %2665 = vmax.xlane.f32.xlu0 %v2556
        %v2666 = vpop.xlane.xlu0 %2665
        %2667 = vmax.xlane.f32.xlu0 %v2559
        %v2668 = vpop.xlane.xlu0 %2667
        %2669 = vmax.xlane.f32.xlu0 %v2561
        %v2670 = vpop.xlane.xlu0 %2669
        %2671 = vmax.xlane.f32.xlu0 %v2564
        %v2672 = vpop.xlane.xlu0 %2671
        %2673 = vmax.xlane.f32.xlu0 %v2566
        %v2674 = vpop.xlane.xlu0 %2673
        %2675 = vmax.xlane.f32.xlu0 %v2569
        %v2676 = vpop.xlane.xlu0 %2675
        %2677 = vmax.xlane.f32.xlu0 %v2571
        %v2678 = vpop.xlane.xlu0 %2677
        %2679 = vmax.xlane.f32.xlu0 %v2574
        %v2680 = vpop.xlane.xlu0 %2679
        %2681 = vmax.xlane.f32.xlu0 %v2576
        %v2682 = vpop.xlane.xlu0 %2681
        %2683 = vmax.xlane.f32.xlu0 %v2579
        %v2684 = vpop.xlane.xlu0 %2683
        %2685 = vmax.xlane.f32.xlu0 %v2581
        %v2686 = vpop.xlane.xlu0 %2685
        %2687 = vmax.xlane.f32.xlu0 %v2584
        %v2688 = vpop.xlane.xlu0 %2687
        %2689 = vmax.xlane.f32.xlu0 %v2586
        %v2690 = vpop.xlane.xlu0 %2689
        %2691 = vmax.xlane.f32.xlu0 %v2589
        %v2692 = vpop.xlane.xlu0 %2691
        %2693 = vmax.xlane.f32.xlu0 %v2591
        %v2694 = vpop.xlane.xlu0 %2693
        %2695 = vmax.xlane.f32.xlu0 %v2594
        %v2696 = vpop.xlane.xlu0 %2695
        %2697 = vmax.xlane.f32.xlu0 %v2596
        %v2698 = vpop.xlane.xlu0 %2697
        %2699 = vmax.xlane.f32.xlu0 %v2599
        %v2700 = vpop.xlane.xlu0 %2699
        %2701 = vmax.xlane.f32.xlu0 %v2601
        %v2702 = vpop.xlane.xlu0 %2701
        %2703 = vmax.xlane.f32.xlu0 %v2604
        %v2704 = vpop.xlane.xlu0 %2703
        %2705 = vmax.xlane.f32.xlu0 %v2606
        %v2706 = vpop.xlane.xlu0 %2705
        %2707 = vmax.xlane.f32.xlu0 %v2609
        %v2708 = vpop.xlane.xlu0 %2707
        %2709 = vmax.xlane.f32.xlu0 %v2611
        %v2710 = vpop.xlane.xlu0 %2709
        %2711 = vmax.xlane.f32.xlu0 %v2614
        %v2712 = vpop.xlane.xlu0 %2711
        %2713 = vmax.xlane.f32.xlu0 %v2616
        %v2714 = vpop.xlane.xlu0 %2713
        %2715 = vmax.xlane.f32.xlu0 %v2619
        %v2716 = vpop.xlane.xlu0 %2715
        %2717 = vmax.xlane.f32.xlu0 %v2621
        %v2718 = vpop.xlane.xlu0 %2717
        %v2719 = vsub.f32 %v2430, %v2624
        %v2720 = vsub.f32 %v2432, %v2626
        %v2721 = vsub.f32 %v2435, %v2628
        %v2722 = vsub.f32 %v2437, %v2630
        %v2723 = vsub.f32 %v2440, %v2632
        %v2724 = vsub.f32 %v2442, %v2634
        %v2725 = vsub.f32 %v2445, %v2636
        %v2726 = vsub.f32 %v2447, %v2638
        %v2727 = vsub.f32 %v2450, %v2640
        %v2728 = vsub.f32 %v2452, %v2642
        %v2729 = vsub.f32 %v2455, %v2644
        %v2730 = vsub.f32 %v2457, %v2646
        %v2731 = vsub.f32 %v2460, %v2648
        %v2732 = vsub.f32 %v2462, %v2650
        %v2733 = vsub.f32 %v2465, %v2652
        %v2734 = vsub.f32 %v2467, %v2654
        %v2735 = vsub.f32 %v2544, %v2656
        %v2736 = vsub.f32 %v2546, %v2658
        %v2737 = vsub.f32 %v2549, %v2660
        %v2738 = vsub.f32 %v2551, %v2662
        %v2739 = vsub.f32 %v2554, %v2664
        %v2740 = vsub.f32 %v2556, %v2666
        %v2741 = vsub.f32 %v2559, %v2668
        %v2742 = vsub.f32 %v2561, %v2670
        %v2743 = vsub.f32 %v2564, %v2672
        %v2744 = vsub.f32 %v2566, %v2674
        %v2745 = vsub.f32 %v2569, %v2676
        %v2746 = vsub.f32 %v2571, %v2678
        %v2747 = vsub.f32 %v2574, %v2680
        %v2748 = vsub.f32 %v2576, %v2682
        %v2749 = vsub.f32 %v2579, %v2684
        %v2750 = vsub.f32 %v2581, %v2686
        %v2751 = vsub.f32 %v2584, %v2688
        %v2752 = vsub.f32 %v2586, %v2690
        %v2753 = vsub.f32 %v2589, %v2692
        %v2754 = vsub.f32 %v2591, %v2694
        %v2755 = vsub.f32 %v2594, %v2696
        %v2756 = vsub.f32 %v2596, %v2698
        %v2757 = vsub.f32 %v2599, %v2700
        %v2758 = vsub.f32 %v2601, %v2702
        %v2759 = vsub.f32 %v2604, %v2704
        %v2760 = vsub.f32 %v2606, %v2706
        %v2761 = vsub.f32 %v2609, %v2708
        %v2762 = vsub.f32 %v2611, %v2710
        %v2763 = vsub.f32 %v2614, %v2712
        %v2764 = vsub.f32 %v2616, %v2714
        %v2765 = vsub.f32 %v2619, %v2716
        %v2766 = vsub.f32 %v2621, %v2718
        %v2767 = vmul.f32 %v2719, 1.442695
        %v2768 = vpow.pop %v2767
        %v2769 = vmul.f32 %v2720, 1.442695
        %v2770 = vpow.pop %v2769
        %v2771 = vmul.f32 %v2721, 1.442695
        %v2772 = vpow.pop %v2771
        %v2773 = vmul.f32 %v2722, 1.442695
        %v2774 = vpow.pop %v2773
        %v2775 = vmul.f32 %v2723, 1.442695
        %v2776 = vpow.pop %v2775
        %v2777 = vmul.f32 %v2724, 1.442695
        %v2778 = vpow.pop %v2777
        %v2779 = vmul.f32 %v2725, 1.442695
        %v2780 = vpow.pop %v2779
        %v2781 = vmul.f32 %v2726, 1.442695
        %v2782 = vpow.pop %v2781
        %v2783 = vmul.f32 %v2727, 1.442695
        %v2784 = vpow.pop %v2783
        %v2785 = vmul.f32 %v2728, 1.442695
        %v2786 = vpow.pop %v2785
        %v2787 = vmul.f32 %v2729, 1.442695
        %v2788 = vpow.pop %v2787
        %v2789 = vmul.f32 %v2730, 1.442695
        %v2790 = vpow.pop %v2789
        %v2791 = vmul.f32 %v2731, 1.442695
        %v2792 = vpow.pop %v2791
        %v2793 = vmul.f32 %v2732, 1.442695
        %v2794 = vpow.pop %v2793
        %v2795 = vmul.f32 %v2733, 1.442695
        %v2796 = vpow.pop %v2795
        %v2797 = vmul.f32 %v2734, 1.442695
        %v2798 = vpow.pop %v2797
        %v2799 = vmul.f32 %v2735, 1.442695
        %v2800 = vpow.pop %v2799
        %v2801 = vmul.f32 %v2736, 1.442695
        %v2802 = vpow.pop %v2801
        %v2803 = vmul.f32 %v2737, 1.442695
        %v2804 = vpow.pop %v2803
        %v2805 = vmul.f32 %v2738, 1.442695
        %v2806 = vpow.pop %v2805
        %v2807 = vmul.f32 %v2739, 1.442695
        %v2808 = vpow.pop %v2807
        %v2809 = vmul.f32 %v2740, 1.442695
        %v2810 = vpow.pop %v2809
        %v2811 = vmul.f32 %v2741, 1.442695
        %v2812 = vpow.pop %v2811
        %v2813 = vmul.f32 %v2742, 1.442695
        %v2814 = vpow.pop %v2813
        %v2815 = vmul.f32 %v2743, 1.442695
        %v2816 = vpow.pop %v2815
        %v2817 = vmul.f32 %v2744, 1.442695
        %v2818 = vpow.pop %v2817
        %v2819 = vmul.f32 %v2745, 1.442695
        %v2820 = vpow.pop %v2819
        %v2821 = vmul.f32 %v2746, 1.442695
        %v2822 = vpow.pop %v2821
        %v2823 = vmul.f32 %v2747, 1.442695
        %v2824 = vpow.pop %v2823
        %v2825 = vmul.f32 %v2748, 1.442695
        %v2826 = vpow.pop %v2825
        %v2827 = vmul.f32 %v2749, 1.442695
        %v2828 = vpow.pop %v2827
        %v2829 = vmul.f32 %v2750, 1.442695
        %v2830 = vpow.pop %v2829
        %v2831 = vmul.f32 %v2751, 1.442695
        %v2832 = vpow.pop %v2831
        %v2833 = vmul.f32 %v2752, 1.442695
        %v2834 = vpow.pop %v2833
        %v2835 = vmul.f32 %v2753, 1.442695
        %v2836 = vpow.pop %v2835
        %v2837 = vmul.f32 %v2754, 1.442695
        %v2838 = vpow.pop %v2837
        %v2839 = vmul.f32 %v2755, 1.442695
        %v2840 = vpow.pop %v2839
        %v2841 = vmul.f32 %v2756, 1.442695
        %v2842 = vpow.pop %v2841
        %v2843 = vmul.f32 %v2757, 1.442695
        %v2844 = vpow.pop %v2843
        %v2845 = vmul.f32 %v2758, 1.442695
        %v2846 = vpow.pop %v2845
        %v2847 = vmul.f32 %v2759, 1.442695
        %v2848 = vpow.pop %v2847
        %v2849 = vmul.f32 %v2760, 1.442695
        %v2850 = vpow.pop %v2849
        %v2851 = vmul.f32 %v2761, 1.442695
        %v2852 = vpow.pop %v2851
        %v2853 = vmul.f32 %v2762, 1.442695
        %v2854 = vpow.pop %v2853
        %v2855 = vmul.f32 %v2763, 1.442695
        %v2856 = vpow.pop %v2855
        %v2857 = vmul.f32 %v2764, 1.442695
        %v2858 = vpow.pop %v2857
        %v2859 = vmul.f32 %v2765, 1.442695
        %v2860 = vpow.pop %v2859
        %v2861 = vmul.f32 %v2766, 1.442695
        %v2862 = vpow.pop %v2861
        %2863 = vadd.xlane.f32.xlu0 %v2768
        %v2864 = vpop.xlane.xlu0 %2863
        %2865 = vadd.xlane.f32.xlu0 %v2770
        %v2866 = vpop.xlane.xlu0 %2865
        %2867 = vadd.xlane.f32.xlu0 %v2772
        %v2868 = vpop.xlane.xlu0 %2867
        %2869 = vadd.xlane.f32.xlu0 %v2774
        %v2870 = vpop.xlane.xlu0 %2869
        %2871 = vadd.xlane.f32.xlu0 %v2776
        %v2872 = vpop.xlane.xlu0 %2871
        %2873 = vadd.xlane.f32.xlu0 %v2778
        %v2874 = vpop.xlane.xlu0 %2873
        %2875 = vadd.xlane.f32.xlu0 %v2780
        %v2876 = vpop.xlane.xlu0 %2875
        %2877 = vadd.xlane.f32.xlu0 %v2782
        %v2878 = vpop.xlane.xlu0 %2877
        %2879 = vadd.xlane.f32.xlu0 %v2784
        %v2880 = vpop.xlane.xlu0 %2879
        %2881 = vadd.xlane.f32.xlu0 %v2786
        %v2882 = vpop.xlane.xlu0 %2881
        %2883 = vadd.xlane.f32.xlu0 %v2788
        %v2884 = vpop.xlane.xlu0 %2883
        %2885 = vadd.xlane.f32.xlu0 %v2790
        %v2886 = vpop.xlane.xlu0 %2885
        %2887 = vadd.xlane.f32.xlu0 %v2792
        %v2888 = vpop.xlane.xlu0 %2887
        %2889 = vadd.xlane.f32.xlu0 %v2794
        %v2890 = vpop.xlane.xlu0 %2889
        %2891 = vadd.xlane.f32.xlu0 %v2796
        %v2892 = vpop.xlane.xlu0 %2891
        %2893 = vadd.xlane.f32.xlu0 %v2798
        %v2894 = vpop.xlane.xlu0 %2893
        %2895 = vadd.xlane.f32.xlu0 %v2800
        %v2896 = vpop.xlane.xlu0 %2895
        %2897 = vadd.xlane.f32.xlu0 %v2802
        %v2898 = vpop.xlane.xlu0 %2897
        %2899 = vadd.xlane.f32.xlu0 %v2804
        %v2900 = vpop.xlane.xlu0 %2899
        %2901 = vadd.xlane.f32.xlu0 %v2806
        %v2902 = vpop.xlane.xlu0 %2901
        %2903 = vadd.xlane.f32.xlu0 %v2808
        %v2904 = vpop.xlane.xlu0 %2903
        %2905 = vadd.xlane.f32.xlu0 %v2810
        %v2906 = vpop.xlane.xlu0 %2905
        %2907 = vadd.xlane.f32.xlu0 %v2812
        %v2908 = vpop.xlane.xlu0 %2907
        %2909 = vadd.xlane.f32.xlu0 %v2814
        %v2910 = vpop.xlane.xlu0 %2909
        %2911 = vadd.xlane.f32.xlu0 %v2816
        %v2912 = vpop.xlane.xlu0 %2911
        %2913 = vadd.xlane.f32.xlu0 %v2818
        %v2914 = vpop.xlane.xlu0 %2913
        %2915 = vadd.xlane.f32.xlu0 %v2820
        %v2916 = vpop.xlane.xlu0 %2915
        %2917 = vadd.xlane.f32.xlu0 %v2822
        %v2918 = vpop.xlane.xlu0 %2917
        %2919 = vadd.xlane.f32.xlu0 %v2824
        %v2920 = vpop.xlane.xlu0 %2919
        %2921 = vadd.xlane.f32.xlu0 %v2826
        %v2922 = vpop.xlane.xlu0 %2921
        %2923 = vadd.xlane.f32.xlu0 %v2828
        %v2924 = vpop.xlane.xlu0 %2923
        %2925 = vadd.xlane.f32.xlu0 %v2830
        %v2926 = vpop.xlane.xlu0 %2925
        %2927 = vadd.xlane.f32.xlu0 %v2832
        %v2928 = vpop.xlane.xlu0 %2927
        %2929 = vadd.xlane.f32.xlu0 %v2834
        %v2930 = vpop.xlane.xlu0 %2929
        %2931 = vadd.xlane.f32.xlu0 %v2836
        %v2932 = vpop.xlane.xlu0 %2931
        %2933 = vadd.xlane.f32.xlu0 %v2838
        %v2934 = vpop.xlane.xlu0 %2933
        %2935 = vadd.xlane.f32.xlu0 %v2840
        %v2936 = vpop.xlane.xlu0 %2935
        %2937 = vadd.xlane.f32.xlu0 %v2842
        %v2938 = vpop.xlane.xlu0 %2937
        %2939 = vadd.xlane.f32.xlu0 %v2844
        %v2940 = vpop.xlane.xlu0 %2939
        %2941 = vadd.xlane.f32.xlu0 %v2846
        %v2942 = vpop.xlane.xlu0 %2941
        %2943 = vadd.xlane.f32.xlu0 %v2848
        %v2944 = vpop.xlane.xlu0 %2943
        %2945 = vadd.xlane.f32.xlu0 %v2850
        %v2946 = vpop.xlane.xlu0 %2945
        %2947 = vadd.xlane.f32.xlu0 %v2852
        %v2948 = vpop.xlane.xlu0 %2947
        %2949 = vadd.xlane.f32.xlu0 %v2854
        %v2950 = vpop.xlane.xlu0 %2949
        %2951 = vadd.xlane.f32.xlu0 %v2856
        %v2952 = vpop.xlane.xlu0 %2951
        %2953 = vadd.xlane.f32.xlu0 %v2858
        %v2954 = vpop.xlane.xlu0 %2953
        %2955 = vadd.xlane.f32.xlu0 %v2860
        %v2956 = vpop.xlane.xlu0 %2955
        %2957 = vadd.xlane.f32.xlu0 %v2862
        %v2958 = vpop.xlane.xlu0 %2957
        %v2959 = vrcp.pop %v2864
        %v2960 = vrcp.pop %v2866
        %v2961 = vrcp.pop %v2868
        %v2962 = vrcp.pop %v2870
        %v2963 = vrcp.pop %v2872
        %v2964 = vrcp.pop %v2874
        %v2965 = vrcp.pop %v2876
        %v2966 = vrcp.pop %v2878
        %v2967 = vrcp.pop %v2880
        %v2968 = vrcp.pop %v2882
        %v2969 = vrcp.pop %v2884
        %v2970 = vrcp.pop %v2886
        %v2971 = vrcp.pop %v2888
        %v2972 = vrcp.pop %v2890
        %v2973 = vrcp.pop %v2892
        %v2974 = vrcp.pop %v2894
        %v2975 = vrcp.pop %v2896
        %v2976 = vrcp.pop %v2898
        %v2977 = vrcp.pop %v2900
        %v2978 = vrcp.pop %v2902
        %v2979 = vrcp.pop %v2904
        %v2980 = vrcp.pop %v2906
        %v2981 = vrcp.pop %v2908
        %v2982 = vrcp.pop %v2910
        %v2983 = vrcp.pop %v2912
        %v2984 = vrcp.pop %v2914
        %v2985 = vrcp.pop %v2916
        %v2986 = vrcp.pop %v2918
        %v2987 = vrcp.pop %v2920
        %v2988 = vrcp.pop %v2922
        %v2989 = vrcp.pop %v2924
        %v2990 = vrcp.pop %v2926
        %v2991 = vrcp.pop %v2928
        %v2992 = vrcp.pop %v2930
        %v2993 = vrcp.pop %v2932
        %v2994 = vrcp.pop %v2934
        %v2995 = vrcp.pop %v2936
        %v2996 = vrcp.pop %v2938
        %v2997 = vrcp.pop %v2940
        %v2998 = vrcp.pop %v2942
        %v2999 = vrcp.pop %v2944
        %v3000 = vrcp.pop %v2946
        %v3001 = vrcp.pop %v2948
        %v3002 = vrcp.pop %v2950
        %v3003 = vrcp.pop %v2952
        %v3004 = vrcp.pop %v2954
        %v3005 = vrcp.pop %v2956
        %v3006 = vrcp.pop %v2958
        %v3007 = vmul.f32 %v2768, %v2959
        %v3008 = vmul.f32 %v2770, %v2960
        %v3009 = vmul.f32 %v2772, %v2961
        %v3010 = vmul.f32 %v2774, %v2962
        %v3011 = vmul.f32 %v2776, %v2963
        %v3012 = vmul.f32 %v2778, %v2964
        %v3013 = vmul.f32 %v2780, %v2965
        %v3014 = vmul.f32 %v2782, %v2966
        %v3015 = vmul.f32 %v2784, %v2967
        %v3016 = vmul.f32 %v2786, %v2968
        %v3017 = vmul.f32 %v2788, %v2969
        %v3018 = vmul.f32 %v2790, %v2970
        %v3019 = vmul.f32 %v2792, %v2971
        %v3020 = vmul.f32 %v2794, %v2972
        %v3021 = vmul.f32 %v2796, %v2973
        %v3022 = vmul.f32 %v2798, %v2974
        %v3023 = vmul.f32 %v2800, %v2975
        %v3024 = vmul.f32 %v2802, %v2976
        %v3025 = vmul.f32 %v2804, %v2977
        %v3026 = vmul.f32 %v2806, %v2978
        %v3027 = vmul.f32 %v2808, %v2979
        %v3028 = vmul.f32 %v2810, %v2980
        %v3029 = vmul.f32 %v2812, %v2981
        %v3030 = vmul.f32 %v2814, %v2982
        %v3031 = vmul.f32 %v2816, %v2983
        %v3032 = vmul.f32 %v2818, %v2984
        %v3033 = vmul.f32 %v2820, %v2985
        %v3034 = vmul.f32 %v2822, %v2986
        %v3035 = vmul.f32 %v2824, %v2987
        %v3036 = vmul.f32 %v2826, %v2988
        %v3037 = vmul.f32 %v2828, %v2989
        %v3038 = vmul.f32 %v2830, %v2990
        %v3039 = vmul.f32 %v2832, %v2991
        %v3040 = vmul.f32 %v2834, %v2992
        %v3041 = vmul.f32 %v2836, %v2993
        %v3042 = vmul.f32 %v2838, %v2994
        %v3043 = vmul.f32 %v2840, %v2995
        %v3044 = vmul.f32 %v2842, %v2996
        %v3045 = vmul.f32 %v2844, %v2997
        %v3046 = vmul.f32 %v2846, %v2998
        %v3047 = vmul.f32 %v2848, %v2999
        %v3048 = vmul.f32 %v2850, %v3000
        %v3049 = vmul.f32 %v2852, %v3001
        %v3050 = vmul.f32 %v2854, %v3002
        %v3051 = vmul.f32 %v2856, %v3003
        %v3052 = vmul.f32 %v2858, %v3004
        %v3053 = vmul.f32 %v2860, %v3005
        %v3054 = vmul.f32 %v2862, %v3006
        %3055 = vst [vmem:[%s248] sm:$0xff] %v3007
        %3056 = vst [vmem:[%s248 + $0x8] sm:$0xff] %v3008
        %3057 = vst [vmem:[%s248 + $0x10] sm:$0xff] %v3009
        %3058 = vst [vmem:[%s248 + $0x18] sm:$0xff] %v3010
        %3059 = vst [vmem:[%s248 + $0x20] sm:$0xff] %v3011
        %3060 = vst [vmem:[%s248 + $0x28] sm:$0xff] %v3012
        %3061 = vst [vmem:[%s248 + $0x30] sm:$0xff] %v3013
        %3062 = vst [vmem:[%s248 + $0x38] sm:$0xff] %v3014
        %3063 = vst [vmem:[%s248 + $0x40] sm:$0xff] %v3015
        %3064 = vst [vmem:[%s248 + $0x48] sm:$0xff] %v3016
        %3065 = vst [vmem:[%s248 + $0x50] sm:$0xff] %v3017
        %3066 = vst [vmem:[%s248 + $0x58] sm:$0xff] %v3018
        %3067 = vst [vmem:[%s248 + $0x60] sm:$0xff] %v3019
        %3068 = vst [vmem:[%s248 + $0x68] sm:$0xff] %v3020
        %3069 = vst [vmem:[%s248 + $0x70] sm:$0xff] %v3021
        %3070 = vst [vmem:[%s248 + $0x78] sm:$0xff] %v3022
        %s3071 = scalar_lea.vmem %s248, 128 [#allocation2]
        %3072 = vst [vmem:[%s3071] sm:$0xff] %v3023
        %3073 = vst [vmem:[%s3071 + $0x8] sm:$0xff] %v3024
        %3074 = vst [vmem:[%s3071 + $0x10] sm:$0xff] %v3025
        %3075 = vst [vmem:[%s3071 + $0x18] sm:$0xff] %v3026
        %3076 = vst [vmem:[%s3071 + $0x20] sm:$0xff] %v3027
        %3077 = vst [vmem:[%s3071 + $0x28] sm:$0xff] %v3028
        %3078 = vst [vmem:[%s3071 + $0x30] sm:$0xff] %v3029
        %3079 = vst [vmem:[%s3071 + $0x38] sm:$0xff] %v3030
        %3080 = vst [vmem:[%s3071 + $0x40] sm:$0xff] %v3031
        %3081 = vst [vmem:[%s3071 + $0x48] sm:$0xff] %v3032
        %3082 = vst [vmem:[%s3071 + $0x50] sm:$0xff] %v3033
        %3083 = vst [vmem:[%s3071 + $0x58] sm:$0xff] %v3034
        %3084 = vst [vmem:[%s3071 + $0x60] sm:$0xff] %v3035
        %3085 = vst [vmem:[%s3071 + $0x68] sm:$0xff] %v3036
        %3086 = vst [vmem:[%s3071 + $0x70] sm:$0xff] %v3037
        %3087 = vst [vmem:[%s3071 + $0x78] sm:$0xff] %v3038
        %s3088 = scalar_lea.vmem %s248, 256 [#allocation2]
        %3089 = vst [vmem:[%s3088] sm:$0xff] %v3039
        %3090 = vst [vmem:[%s3088 + $0x8] sm:$0xff] %v3040
        %3091 = vst [vmem:[%s3088 + $0x10] sm:$0xff] %v3041
        %3092 = vst [vmem:[%s3088 + $0x18] sm:$0xff] %v3042
        %3093 = vst [vmem:[%s3088 + $0x20] sm:$0xff] %v3043
        %3094 = vst [vmem:[%s3088 + $0x28] sm:$0xff] %v3044
        %3095 = vst [vmem:[%s3088 + $0x30] sm:$0xff] %v3045
        %3096 = vst [vmem:[%s3088 + $0x38] sm:$0xff] %v3046
        %3097 = vst [vmem:[%s3088 + $0x40] sm:$0xff] %v3047
        %3098 = vst [vmem:[%s3088 + $0x48] sm:$0xff] %v3048
        %3099 = vst [vmem:[%s3088 + $0x50] sm:$0xff] %v3049
        %3100 = vst [vmem:[%s3088 + $0x58] sm:$0xff] %v3050
        %3101 = vst [vmem:[%s3088 + $0x60] sm:$0xff] %v3051
        %3102 = vst [vmem:[%s3088 + $0x68] sm:$0xff] %v3052
        %3103 = vst [vmem:[%s3088 + $0x70] sm:$0xff] %v3053
        %3104 = vst [vmem:[%s3088 + $0x78] sm:$0xff] %v3054
        %s3105 = sand.u32 %s144, 1
        %s3106 = sand.u32 %s144, 1
        %s3107 = smul.addr %s3106, 384
        %s3108 = scalar_lea.vmem [#allocation2], %s3107
        // Predicated region
        $region41: #{reldn_head_forward.1} parent=39 // pred_check
          %p3109 = pneg %p154
        $region42: #{reldn_head_forward.1} parent=39 // pred_check_branch
          %3111 = sbr.rel (%p3109) target = $region44
        $region43: #{reldn_head_forward.1} parent=39 // pred_region
          %s3112 = smul.u32 16, %s16
          %s3113 = smul.addr %s3112, 8
          %s3114 = scalar_lea.vmem %s5, %s3113
          // Predicated region
          $region45: #{reldn_head_forward.1} parent=43 // pred_check
            _
          $region46: #{reldn_head_forward.1} parent=43 // pred_check_branch
            %3116 = sbr.rel (0) target = $region48
          $region47: #{reldn_head_forward.1} parent=43 // pred_region
            // Predicated region
            $region49: #{reldn_head_forward.1} parent=47 // pred_check
              _
            $region50: #{reldn_head_forward.1} parent=47 // pred_check_branch
              %3118 = sbr.rel (0) target = $region52
            $region51: #{reldn_head_forward.1} parent=47 // pred_region
              // Predicated region
              $region64: #{reldn_head_forward.1} parent=51 // pred_check
                _
              $region65: #{reldn_head_forward.1} parent=51 // pred_check_branch
                %3228 = sbr.rel (0) target = $region67
              $region66: #{reldn_head_forward.1} parent=51 // pred_region
                loop: start=0, step=1, limit=1
                $region68: #{reldn_head_forward.1} parent=66 // loop_pre_header
                  _
                $region69: #{reldn_head_forward.1} parent=66 // loop_header
                  %s3230 = sphi 0, %s3234
                  %p3231 = scmp.ge.s32.totalorder %s3230, 1
                  %s3235 = sphi %s3108, %s3108
                  %s3236 = sphi %s3114, %s3114
                $region70: #{reldn_head_forward.1} parent=66 // loop_header_branch
                  %3233 = sbr.rel (%p3231) target = $region74
                $region71: #{reldn_head_forward.1} parent=66 // loop_body
                  %v3237 = vld [vmem:[%s3235] sm:$0xff]
                  %3238 = vst [vmem:[%s3236] sm:$0xff] %v3237
                  %v3239 = vld [vmem:[%s3235 + $0x8] sm:$0xff]
                  %3240 = vst [vmem:[%s3236 + $0x8] sm:$0xff] %v3239
                  %v3241 = vld [vmem:[%s3235 + $0x10] sm:$0xff]
                  %3242 = vst [vmem:[%s3236 + $0x10] sm:$0xff] %v3241
                  %v3243 = vld [vmem:[%s3235 + $0x18] sm:$0xff]
                  %3244 = vst [vmem:[%s3236 + $0x18] sm:$0xff] %v3243
                  %v3245 = vld [vmem:[%s3235 + $0x20] sm:$0xff]
                  %3246 = vst [vmem:[%s3236 + $0x20] sm:$0xff] %v3245
                  %v3247 = vld [vmem:[%s3235 + $0x28] sm:$0xff]
                  %3248 = vst [vmem:[%s3236 + $0x28] sm:$0xff] %v3247
                  %v3249 = vld [vmem:[%s3235 + $0x30] sm:$0xff]
                  %3250 = vst [vmem:[%s3236 + $0x30] sm:$0xff] %v3249
                  %v3251 = vld [vmem:[%s3235 + $0x38] sm:$0xff]
                  %3252 = vst [vmem:[%s3236 + $0x38] sm:$0xff] %v3251
                  %v3253 = vld [vmem:[%s3235 + $0x40] sm:$0xff]
                  %3254 = vst [vmem:[%s3236 + $0x40] sm:$0xff] %v3253
                  %v3255 = vld [vmem:[%s3235 + $0x48] sm:$0xff]
                  %3256 = vst [vmem:[%s3236 + $0x48] sm:$0xff] %v3255
                  %v3257 = vld [vmem:[%s3235 + $0x50] sm:$0xff]
                  %3258 = vst [vmem:[%s3236 + $0x50] sm:$0xff] %v3257
                  %v3259 = vld [vmem:[%s3235 + $0x58] sm:$0xff]
                  %3260 = vst [vmem:[%s3236 + $0x58] sm:$0xff] %v3259
                  %v3261 = vld [vmem:[%s3235 + $0x60] sm:$0xff]
                  %3262 = vst [vmem:[%s3236 + $0x60] sm:$0xff] %v3261
                  %v3263 = vld [vmem:[%s3235 + $0x68] sm:$0xff]
                  %3264 = vst [vmem:[%s3236 + $0x68] sm:$0xff] %v3263
                  %v3265 = vld [vmem:[%s3235 + $0x70] sm:$0xff]
                  %3266 = vst [vmem:[%s3236 + $0x70] sm:$0xff] %v3265
                  %v3267 = vld [vmem:[%s3235 + $0x78] sm:$0xff]
                  %3268 = vst [vmem:[%s3236 + $0x78] sm:$0xff] %v3267
                  %v3269 = vld [vmem:[%s3235 + $0x80] sm:$0xff]
                  %3270 = vst [vmem:[%s3236 + $0x180] sm:$0xff] %v3269
                  %v3271 = vld [vmem:[%s3235 + $0x88] sm:$0xff]
                  %3272 = vst [vmem:[%s3236 + $0x188] sm:$0xff] %v3271
                  %v3273 = vld [vmem:[%s3235 + $0x90] sm:$0xff]
                  %3274 = vst [vmem:[%s3236 + $0x190] sm:$0xff] %v3273
                  %v3275 = vld [vmem:[%s3235 + $0x98] sm:$0xff]
                  %3276 = vst [vmem:[%s3236 + $0x198] sm:$0xff] %v3275
                  %v3277 = vld [vmem:[%s3235 + $0xa0] sm:$0xff]
                  %3278 = vst [vmem:[%s3236 + $0x1a0] sm:$0xff] %v3277
                  %v3279 = vld [vmem:[%s3235 + $0xa8] sm:$0xff]
                  %3280 = vst [vmem:[%s3236 + $0x1a8] sm:$0xff] %v3279
                  %v3281 = vld [vmem:[%s3235 + $0xb0] sm:$0xff]
                  %3282 = vst [vmem:[%s3236 + $0x1b0] sm:$0xff] %v3281
                  %v3283 = vld [vmem:[%s3235 + $0xb8] sm:$0xff]
                  %3284 = vst [vmem:[%s3236 + $0x1b8] sm:$0xff] %v3283
                  %v3285 = vld [vmem:[%s3235 + $0xc0] sm:$0xff]
                  %3286 = vst [vmem:[%s3236 + $0x1c0] sm:$0xff] %v3285
                  %v3287 = vld [vmem:[%s3235 + $0xc8] sm:$0xff]
                  %3288 = vst [vmem:[%s3236 + $0x1c8] sm:$0xff] %v3287
                  %v3289 = vld [vmem:[%s3235 + $0xd0] sm:$0xff]
                  %3290 = vst [vmem:[%s3236 + $0x1d0] sm:$0xff] %v3289
                  %v3291 = vld [vmem:[%s3235 + $0xd8] sm:$0xff]
                  %3292 = vst [vmem:[%s3236 + $0x1d8] sm:$0xff] %v3291
                  %v3293 = vld [vmem:[%s3235 + $0xe0] sm:$0xff]
                  %3294 = vst [vmem:[%s3236 + $0x1e0] sm:$0xff] %v3293
                  %v3295 = vld [vmem:[%s3235 + $0xe8] sm:$0xff]
                  %3296 = vst [vmem:[%s3236 + $0x1e8] sm:$0xff] %v3295
                  %v3297 = vld [vmem:[%s3235 + $0xf0] sm:$0xff]
                  %3298 = vst [vmem:[%s3236 + $0x1f0] sm:$0xff] %v3297
                  %v3299 = vld [vmem:[%s3235 + $0xf8] sm:$0xff]
                  %3300 = vst [vmem:[%s3236 + $0x1f8] sm:$0xff] %v3299
                  %v3301 = vld [vmem:[%s3235 + $0x100] sm:$0xff]
                  %3302 = vst [vmem:[%s3236 + $0x300] sm:$0xff] %v3301
                  %v3303 = vld [vmem:[%s3235 + $0x108] sm:$0xff]
                  %3304 = vst [vmem:[%s3236 + $0x308] sm:$0xff] %v3303
                  %v3305 = vld [vmem:[%s3235 + $0x110] sm:$0xff]
                  %3306 = vst [vmem:[%s3236 + $0x310] sm:$0xff] %v3305
                  %v3307 = vld [vmem:[%s3235 + $0x118] sm:$0xff]
                  %3308 = vst [vmem:[%s3236 + $0x318] sm:$0xff] %v3307
                  %v3309 = vld [vmem:[%s3235 + $0x120] sm:$0xff]
                  %3310 = vst [vmem:[%s3236 + $0x320] sm:$0xff] %v3309
                  %v3311 = vld [vmem:[%s3235 + $0x128] sm:$0xff]
                  %3312 = vst [vmem:[%s3236 + $0x328] sm:$0xff] %v3311
                  %v3313 = vld [vmem:[%s3235 + $0x130] sm:$0xff]
                  %3314 = vst [vmem:[%s3236 + $0x330] sm:$0xff] %v3313
                  %v3315 = vld [vmem:[%s3235 + $0x138] sm:$0xff]
                  %3316 = vst [vmem:[%s3236 + $0x338] sm:$0xff] %v3315
                  %v3317 = vld [vmem:[%s3235 + $0x140] sm:$0xff]
                  %3318 = vst [vmem:[%s3236 + $0x340] sm:$0xff] %v3317
                  %v3319 = vld [vmem:[%s3235 + $0x148] sm:$0xff]
                  %3320 = vst [vmem:[%s3236 + $0x348] sm:$0xff] %v3319
                  %v3321 = vld [vmem:[%s3235 + $0x150] sm:$0xff]
                  %3322 = vst [vmem:[%s3236 + $0x350] sm:$0xff] %v3321
                  %v3323 = vld [vmem:[%s3235 + $0x158] sm:$0xff]
                  %3324 = vst [vmem:[%s3236 + $0x358] sm:$0xff] %v3323
                  %v3325 = vld [vmem:[%s3235 + $0x160] sm:$0xff]
                  %3326 = vst [vmem:[%s3236 + $0x360] sm:$0xff] %v3325
                  %v3327 = vld [vmem:[%s3235 + $0x168] sm:$0xff]
                  %3328 = vst [vmem:[%s3236 + $0x368] sm:$0xff] %v3327
                  %v3329 = vld [vmem:[%s3235 + $0x170] sm:$0xff]
                  %3330 = vst [vmem:[%s3236 + $0x370] sm:$0xff] %v3329
                  %v3331 = vld [vmem:[%s3235 + $0x178] sm:$0xff]
                  %3332 = vst [vmem:[%s3236 + $0x378] sm:$0xff] %v3331
                $region72: #{reldn_head_forward.1} parent=66 // loop_footer
                  %s3234 = sadd.s32 1, %s3230
                $region73: #{reldn_head_forward.1} parent=66 // loop_footer_branch
                  %3229 = sbr.rel target = $region69
                $region74: #{reldn_head_forward.1} parent=66 // loop_exit
                  _
              $region67: #{reldn_head_forward.1} parent=51 // pred_fallthru
                _
              // Predicated region
              $region75: #{reldn_head_forward.1} parent=51 // pred_check
                _
              $region76: #{reldn_head_forward.1} parent=51 // pred_check_branch
                %3334 = sbr.rel target = $region78
              $region77: #{reldn_head_forward.1} parent=51 // pred_region
                _
              $region78: #{reldn_head_forward.1} parent=51 // pred_fallthru
                _
            $region52: #{reldn_head_forward.1} parent=47 // pred_fallthru
              _
            // Predicated region
            $region53: #{reldn_head_forward.1} parent=47 // pred_check
              _
            $region54: #{reldn_head_forward.1} parent=47 // pred_check_branch
              %3120 = sbr.rel target = $region56
            $region55: #{reldn_head_forward.1} parent=47 // pred_region
              %s3122 = ssub.s32 256, 1
              loop: start=0, step=1, limit=1
              $region57: #{reldn_head_forward.1} parent=55 // loop_pre_header
                _
              $region58: #{reldn_head_forward.1} parent=55 // loop_header
                %s3124 = sphi 0, %s3128
                %p3125 = scmp.ge.s32.totalorder %s3124, 1
                %s3129 = sphi %s3108, %s3108
                %s3130 = sphi %s3114, %s3114
              $region59: #{reldn_head_forward.1} parent=55 // loop_header_branch
                %3127 = sbr.rel (%p3125) target = $region63
              $region60: #{reldn_head_forward.1} parent=55 // loop_body
                %v3131 = vld [vmem:[%s3129] sm:%s3122]
                %3132 = vst [vmem:[%s3130] sm:%s3122] %v3131
                %v3133 = vld [vmem:[%s3129 + $0x8] sm:%s3122]
                %3134 = vst [vmem:[%s3130 + $0x8] sm:%s3122] %v3133
                %v3135 = vld [vmem:[%s3129 + $0x10] sm:%s3122]
                %3136 = vst [vmem:[%s3130 + $0x10] sm:%s3122] %v3135
                %v3137 = vld [vmem:[%s3129 + $0x18] sm:%s3122]
                %3138 = vst [vmem:[%s3130 + $0x18] sm:%s3122] %v3137
                %v3139 = vld [vmem:[%s3129 + $0x20] sm:%s3122]
                %3140 = vst [vmem:[%s3130 + $0x20] sm:%s3122] %v3139
                %v3141 = vld [vmem:[%s3129 + $0x28] sm:%s3122]
                %3142 = vst [vmem:[%s3130 + $0x28] sm:%s3122] %v3141
                %v3143 = vld [vmem:[%s3129 + $0x30] sm:%s3122]
                %3144 = vst [vmem:[%s3130 + $0x30] sm:%s3122] %v3143
                %v3145 = vld [vmem:[%s3129 + $0x38] sm:%s3122]
                %3146 = vst [vmem:[%s3130 + $0x38] sm:%s3122] %v3145
                %v3147 = vld [vmem:[%s3129 + $0x40] sm:%s3122]
                %3148 = vst [vmem:[%s3130 + $0x40] sm:%s3122] %v3147
                %v3149 = vld [vmem:[%s3129 + $0x48] sm:%s3122]
                %3150 = vst [vmem:[%s3130 + $0x48] sm:%s3122] %v3149
                %v3151 = vld [vmem:[%s3129 + $0x50] sm:%s3122]
                %3152 = vst [vmem:[%s3130 + $0x50] sm:%s3122] %v3151
                %v3153 = vld [vmem:[%s3129 + $0x58] sm:%s3122]
                %3154 = vst [vmem:[%s3130 + $0x58] sm:%s3122] %v3153
                %v3155 = vld [vmem:[%s3129 + $0x60] sm:%s3122]
                %3156 = vst [vmem:[%s3130 + $0x60] sm:%s3122] %v3155
                %v3157 = vld [vmem:[%s3129 + $0x68] sm:%s3122]
                %3158 = vst [vmem:[%s3130 + $0x68] sm:%s3122] %v3157
                %v3159 = vld [vmem:[%s3129 + $0x70] sm:%s3122]
                %3160 = vst [vmem:[%s3130 + $0x70] sm:%s3122] %v3159
                %v3161 = vld [vmem:[%s3129 + $0x78] sm:%s3122]
                %3162 = vst [vmem:[%s3130 + $0x78] sm:%s3122] %v3161
                %v3163 = vld [vmem:[%s3129 + $0x80] sm:%s3122]
                %3164 = vst [vmem:[%s3130 + $0x180] sm:%s3122] %v3163
                %v3165 = vld [vmem:[%s3129 + $0x88] sm:%s3122]
                %3166 = vst [vmem:[%s3130 + $0x188] sm:%s3122] %v3165
                %v3167 = vld [vmem:[%s3129 + $0x90] sm:%s3122]
                %3168 = vst [vmem:[%s3130 + $0x190] sm:%s3122] %v3167
                %v3169 = vld [vmem:[%s3129 + $0x98] sm:%s3122]
                %3170 = vst [vmem:[%s3130 + $0x198] sm:%s3122] %v3169
                %v3171 = vld [vmem:[%s3129 + $0xa0] sm:%s3122]
                %3172 = vst [vmem:[%s3130 + $0x1a0] sm:%s3122] %v3171
                %v3173 = vld [vmem:[%s3129 + $0xa8] sm:%s3122]
                %3174 = vst [vmem:[%s3130 + $0x1a8] sm:%s3122] %v3173
                %v3175 = vld [vmem:[%s3129 + $0xb0] sm:%s3122]
                %3176 = vst [vmem:[%s3130 + $0x1b0] sm:%s3122] %v3175
                %v3177 = vld [vmem:[%s3129 + $0xb8] sm:%s3122]
                %3178 = vst [vmem:[%s3130 + $0x1b8] sm:%s3122] %v3177
                %v3179 = vld [vmem:[%s3129 + $0xc0] sm:%s3122]
                %3180 = vst [vmem:[%s3130 + $0x1c0] sm:%s3122] %v3179
                %v3181 = vld [vmem:[%s3129 + $0xc8] sm:%s3122]
                %3182 = vst [vmem:[%s3130 + $0x1c8] sm:%s3122] %v3181
                %v3183 = vld [vmem:[%s3129 + $0xd0] sm:%s3122]
                %3184 = vst [vmem:[%s3130 + $0x1d0] sm:%s3122] %v3183
                %v3185 = vld [vmem:[%s3129 + $0xd8] sm:%s3122]
                %3186 = vst [vmem:[%s3130 + $0x1d8] sm:%s3122] %v3185
                %v3187 = vld [vmem:[%s3129 + $0xe0] sm:%s3122]
                %3188 = vst [vmem:[%s3130 + $0x1e0] sm:%s3122] %v3187
                %v3189 = vld [vmem:[%s3129 + $0xe8] sm:%s3122]
                %3190 = vst [vmem:[%s3130 + $0x1e8] sm:%s3122] %v3189
                %v3191 = vld [vmem:[%s3129 + $0xf0] sm:%s3122]
                %3192 = vst [vmem:[%s3130 + $0x1f0] sm:%s3122] %v3191
                %v3193 = vld [vmem:[%s3129 + $0xf8] sm:%s3122]
                %3194 = vst [vmem:[%s3130 + $0x1f8] sm:%s3122] %v3193
                %v3195 = vld [vmem:[%s3129 + $0x100] sm:%s3122]
                %3196 = vst [vmem:[%s3130 + $0x300] sm:%s3122] %v3195
                %v3197 = vld [vmem:[%s3129 + $0x108] sm:%s3122]
                %3198 = vst [vmem:[%s3130 + $0x308] sm:%s3122] %v3197
                %v3199 = vld [vmem:[%s3129 + $0x110] sm:%s3122]
                %3200 = vst [vmem:[%s3130 + $0x310] sm:%s3122] %v3199
                %v3201 = vld [vmem:[%s3129 + $0x118] sm:%s3122]
                %3202 = vst [vmem:[%s3130 + $0x318] sm:%s3122] %v3201
                %v3203 = vld [vmem:[%s3129 + $0x120] sm:%s3122]
                %3204 = vst [vmem:[%s3130 + $0x320] sm:%s3122] %v3203
                %v3205 = vld [vmem:[%s3129 + $0x128] sm:%s3122]
                %3206 = vst [vmem:[%s3130 + $0x328] sm:%s3122] %v3205
                %v3207 = vld [vmem:[%s3129 + $0x130] sm:%s3122]
                %3208 = vst [vmem:[%s3130 + $0x330] sm:%s3122] %v3207
                %v3209 = vld [vmem:[%s3129 + $0x138] sm:%s3122]
                %3210 = vst [vmem:[%s3130 + $0x338] sm:%s3122] %v3209
                %v3211 = vld [vmem:[%s3129 + $0x140] sm:%s3122]
                %3212 = vst [vmem:[%s3130 + $0x340] sm:%s3122] %v3211
                %v3213 = vld [vmem:[%s3129 + $0x148] sm:%s3122]
                %3214 = vst [vmem:[%s3130 + $0x348] sm:%s3122] %v3213
                %v3215 = vld [vmem:[%s3129 + $0x150] sm:%s3122]
                %3216 = vst [vmem:[%s3130 + $0x350] sm:%s3122] %v3215
                %v3217 = vld [vmem:[%s3129 + $0x158] sm:%s3122]
                %3218 = vst [vmem:[%s3130 + $0x358] sm:%s3122] %v3217
                %v3219 = vld [vmem:[%s3129 + $0x160] sm:%s3122]
                %3220 = vst [vmem:[%s3130 + $0x360] sm:%s3122] %v3219
                %v3221 = vld [vmem:[%s3129 + $0x168] sm:%s3122]
                %3222 = vst [vmem:[%s3130 + $0x368] sm:%s3122] %v3221
                %v3223 = vld [vmem:[%s3129 + $0x170] sm:%s3122]
                %3224 = vst [vmem:[%s3130 + $0x370] sm:%s3122] %v3223
                %v3225 = vld [vmem:[%s3129 + $0x178] sm:%s3122]
                %3226 = vst [vmem:[%s3130 + $0x378] sm:%s3122] %v3225
              $region61: #{reldn_head_forward.1} parent=55 // loop_footer
                %s3128 = sadd.s32 1, %s3124
              $region62: #{reldn_head_forward.1} parent=55 // loop_footer_branch
                %3123 = sbr.rel target = $region58
              $region63: #{reldn_head_forward.1} parent=55 // loop_exit
                _
            $region56: #{reldn_head_forward.1} parent=47 // pred_fallthru
              _
          $region48: #{reldn_head_forward.1} parent=43 // pred_fallthru
            _
          %3335 = vnop
        $region44: #{reldn_head_forward.1} parent=39 // pred_fallthru
          _
      $region40: #{reldn_head_forward.1} parent=5 // pred_fallthru
        _
      %p3336 = scmp.le.s32.totalorder 2, %s11
      // Predicated region
      $region79: #{reldn_head_forward.1} parent=5 // pred_check
        %p3337 = pneg %p3336
      $region80: #{reldn_head_forward.1} parent=5 // pred_check_branch
        %3339 = sbr.rel (%p3337) target = $region82
      $region81: #{reldn_head_forward.1} parent=5 // pred_region
        %s3340 = ssub.s32 %s11, 2
        // Predicated region
        $region83: #{reldn_head_forward.1} parent=81 // pred_check
          %p3341 = pneg %p160
        $region84: #{reldn_head_forward.1} parent=81 // pred_check_branch
          %3343 = sbr.rel (%p3341) target = $region86
        $region85: #{reldn_head_forward.1} parent=81 // pred_region
          %s3344 = sand.u32 %s145, 1
          %s3345 = sand.u32 %s145, 1
          %s3346 = smul.addr %s3345, 384
          %s3347 = scalar_lea.vmem [#allocation2], %s3346
        $region86: #{reldn_head_forward.1} parent=81 // pred_fallthru
          _
      $region82: #{reldn_head_forward.1} parent=5 // pred_fallthru
        _
    $region6: #{reldn_head_forward.1} parent=1 // loop_footer
      %s15 = sadd.s32 1, %s11
    $region7: #{reldn_head_forward.1} parent=1 // loop_footer_branch
      %10 = sbr.rel target = $region3
    $region8: #{reldn_head_forward.1} parent=1 // loop_exit
      _

</llo_original>
